<compile_context>
chip_gen: v5e
topology: v5e:2x2
jax: 0.10.0
libtpu: 0.0.40
codegen_flags: <defaults>
</compile_context>

<pallas_src>
import jax
import jax.numpy as jnp
import numpy as np
from jax.experimental import pallas as pl
from jax.experimental.pallas import tpu as pltpu

EMBED_DIM = 768                       # CLIP ViT-L/14 projection dim
INPUT_DIM = EMBED_DIM * 2 + 1         # 1537 (image + text + sentiment)
HIDDEN_DIM = 1024
LN_EPS = 1e-5


# ---------------------------------------------------------------------------
# Pallas kernel: EngagementHead forward for one batch tile
#   img_ref : [TB, 768]   bf16  (pipelined batch tile)
#   txt_ref : [TB, 768]   bf16  (pipelined batch tile)
#   sent_ref: [TB, 1]     f32   (pipelined batch tile)
#   w1i_ref : [768, 1024] bf16  (gamma-folded fc1 rows for image, resident)
#   w1t_ref : [768, 1024] bf16  (gamma-folded fc1 rows for text, resident)
#   w1s_ref : [1, 1024]   f32   (gamma-folded fc1 row for sentiment)
#   b1_ref  : [1, 1024]   f32   (b1 + beta @ w1)
#   w2_ref  : [1, 1024]   f32   (fc2 weight as a row -> VPU reduction)
#   b2_ref  : [1, 1]      f32   (SMEM scalar)
#   o_ref   : [TB, 1]     f32
# Dropout(p=0.1) is an identity at inference time.
# ---------------------------------------------------------------------------
def engagement_head_kernel(img_ref, txt_ref, sent_ref,
                           w1i_ref, w1t_ref, w1s_ref,
                           b1_ref, w2_ref, b2_ref, o_ref):
    inv_n = jnp.float32(1.0 / INPUT_DIM)

    xi = img_ref[...].astype(jnp.float32)          # [TB, 768]
    xt = txt_ref[...].astype(jnp.float32)          # [TB, 768]
    xs = sent_ref[...].astype(jnp.float32)         # [TB, 1]

    # LayerNorm statistics over the (virtual) 1537-wide feature vector,
    # accumulated across the three pieces in f32 (biased variance, eps=1e-5).
    total = (jnp.sum(xi, axis=-1, keepdims=True)
             + jnp.sum(xt, axis=-1, keepdims=True) + xs)
    mean = total * inv_n
    ci = xi - mean
    ct = xt - mean
    cs = xs - mean
    var = (jnp.sum(ci * ci, axis=-1, keepdims=True)
           + jnp.sum(ct * ct, axis=-1, keepdims=True) + cs * cs) * inv_n
    rstd = jax.lax.rsqrt(var + LN_EPS)

    # gamma/beta are folded into w1'/b1' offline, so fc1 consumes the raw
    # normalized features: two lane-aligned 768-wide bf16 MXU matmuls with f32
    # accumulation + a rank-1 f32 VPU update for the sentiment column.
    xni = (ci * rstd).astype(jnp.bfloat16)
    xnt = (ct * rstd).astype(jnp.bfloat16)
    h = jnp.dot(xni, w1i_ref[...], preferred_element_type=jnp.float32)
    h = h + jnp.dot(xnt, w1t_ref[...], preferred_element_type=jnp.float32)
    h = h + (cs * rstd) * w1s_ref[...]             # [TB,1] * [1,1024]
    h = jnp.maximum(h + b1_ref[...], 0.0)          # ReLU; dropout = identity

    # fc2 (out_features=1): VPU multiply + cross-lane reduce (no N=1 MXU op).
    out = jnp.sum(h * w2_ref[...], axis=-1, keepdims=True) + b2_ref[0, 0]
    o_ref[...] = out.astype(o_ref.dtype)


def engagement_head(img, txt, sent, w1_img, w1_txt, w1_sent, b1, w2_row, b2,
                    *, tb=512):
    """img/txt: [B, 768] (bf16), sent: [B, 1] f32 -> [B, 1] f32."""
    B = img.shape[0]
    if B <= tb:
        # Guarantee >=2 grid steps when possible so the "parallel" batch axis
        # can occupy both TensorCores on v7x (no-op on single-TC v5e/v6e).
        tb = max(8, ((pl.cdiv(B, 2) + 7) // 8) * 8)
    grid = (pl.cdiv(B, tb),)

    batch_map = lambda i: (i, 0)
    const_map = lambda i: (0, 0)

    return pl.pallas_call(
        engagement_head_kernel,
        out_shape=jax.ShapeDtypeStruct((B, 1), jnp.float32),
        grid_spec=pltpu.PrefetchScalarGridSpec(
            num_scalar_prefetch=0,
            grid=grid,
            in_specs=[
                pl.BlockSpec((tb, EMBED_DIM), batch_map),            # image tile
                pl.BlockSpec((tb, EMBED_DIM), batch_map),            # text tile
                pl.BlockSpec((tb, 1), batch_map),                    # sentiment col
                pl.BlockSpec((EMBED_DIM, HIDDEN_DIM), const_map),    # w1' image half
                pl.BlockSpec((EMBED_DIM, HIDDEN_DIM), const_map),    # w1' text half
                pl.BlockSpec((1, HIDDEN_DIM), const_map),            # w1' sentiment row
                pl.BlockSpec((1, HIDDEN_DIM), const_map),            # b1'
                pl.BlockSpec((1, HIDDEN_DIM), const_map),            # w2 row
                pl.BlockSpec(memory_space=pltpu.MemorySpace.SMEM),   # b2 scalar
            ],
            out_specs=pl.BlockSpec((tb, 1), batch_map),
        ),
        compiler_params=pltpu.CompilerParams(
            dimension_semantics=("parallel",),        # batch axis across v7x's 2 TCs
            vmem_limit_bytes=48 * 1024 * 1024,        # fits v7x 64 MiB physical VMEM
        ),
    )(img, txt, sent, w1_img, w1_txt, w1_sent, b1, w2_row, b2)


# ---------------------------------------------------------------------------
# Pure-JAX reference of EngagementHead (f32, unfolded gamma/beta).
# ---------------------------------------------------------------------------
def engagement_head_ref(x, gamma, beta, w1, b1, w2, b2):
    mean = jnp.mean(x, axis=-1, keepdims=True)
    var = jnp.mean((x - mean) ** 2, axis=-1, keepdims=True)
    xn = (x - mean) * jax.lax.rsqrt(var + LN_EPS) * gamma + beta
    h = jnp.maximum(xn @ w1 + b1, 0.0)
    return h @ w2 + b2


# ---------------------------------------------------------------------------
# Parameters (head params match EngagementHead.__init__ shapes; w1/w2 are kept
# in [in, out] orientation, i.e. already transposed vs PyTorch's [out, in]).
# gamma/beta are made non-trivial so the offline fold is actually exercised.
# ---------------------------------------------------------------------------
def make_head_params(key):
    ks = jax.random.split(key, 6)
    gamma = 1.0 + 0.1 * jax.random.normal(ks[0], (INPUT_DIM,), jnp.float32)
    beta = 0.05 * jax.random.normal(ks[1], (INPUT_DIM,), jnp.float32)
    w1 = jax.random.normal(ks[2], (INPUT_DIM, HIDDEN_DIM), jnp.float32) * 0.02
    b1 = jax.random.normal(ks[3], (1, HIDDEN_DIM), jnp.float32) * 0.01
    w2 = jax.random.normal(ks[4], (HIDDEN_DIM, 1), jnp.float32) * 0.02
    b2 = jax.random.normal(ks[5], (1, 1), jnp.float32) * 0.01
    return dict(gamma=gamma, beta=beta, w1=w1, b1=b1, w2=w2, b2=b2)


def prep_head_for_kernel(hp):
    """Fold the LayerNorm affine into fc1 and split the weights for the kernel.

      ((x-mean)*rstd*gamma + beta) @ w1 + b1
        == ((x-mean)*rstd) @ (gamma[:,None]*w1) + (b1 + beta @ w1)

    Row scaling is done in f32; only afterwards are the main blocks bf16-cast.
    """
    w1f = hp["gamma"].reshape(-1, 1) * hp["w1"]                  # [1537,1024] f32
    b1f = hp["b1"] + hp["beta"].reshape(1, -1) @ hp["w1"]        # [1,1024]   f32
    return dict(
        w1_img=w1f[:EMBED_DIM].astype(jnp.bfloat16),                  # [768,1024] bf16
        w1_txt=w1f[EMBED_DIM:2 * EMBED_DIM].astype(jnp.bfloat16),     # [768,1024] bf16
        w1_sent=w1f[2 * EMBED_DIM:],                                  # [1,1024]   f32
        b1=b1f,
        w2_row=hp["w2"].T,                                            # [1,1024]   f32
        b2=hp["b2"],                                                  # [1,1]      f32
    )


def make_encoder_params(key):
    ks = jax.random.split(key, 2)
    img_proj = jax.random.normal(ks[0], (3 * 16 * 16, EMBED_DIM), jnp.float32) * 0.02
    tok_emb = jax.random.normal(ks[1], (1000, EMBED_DIM), jnp.float32) * 0.02
    return dict(img_proj=img_proj, tok_emb=tok_emb)


# ---------------------------------------------------------------------------
# Deterministic stand-in "CLIP" encoders (plain JAX glue — not the hot path).
# ---------------------------------------------------------------------------
def get_image_features(image, img_proj):
    # image: [B, 3, H, W] (NCHW) -> flatten -> linear -> [B, 768]
    B = image.shape[0]
    return image.reshape(B, -1) @ img_proj


def get_text_features(input_ids, attention_mask, tok_emb):
    # input_ids: [B, S] int32, attention_mask: [B, S] -> masked mean pool -> [B, 768]
    emb = tok_emb[input_ids]
    mask = attention_mask[..., None].astype(jnp.float32)
    summed = jnp.sum(emb * mask, axis=1)
    denom = jnp.maximum(jnp.sum(mask, axis=1), 1.0)
    return summed / denom


def clip_engagement_regressor(image, input_ids, attention_mask, sentiment,
                              enc_params, head_kernel_params):
    image_embeds = get_image_features(image, enc_params["img_proj"])         # [B, 768]
    text_embeds = get_text_features(input_ids, attention_mask,
                                    enc_params["tok_emb"])                   # [B, 768]
    hk = head_kernel_params
    # No [B, 1537] concat is materialized: the three pieces feed the kernel
    # directly (image/text tiles in bf16; sentiment column stays f32).
    pred = engagement_head(image_embeds.astype(jnp.bfloat16),
                           text_embeds.astype(jnp.bfloat16),
                           sentiment,
                           hk["w1_img"], hk["w1_txt"], hk["w1_sent"],
                           hk["b1"], hk["w2_row"], hk["b2"])                 # [B, 1]
    return image_embeds, text_embeds, pred


if __name__ == "__main__":
    key = jax.random.PRNGKey(0)
    k_img, k_ids, k_sent, k_head, k_enc = jax.random.split(key, 5)

    B, S = 2, 8
    image = jax.random.normal(k_img, (B, 3, 16, 16), jnp.float32)   # NCHW
    input_ids = jax.random.randint(k_ids, (B, S), 0, 1000, jnp.int32)
    attention_mask = jnp.ones((B, S), jnp.int32)
    sentiment = jax.random.normal(k_sent, (B, 1), jnp.float32)

    head_params = make_head_params(k_head)
    enc_params = make_encoder_params(k_enc)
    head_kernel_params = prep_head_for_kernel(head_params)

    image_embeds, text_embeds, out = clip_engagement_regressor(
        image, input_ids, attention_mask, sentiment, enc_params,
        head_kernel_params)
    out = jax.block_until_ready(out)
    assert out.shape == (B, 1)

    # Numerical check against the pure-f32 reference with the unfolded
    # gamma/beta (bf16 embedding tiles + bf16 fc1 operands give a small,
    # bounded drift; all accumulation is in f32).
    concat = jnp.concatenate([image_embeds, text_embeds, sentiment], axis=1)
    ref = engagement_head_ref(concat, head_params["gamma"], head_params["beta"],
                              head_params["w1"], head_params["b1"],
                              head_params["w2"], head_params["b2"])
    np.testing.assert_allclose(np.asarray(out), np.asarray(ref),
                               rtol=2e-2, atol=2e-2)

    print("KERNEL_OK")
</pallas_src>

<mosaic_0001>
module attributes {stable_mosaic.version = 11 : i64} {
  func.func @engagement_head_kernel(%arg0: i32, %arg1: memref<8x768xbf16, #tpu.memory_space<vmem>>, %arg2: memref<8x768xbf16, #tpu.memory_space<vmem>>, %arg3: memref<8x1xf32, #tpu.memory_space<vmem>>, %arg4: memref<768x1024xbf16, #tpu.memory_space<vmem>>, %arg5: memref<768x1024xbf16, #tpu.memory_space<vmem>>, %arg6: memref<1x1024xf32, #tpu.memory_space<vmem>>, %arg7: memref<1x1024xf32, #tpu.memory_space<vmem>>, %arg8: memref<1x1024xf32, #tpu.memory_space<vmem>>, %arg9: memref<1x1xf32, #tpu.memory_space<smem>>, %arg10: memref<8x1xf32, #tpu.memory_space<vmem>>) attributes {dimension_semantics = [#tpu.dimension_semantics<parallel>], iteration_bounds = array<i64: 1>, scalar_prefetch = 0 : i64, scratch_operands = 0 : i64, tpu.core_type = #tpu.core_type<tc>, window_params = [{transform_indices = @transform_0, window_bounds = array<i64: 8, 768>}, {transform_indices = @transform_1, window_bounds = array<i64: 8, 768>}, {transform_indices = @transform_2, window_bounds = array<i64: 8, 1>}, {pipeline_mode = #tpu.pipeline_mode<synchronous>, transform_indices = @transform_3, window_bounds = array<i64: 768, 1024>}, {pipeline_mode = #tpu.pipeline_mode<synchronous>, transform_indices = @transform_4, window_bounds = array<i64: 768, 1024>}, {pipeline_mode = #tpu.pipeline_mode<synchronous>, transform_indices = @transform_5, window_bounds = array<i64: 1, 1024>}, {pipeline_mode = #tpu.pipeline_mode<synchronous>, transform_indices = @transform_6, window_bounds = array<i64: 1, 1024>}, {pipeline_mode = #tpu.pipeline_mode<synchronous>, transform_indices = @transform_7, window_bounds = array<i64: 1, 1024>}, {transform_indices = @transform_8, window_bounds = array<i64: 1, 1>}, {transform_indices = @transform_9, window_bounds = array<i64: 8, 1>}]} {
    %c0 = arith.constant 0 : index
    %c0_0 = arith.constant 0 : index
    %0 = vector.load %arg1[%c0, %c0_0] : memref<8x768xbf16, #tpu.memory_space<vmem>>, vector<8x768xbf16>
    %1 = arith.extf %0 : vector<8x768xbf16> to vector<8x768xf32>
    %c0_1 = arith.constant 0 : index
    %c0_2 = arith.constant 0 : index
    %2 = vector.load %arg2[%c0_1, %c0_2] : memref<8x768xbf16, #tpu.memory_space<vmem>>, vector<8x768xbf16>
    %3 = arith.extf %2 : vector<8x768xbf16> to vector<8x768xf32>
    %c0_3 = arith.constant 0 : index
    %c0_4 = arith.constant 0 : index
    %4 = vector.load %arg3[%c0_3, %c0_4] : memref<8x1xf32, #tpu.memory_space<vmem>>, vector<8x1xf32>
    %cst = arith.constant dense<0.000000e+00> : vector<8xf32>
    %5 = vector.multi_reduction <add>, %1, %cst [1] : vector<8x768xf32> to vector<8xf32>
    %6 = vector.shape_cast %5 : vector<8xf32> to vector<8x1xf32>
    %cst_5 = arith.constant dense<0.000000e+00> : vector<8xf32>
    %7 = vector.multi_reduction <add>, %3, %cst_5 [1] : vector<8x768xf32> to vector<8xf32>
    %8 = vector.shape_cast %7 : vector<8xf32> to vector<8x1xf32>
    %9 = arith.addf %6, %8 : vector<8x1xf32>
    %10 = arith.addf %9, %4 : vector<8x1xf32>
    %cst_6 = arith.constant 6.50618108E-4 : f32
    %11 = vector.broadcast %cst_6 : f32 to vector<8x1xf32>
    %12 = arith.mulf %10, %11 : vector<8x1xf32>
    %13 = vector.broadcast %12 : vector<8x1xf32> to vector<8x768xf32>
    %14 = arith.subf %1, %13 : vector<8x768xf32>
    %15 = vector.broadcast %12 : vector<8x1xf32> to vector<8x768xf32>
    %16 = arith.subf %3, %15 : vector<8x768xf32>
    %17 = arith.subf %4, %12 : vector<8x1xf32>
    %18 = arith.mulf %14, %14 : vector<8x768xf32>
    %cst_7 = arith.constant dense<0.000000e+00> : vector<8xf32>
    %19 = vector.multi_reduction <add>, %18, %cst_7 [1] : vector<8x768xf32> to vector<8xf32>
    %20 = vector.shape_cast %19 : vector<8xf32> to vector<8x1xf32>
    %21 = arith.mulf %16, %16 : vector<8x768xf32>
    %cst_8 = arith.constant dense<0.000000e+00> : vector<8xf32>
    %22 = vector.multi_reduction <add>, %21, %cst_8 [1] : vector<8x768xf32> to vector<8xf32>
    %23 = vector.shape_cast %22 : vector<8xf32> to vector<8x1xf32>
    %24 = arith.addf %20, %23 : vector<8x1xf32>
    %25 = arith.mulf %17, %17 : vector<8x1xf32>
    %26 = arith.addf %24, %25 : vector<8x1xf32>
    %cst_9 = arith.constant 6.50618108E-4 : f32
    %27 = vector.broadcast %cst_9 : f32 to vector<8x1xf32>
    %28 = arith.mulf %26, %27 : vector<8x1xf32>
    %cst_10 = arith.constant 9.99999974E-6 : f32
    %29 = vector.broadcast %cst_10 : f32 to vector<8x1xf32>
    %30 = arith.addf %28, %29 : vector<8x1xf32>
    %31 = math.rsqrt %30 : vector<8x1xf32>
    %32 = vector.broadcast %31 : vector<8x1xf32> to vector<8x768xf32>
    %33 = arith.mulf %14, %32 : vector<8x768xf32>
    %34 = arith.truncf %33 : vector<8x768xf32> to vector<8x768xbf16>
    %35 = vector.broadcast %31 : vector<8x1xf32> to vector<8x768xf32>
    %36 = arith.mulf %16, %35 : vector<8x768xf32>
    %37 = arith.truncf %36 : vector<8x768xf32> to vector<8x768xbf16>
    %c0_11 = arith.constant 0 : index
    %c0_12 = arith.constant 0 : index
    %38 = vector.load %arg4[%c0_11, %c0_12] : memref<768x1024xbf16, #tpu.memory_space<vmem>>, vector<768x1024xbf16>
    %cst_13 = arith.constant dense<0.000000e+00> : vector<8x1024xf32>
    %39 = tpu.matmul %34, %38, %cst_13 {dimension_numbers = #tpu.dot_dimension_numbers<[1], [0], [0], [1], [0, 0, 1, 1], [], []>} : vector<8x768xbf16>, vector<768x1024xbf16>, vector<8x1024xf32> -> vector<8x1024xf32>
    %c0_14 = arith.constant 0 : index
    %c0_15 = arith.constant 0 : index
    %40 = vector.load %arg5[%c0_14, %c0_15] : memref<768x1024xbf16, #tpu.memory_space<vmem>>, vector<768x1024xbf16>
    %cst_16 = arith.constant dense<0.000000e+00> : vector<8x1024xf32>
    %41 = tpu.matmul %37, %40, %cst_16 {dimension_numbers = #tpu.dot_dimension_numbers<[1], [0], [0], [1], [0, 0, 1, 1], [], []>} : vector<8x768xbf16>, vector<768x1024xbf16>, vector<8x1024xf32> -> vector<8x1024xf32>
    %42 = arith.addf %39, %41 : vector<8x1024xf32>
    %43 = arith.mulf %17, %31 : vector<8x1xf32>
    %c0_17 = arith.constant 0 : index
    %c0_18 = arith.constant 0 : index
    %44 = vector.load %arg6[%c0_17, %c0_18] : memref<1x1024xf32, #tpu.memory_space<vmem>>, vector<1x1024xf32>
    %45 = vector.broadcast %43 : vector<8x1xf32> to vector<8x1024xf32>
    %46 = vector.broadcast %44 : vector<1x1024xf32> to vector<8x1024xf32>
    %47 = arith.mulf %45, %46 : vector<8x1024xf32>
    %48 = arith.addf %42, %47 : vector<8x1024xf32>
    %c0_19 = arith.constant 0 : index
    %c0_20 = arith.constant 0 : index
    %49 = vector.load %arg7[%c0_19, %c0_20] : memref<1x1024xf32, #tpu.memory_space<vmem>>, vector<1x1024xf32>
    %50 = vector.broadcast %49 : vector<1x1024xf32> to vector<8x1024xf32>
    %51 = arith.addf %48, %50 : vector<8x1024xf32>
    %cst_21 = arith.constant 0.000000e+00 : f32
    %52 = vector.broadcast %cst_21 : f32 to vector<8x1024xf32>
    %53 = arith.maximumf %51, %52 : vector<8x1024xf32>
    %c0_22 = arith.constant 0 : index
    %c0_23 = arith.constant 0 : index
    %54 = vector.load %arg8[%c0_22, %c0_23] : memref<1x1024xf32, #tpu.memory_space<vmem>>, vector<1x1024xf32>
    %55 = vector.broadcast %54 : vector<1x1024xf32> to vector<8x1024xf32>
    %56 = arith.mulf %53, %55 : vector<8x1024xf32>
    %cst_24 = arith.constant dense<0.000000e+00> : vector<8xf32>
    %57 = vector.multi_reduction <add>, %56, %cst_24 [1] : vector<8x1024xf32> to vector<8xf32>
    %58 = vector.shape_cast %57 : vector<8xf32> to vector<8x1xf32>
    %c0_25 = arith.constant 0 : index
    %c0_26 = arith.constant 0 : index
    %59 = memref.load %arg9[%c0_25, %c0_26] : memref<1x1xf32, #tpu.memory_space<smem>>
    %60 = vector.broadcast %59 : f32 to vector<8x1xf32>
    %61 = arith.addf %58, %60 : vector<8x1xf32>
    %c0_27 = arith.constant 0 : index
    %c0_28 = arith.constant 0 : index
    %62 = vector.load %arg10[%c0_27, %c0_28] : memref<8x1xf32, #tpu.memory_space<vmem>>, vector<8x1xf32>
    tpu.vector_store %arg10[%c0_27, %c0_28], %61 {strides = array<i32>} : memref<8x1xf32, #tpu.memory_space<vmem>>, vector<8x1xf32>,
    return
  }
  func.func @transform_0(%arg0: i32) -> (i32, i32) {
    %c0_i32 = arith.constant 0 : i32
    %c0_i32_0 = arith.constant 0 : i32
    return %arg0, %c0_i32 : i32, i32
  }
  func.func @transform_1(%arg0: i32) -> (i32, i32) {
    %c0_i32 = arith.constant 0 : i32
    %c0_i32_0 = arith.constant 0 : i32
    return %arg0, %c0_i32 : i32, i32
  }
  func.func @transform_2(%arg0: i32) -> (i32, i32) {
    %c0_i32 = arith.constant 0 : i32
    %c0_i32_0 = arith.constant 0 : i32
    return %arg0, %c0_i32 : i32, i32
  }
  func.func @transform_3(%arg0: i32) -> (i32, i32) {
    %c0_i32 = arith.constant 0 : i32
    %c0_i32_0 = arith.constant 0 : i32
    %c0_i32_1 = arith.constant 0 : i32
    return %c0_i32, %c0_i32_0 : i32, i32
  }
  func.func @transform_4(%arg0: i32) -> (i32, i32) {
    %c0_i32 = arith.constant 0 : i32
    %c0_i32_0 = arith.constant 0 : i32
    %c0_i32_1 = arith.constant 0 : i32
    return %c0_i32, %c0_i32_0 : i32, i32
  }
  func.func @transform_5(%arg0: i32) -> (i32, i32) {
    %c0_i32 = arith.constant 0 : i32
    %c0_i32_0 = arith.constant 0 : i32
    %c0_i32_1 = arith.constant 0 : i32
    return %c0_i32, %c0_i32_0 : i32, i32
  }
  func.func @transform_6(%arg0: i32) -> (i32, i32) {
    %c0_i32 = arith.constant 0 : i32
    %c0_i32_0 = arith.constant 0 : i32
    %c0_i32_1 = arith.constant 0 : i32
    return %c0_i32, %c0_i32_0 : i32, i32
  }
  func.func @transform_7(%arg0: i32) -> (i32, i32) {
    %c0_i32 = arith.constant 0 : i32
    %c0_i32_0 = arith.constant 0 : i32
    %c0_i32_1 = arith.constant 0 : i32
    return %c0_i32, %c0_i32_0 : i32, i32
  }
  func.func @transform_8(%arg0: i32) -> (i32, i32) {
    %c0_i32 = arith.constant 0 : i32
    %c0_i32_0 = arith.constant 0 : i32
    %c0_i32_1 = arith.constant 0 : i32
    return %c0_i32, %c0_i32_0 : i32, i32
  }
  func.func @transform_9(%arg0: i32) -> (i32, i32) {
    %c0_i32 = arith.constant 0 : i32
    %c0_i32_0 = arith.constant 0 : i32
    return %arg0, %c0_i32 : i32, i32
  }
}

</mosaic_0001>

<llo_original>
// kernel: tpu_custom_call.1
$region0: #{tpu_custom_call.1}
  #allocation0 [shape = 'u32[]', space=smem, size = 0x4, offset = 0x4, fixed_abs, tag = 'smem constant byte address 0x4 - core index']
  #allocation1 [shape = 'u32[72,128]{1,0:T(1,128)}', space=vmem, size = 0x9000, scoped, tag = 'internal scratch']
  #allocation2 [shape = 'f32[1,1]{1,0:T(1,128)S(6)}', space=smem, size = 0x200, scoped, tag = 'scoped memory for tpu_custom_call.1']
  %s0 = inlined_call_operand.hbm [shape: bf16[2,768], index: 0, kind: input, shape index: {}]
  %s1 = inlined_call_operand.hbm [shape: bf16[2,768], index: 1, kind: input, shape index: {}]
  %s2 = inlined_call_operand.vmem [shape: f32[2,1], index: 2, kind: input, shape index: {}]
  %s3 = inlined_call_operand.hbm [shape: bf16[768,1024], index: 3, kind: input, shape index: {}]
  %s4 = inlined_call_operand.hbm [shape: bf16[768,1024], index: 4, kind: input, shape index: {}]
  %s5 = inlined_call_operand.hbm [shape: f32[1,1024], index: 5, kind: input, shape index: {}]
  %s6 = inlined_call_operand.hbm [shape: f32[1,1024], index: 6, kind: input, shape index: {}]
  %s7 = inlined_call_operand.hbm [shape: f32[1,1024], index: 7, kind: input, shape index: {}]
  %s8 = inlined_call_operand.<no memory space> [shape: f32[1,1], index: 8, kind: input, shape index: {}]
  %s9 = inlined_call_operand.vmem [shape: f32[2,1], index: 9, kind: output, shape index: {}]
  %s10 = sld [smem:[#allocation0]]
  $region104: #{tpu_custom_call.1} parent=0
    _
  %s12 = ssub.s32 1, %s10
  %s13 = scalar_select 0, %s12, %s10
  %14 = sst [smem:[#allocation2]] %s8
  $region1: #{tpu_custom_call.1} parent=0
    #allocation3 [shape = 'u8[12288]{0}', space=vmem, size = 0x3000, scoped, tag = 'input window, operand 0, single buffered']
    #allocation4 [shape = 's32[1]{0}', space=sflag, size = 0x4, scoped, tag = 'scoped memory for tpu_custom_call.1']
    #allocation5 [shape = 'u8[12288]{0}', space=vmem, size = 0x3000, scoped, tag = 'input window, operand 1, single buffered']
    #allocation6 [shape = 's32[1]{0}', space=sflag, size = 0x4, scoped, tag = 'scoped memory for tpu_custom_call.1']
    #allocation7 [shape = 'u8[1572864]{0}', space=vmem, size = 0x180000, scoped, tag = 'input window, operand 3, single buffered']
    #allocation8 [shape = 'u8[1572864]{0}', space=vmem, size = 0x180000, scoped, tag = 'input window, operand 4, single buffered']
    #allocation9 [shape = 's32[1]{0}', space=sflag, size = 0x4, scoped, tag = 'scoped memory for tpu_custom_call.1']
    #allocation10 [shape = 'u8[4096]{0}', space=vmem, size = 0x1000, scoped, tag = 'input window, operand 5, single buffered']
    #allocation11 [shape = 'u8[4096]{0}', space=vmem, size = 0x1000, scoped, tag = 'input window, operand 6, single buffered']
    #allocation12 [shape = 's32[1]{0}', space=sflag, size = 0x4, scoped, tag = 'scoped memory for tpu_custom_call.1']
    #allocation13 [shape = 'u8[4096]{0}', space=vmem, size = 0x1000, scoped, tag = 'input window, operand 7, single buffered']
    #allocation14 [shape = 'u8[4096]{0}', space=vmem, size = 0x1000, scoped, tag = 'output window, operand 0, single buffered']
    %15 = vsyncpa [#allocation4], 0
    %16 = vsyncpa [#allocation6], 0
    %17 = vsyncpa [#allocation9], 0
    %18 = vsyncpa [#allocation12], 0
    // Predicated region
    $region2: #{tpu_custom_call.1} parent=1 // pred_check
      _
    $region3: #{tpu_custom_call.1} parent=1 // pred_check_branch
      %20 = sbr.rel (0) target = $region5
    $region4: #{tpu_custom_call.1} parent=1 // pred_region
      %22 = vsyncadd [#allocation4], 288
      %s23 = sshll.u32 %s0, 4
      %s24 = int_to_ptr.hbm [resolvable:$true] %s23
      %s25 = sshll.u32 [#allocation3], 4
      %s26 = int_to_ptr.vmem [resolvable:$true] %s25
      %31 = dma.hbm_to_vmem [thread:$0]  %s24, 96, %s26, [#allocation4], 96, 96, 6
    $region5: #{tpu_custom_call.1} parent=1 // pred_fallthru
      _
    // Predicated region
    $region6: #{tpu_custom_call.1} parent=1 // pred_check
      _
    $region7: #{tpu_custom_call.1} parent=1 // pred_check_branch
      %33 = sbr.rel (0) target = $region9
    $region8: #{tpu_custom_call.1} parent=1 // pred_region
      %35 = vsyncadd [#allocation6], 288
      %s36 = sshll.u32 %s1, 4
      %s37 = int_to_ptr.hbm [resolvable:$true] %s36
      %s38 = sshll.u32 [#allocation5], 4
      %s39 = int_to_ptr.vmem [resolvable:$true] %s38
      %44 = dma.hbm_to_vmem [thread:$0]  %s37, 96, %s39, [#allocation6], 96, 96, 6
    $region9: #{tpu_custom_call.1} parent=1 // pred_fallthru
      _
    // Predicated region
    $region10: #{tpu_custom_call.1} parent=1 // pred_check
      _
    $region11: #{tpu_custom_call.1} parent=1 // pred_check_branch
      %46 = sbr.rel (0) target = $region13
    $region12: #{tpu_custom_call.1} parent=1 // pred_region
      _
    $region13: #{tpu_custom_call.1} parent=1 // pred_fallthru
      _
    // Predicated region
    $region14: #{tpu_custom_call.1} parent=1 // pred_check
      _
    $region15: #{tpu_custom_call.1} parent=1 // pred_check_branch
      %48 = sbr.rel (0) target = $region17
    $region16: #{tpu_custom_call.1} parent=1 // pred_region
      %50 = vsyncadd [#allocation6], 0
      %s51 = sshll.u32 %s3, 4
      %s52 = int_to_ptr.hbm [resolvable:$true] %s51
      %s53 = sshll.u32 [#allocation7], 4
      %s54 = int_to_ptr.vmem [resolvable:$true] %s53
      %59 = dma.hbm_to_vmem [thread:$0]  %s52, 49152, %s54, [#allocation6], 512, 512, 32
    $region17: #{tpu_custom_call.1} parent=1 // pred_fallthru
      _
    // Predicated region
    $region18: #{tpu_custom_call.1} parent=1 // pred_check
      _
    $region19: #{tpu_custom_call.1} parent=1 // pred_check_branch
      %61 = sbr.rel (0) target = $region21
    $region20: #{tpu_custom_call.1} parent=1 // pred_region
      %63 = vsyncadd [#allocation9], 0
      %s64 = sshll.u32 %s4, 4
      %s65 = int_to_ptr.hbm [resolvable:$true] %s64
      %s66 = sshll.u32 [#allocation8], 4
      %s67 = int_to_ptr.vmem [resolvable:$true] %s66
      %72 = dma.hbm_to_vmem [thread:$0]  %s65, 49152, %s67, [#allocation9], 512, 512, 32
    $region21: #{tpu_custom_call.1} parent=1 // pred_fallthru
      _
    // Predicated region
    $region22: #{tpu_custom_call.1} parent=1 // pred_check
      _
    $region23: #{tpu_custom_call.1} parent=1 // pred_check_branch
      %74 = sbr.rel (0) target = $region25
    $region24: #{tpu_custom_call.1} parent=1 // pred_region
      %76 = vsyncadd [#allocation9], 0
      %s78 = sshll.u32 %s5, 4
      %s79 = int_to_ptr.hbm [resolvable:$true] %s78
      %s80 = sshll.u32 [#allocation10], 4
      %s81 = int_to_ptr.vmem [resolvable:$true] %s80
      %83 = dma.hbm_to_vmem [thread:$0]  %s79, 128, %s81, [#allocation9]
    $region25: #{tpu_custom_call.1} parent=1 // pred_fallthru
      _
    // Predicated region
    $region26: #{tpu_custom_call.1} parent=1 // pred_check
      _
    $region27: #{tpu_custom_call.1} parent=1 // pred_check_branch
      %85 = sbr.rel (0) target = $region29
    $region28: #{tpu_custom_call.1} parent=1 // pred_region
      %87 = vsyncadd [#allocation12], 0
      %s89 = sshll.u32 %s6, 4
      %s90 = int_to_ptr.hbm [resolvable:$true] %s89
      %s91 = sshll.u32 [#allocation11], 4
      %s92 = int_to_ptr.vmem [resolvable:$true] %s91
      %94 = dma.hbm_to_vmem [thread:$0]  %s90, 128, %s92, [#allocation12]
    $region29: #{tpu_custom_call.1} parent=1 // pred_fallthru
      _
    // Predicated region
    $region30: #{tpu_custom_call.1} parent=1 // pred_check
      _
    $region31: #{tpu_custom_call.1} parent=1 // pred_check_branch
      %96 = sbr.rel (0) target = $region33
    $region32: #{tpu_custom_call.1} parent=1 // pred_region
      %98 = vsyncadd [#allocation12], 0
      %s100 = sshll.u32 %s7, 4
      %s101 = int_to_ptr.hbm [resolvable:$true] %s100
      %s102 = sshll.u32 [#allocation13], 4
      %s103 = int_to_ptr.vmem [resolvable:$true] %s102
      %105 = dma.hbm_to_vmem [thread:$0]  %s101, 128, %s103, [#allocation12]
    $region33: #{tpu_custom_call.1} parent=1 // pred_fallthru
      _
    // Predicated region
    $region34: #{tpu_custom_call.1} parent=1 // pred_check
      _
    $region35: #{tpu_custom_call.1} parent=1 // pred_check_branch
      %107 = sbr.rel (0) target = $region37
    $region36: #{tpu_custom_call.1} parent=1 // pred_region
      _
    $region37: #{tpu_custom_call.1} parent=1 // pred_fallthru
      _
    // Predicated region
    $region38: #{tpu_custom_call.1} parent=1 // pred_check
      _
    $region39: #{tpu_custom_call.1} parent=1 // pred_check_branch
      %109 = sbr.rel (0) target = $region41
    $region40: #{tpu_custom_call.1} parent=1 // pred_region
      %111 = dma.done [#allocation4], 384
    $region41: #{tpu_custom_call.1} parent=1 // pred_fallthru
      _
    // Predicated region
    $region42: #{tpu_custom_call.1} parent=1 // pred_check
      _
    $region43: #{tpu_custom_call.1} parent=1 // pred_check_branch
      %113 = sbr.rel (0) target = $region45
    $region44: #{tpu_custom_call.1} parent=1 // pred_region
      %115 = dma.done [#allocation6], 384
    $region45: #{tpu_custom_call.1} parent=1 // pred_fallthru
      _
    // Predicated region
    $region46: #{tpu_custom_call.1} parent=1 // pred_check
      _
    $region47: #{tpu_custom_call.1} parent=1 // pred_check_branch
      %117 = sbr.rel (0) target = $region49
    $region48: #{tpu_custom_call.1} parent=1 // pred_region
      %119 = dma.done [#allocation6], 49152
    $region49: #{tpu_custom_call.1} parent=1 // pred_fallthru
      _
    // Predicated region
    $region50: #{tpu_custom_call.1} parent=1 // pred_check
      _
    $region51: #{tpu_custom_call.1} parent=1 // pred_check_branch
      %121 = sbr.rel (0) target = $region53
    $region52: #{tpu_custom_call.1} parent=1 // pred_region
      %123 = dma.done [#allocation9], 49152
    $region53: #{tpu_custom_call.1} parent=1 // pred_fallthru
      _
    // Predicated region
    $region54: #{tpu_custom_call.1} parent=1 // pred_check
      _
    $region55: #{tpu_custom_call.1} parent=1 // pred_check_branch
      %125 = sbr.rel (0) target = $region57
    $region56: #{tpu_custom_call.1} parent=1 // pred_region
      %127 = dma.done [#allocation9], 128
    $region57: #{tpu_custom_call.1} parent=1 // pred_fallthru
      _
    // Predicated region
    $region58: #{tpu_custom_call.1} parent=1 // pred_check
      _
    $region59: #{tpu_custom_call.1} parent=1 // pred_check_branch
      %129 = sbr.rel (0) target = $region61
    $region60: #{tpu_custom_call.1} parent=1 // pred_region
      %131 = dma.done [#allocation12], 128
    $region61: #{tpu_custom_call.1} parent=1 // pred_fallthru
      _
    // Predicated region
    $region62: #{tpu_custom_call.1} parent=1 // pred_check
      _
    $region63: #{tpu_custom_call.1} parent=1 // pred_check_branch
      %133 = sbr.rel (0) target = $region65
    $region64: #{tpu_custom_call.1} parent=1 // pred_region
      %135 = dma.done [#allocation12], 128
    $region65: #{tpu_custom_call.1} parent=1 // pred_fallthru
      _
    %v136 = vld [vmem:[#allocation3] sm:$0x3f]
    %v137 = vld [vmem:[#allocation3 + $0x6] sm:$0x3f]
    %v138 = vld [vmem:[#allocation3 + $0xc] sm:$0x3f]
    %v139 = vld [vmem:[#allocation3 + $0x12] sm:$0x3f]
    %v140 = vunpack.c.l.bf16 %v136
    %v141 = vunpack.c.h.bf16 %v136
    %v142 = vunpack.c.l.bf16 %v137
    %v143 = vunpack.c.h.bf16 %v137
    %v144 = vunpack.c.l.bf16 %v138
    %v145 = vunpack.c.h.bf16 %v138
    %v146 = vunpack.c.l.bf16 %v139
    %v147 = vunpack.c.h.bf16 %v139
    %v148 = vld [vmem:[#allocation5] sm:$0x3f]
    %v149 = vld [vmem:[#allocation5 + $0x6] sm:$0x3f]
    %v150 = vld [vmem:[#allocation5 + $0xc] sm:$0x3f]
    %v151 = vld [vmem:[#allocation5 + $0x12] sm:$0x3f]
    %v152 = vunpack.c.l.bf16 %v148
    %v153 = vunpack.c.h.bf16 %v148
    %v154 = vunpack.c.l.bf16 %v149
    %v155 = vunpack.c.h.bf16 %v149
    %v156 = vunpack.c.l.bf16 %v150
    %v157 = vunpack.c.h.bf16 %v150
    %v158 = vunpack.c.l.bf16 %v151
    %v159 = vunpack.c.h.bf16 %v151
    %v160 = vld [vmem:[%s2] sm:$0xff]
    %169 = vst [vmem:[#allocation1] ss:$4 sm:$0xff] %v140
    %s170 = scalar_lea.vmem [#allocation1], 1
    %171 = vst [vmem:[%s170] ss:$4 sm:$0xff] %v142
    %s172 = scalar_lea.vmem [#allocation1], 2
    %173 = vst [vmem:[%s172] ss:$4 sm:$0xff] %v144
    %s174 = scalar_lea.vmem [#allocation1], 3
    %175 = vst [vmem:[%s174] ss:$4 sm:$0xff] %v146
    %s176 = scalar_lea.vmem [#allocation1], 32
    %177 = vst [vmem:[%s176] ss:$4 sm:$0xff] %v141
    %s178 = scalar_lea.vmem [#allocation1], 33
    %179 = vst [vmem:[%s178] ss:$4 sm:$0xff] %v143
    %s180 = scalar_lea.vmem [#allocation1], 34
    %181 = vst [vmem:[%s180] ss:$4 sm:$0xff] %v145
    %s182 = scalar_lea.vmem [#allocation1], 35
    %183 = vst [vmem:[%s182] ss:$4 sm:$0xff] %v147
    %v184 = vld.sshfl [vmem:[#allocation1] sm:$0xff pattern:$0x73625140]
    %v185 = vld.sshfl [vmem:[#allocation1 + $0x8] sm:$0xff pattern:$0x73625140]
    %v186 = vld.sshfl [vmem:[#allocation1 + $0x10] sm:$0xff pattern:$0x73625140]
    %v187 = vld.sshfl [vmem:[#allocation1 + $0x18] sm:$0xff pattern:$0x73625140]
    %v188 = vld.sshfl [vmem:[#allocation1 + $0x20] sm:$0xff pattern:$0x73625140]
    %v189 = vld.sshfl [vmem:[#allocation1 + $0x28] sm:$0xff pattern:$0x73625140]
    %v196 = vadd.f32 %v184, %v185
    %v197 = vadd.f32 %v196, %v186
    %v198 = vadd.f32 %v197, %v187
    %v199 = vadd.f32 %v198, %v188
    %v200 = vadd.f32 %v199, %v189
    %201 = vadd.xlane.f32.xlu0 %v200
    %v202 = vpop.xlane.xlu0 %201
    %211 = vst [vmem:[#allocation1] ss:$4 sm:$0xff] %v152
    %s212 = scalar_lea.vmem [#allocation1], 1
    %213 = vst [vmem:[%s212] ss:$4 sm:$0xff] %v154
    %s214 = scalar_lea.vmem [#allocation1], 2
    %215 = vst [vmem:[%s214] ss:$4 sm:$0xff] %v156
    %s216 = scalar_lea.vmem [#allocation1], 3
    %217 = vst [vmem:[%s216] ss:$4 sm:$0xff] %v158
    %s218 = scalar_lea.vmem [#allocation1], 32
    %219 = vst [vmem:[%s218] ss:$4 sm:$0xff] %v153
    %s220 = scalar_lea.vmem [#allocation1], 33
    %221 = vst [vmem:[%s220] ss:$4 sm:$0xff] %v155
    %s222 = scalar_lea.vmem [#allocation1], 34
    %223 = vst [vmem:[%s222] ss:$4 sm:$0xff] %v157
    %s224 = scalar_lea.vmem [#allocation1], 35
    %225 = vst [vmem:[%s224] ss:$4 sm:$0xff] %v159
    %v226 = vld.sshfl [vmem:[#allocation1] sm:$0xff pattern:$0x73625140]
    %v227 = vld.sshfl [vmem:[#allocation1 + $0x8] sm:$0xff pattern:$0x73625140]
    %v228 = vld.sshfl [vmem:[#allocation1 + $0x10] sm:$0xff pattern:$0x73625140]
    %v229 = vld.sshfl [vmem:[#allocation1 + $0x18] sm:$0xff pattern:$0x73625140]
    %v230 = vld.sshfl [vmem:[#allocation1 + $0x20] sm:$0xff pattern:$0x73625140]
    %v231 = vld.sshfl [vmem:[#allocation1 + $0x28] sm:$0xff pattern:$0x73625140]
    %v238 = vadd.f32 %v226, %v227
    %v239 = vadd.f32 %v238, %v228
    %v240 = vadd.f32 %v239, %v229
    %v241 = vadd.f32 %v240, %v230
    %v242 = vadd.f32 %v241, %v231
    %243 = vadd.xlane.f32.xlu0 %v242
    %v244 = vpop.xlane.xlu0 %243
    %v245 = vadd.f32 %v202, %v244
    %v246 = vadd.f32 %v245, %v160
    %v247 = vmul.f32 %v246, 0.0006506181
    %249 = vset.pattern.permute.xlu0 0
    %250 = vperm.xlu0 %249, %v247
    %v251 = vpop.permute.xlu0 %250
    %v253 = vunpack.c.l.s4 269488144
    %v254 = vunpack.c.0.s8 %v253
    %v255 = vperm.slane %v251, %v254
    %v257 = vunpack.c.l.s4 842150450
    %v258 = vunpack.c.0.s8 %v257
    %v259 = vperm.slane %v251, %v258
    %v261 = vunpack.c.l.s4 1414812756
    %v262 = vunpack.c.0.s8 %v261
    %v263 = vperm.slane %v251, %v262
    %v265 = vunpack.c.l.s4 1987475062
    %v266 = vunpack.c.0.s8 %v265
    %v267 = vperm.slane %v251, %v266
    %v272 = vsub.f32 %v140, %v255
    %v273 = vsub.f32 %v141, %v255
    %v274 = vsub.f32 %v142, %v259
    %v275 = vsub.f32 %v143, %v259
    %v276 = vsub.f32 %v144, %v263
    %v277 = vsub.f32 %v145, %v263
    %v278 = vsub.f32 %v146, %v267
    %v279 = vsub.f32 %v147, %v267
    %v280 = vsub.f32 %v152, %v255
    %v281 = vsub.f32 %v153, %v255
    %v282 = vsub.f32 %v154, %v259
    %v283 = vsub.f32 %v155, %v259
    %v284 = vsub.f32 %v156, %v263
    %v285 = vsub.f32 %v157, %v263
    %v286 = vsub.f32 %v158, %v267
    %v287 = vsub.f32 %v159, %v267
    %v288 = vsub.f32 %v160, %v247
    %v289 = vmul.f32 %v272, %v272
    %v290 = vmul.f32 %v273, %v273
    %v291 = vmul.f32 %v274, %v274
    %v292 = vmul.f32 %v275, %v275
    %v293 = vmul.f32 %v276, %v276
    %v294 = vmul.f32 %v277, %v277
    %v295 = vmul.f32 %v278, %v278
    %v296 = vmul.f32 %v279, %v279
    %305 = vst [vmem:[#allocation1] ss:$4 sm:$0xff] %v289
    %s306 = scalar_lea.vmem [#allocation1], 1
    %307 = vst [vmem:[%s306] ss:$4 sm:$0xff] %v291
    %s308 = scalar_lea.vmem [#allocation1], 2
    %309 = vst [vmem:[%s308] ss:$4 sm:$0xff] %v293
    %s310 = scalar_lea.vmem [#allocation1], 3
    %311 = vst [vmem:[%s310] ss:$4 sm:$0xff] %v295
    %s312 = scalar_lea.vmem [#allocation1], 32
    %313 = vst [vmem:[%s312] ss:$4 sm:$0xff] %v290
    %s314 = scalar_lea.vmem [#allocation1], 33
    %315 = vst [vmem:[%s314] ss:$4 sm:$0xff] %v292
    %s316 = scalar_lea.vmem [#allocation1], 34
    %317 = vst [vmem:[%s316] ss:$4 sm:$0xff] %v294
    %s318 = scalar_lea.vmem [#allocation1], 35
    %319 = vst [vmem:[%s318] ss:$4 sm:$0xff] %v296
    %v320 = vld.sshfl [vmem:[#allocation1] sm:$0xff pattern:$0x73625140]
    %v321 = vld.sshfl [vmem:[#allocation1 + $0x8] sm:$0xff pattern:$0x73625140]
    %v322 = vld.sshfl [vmem:[#allocation1 + $0x10] sm:$0xff pattern:$0x73625140]
    %v323 = vld.sshfl [vmem:[#allocation1 + $0x18] sm:$0xff pattern:$0x73625140]
    %v324 = vld.sshfl [vmem:[#allocation1 + $0x20] sm:$0xff pattern:$0x73625140]
    %v325 = vld.sshfl [vmem:[#allocation1 + $0x28] sm:$0xff pattern:$0x73625140]
    %v332 = vadd.f32 %v320, %v321
    %v333 = vadd.f32 %v332, %v322
    %v334 = vadd.f32 %v333, %v323
    %v335 = vadd.f32 %v334, %v324
    %v336 = vadd.f32 %v335, %v325
    %337 = vadd.xlane.f32.xlu0 %v336
    %v338 = vpop.xlane.xlu0 %337
    %v339 = vmul.f32 %v280, %v280
    %v340 = vmul.f32 %v281, %v281
    %v341 = vmul.f32 %v282, %v282
    %v342 = vmul.f32 %v283, %v283
    %v343 = vmul.f32 %v284, %v284
    %v344 = vmul.f32 %v285, %v285
    %v345 = vmul.f32 %v286, %v286
    %v346 = vmul.f32 %v287, %v287
    %355 = vst [vmem:[#allocation1] ss:$4 sm:$0xff] %v339
    %s356 = scalar_lea.vmem [#allocation1], 1
    %357 = vst [vmem:[%s356] ss:$4 sm:$0xff] %v341
    %s358 = scalar_lea.vmem [#allocation1], 2
    %359 = vst [vmem:[%s358] ss:$4 sm:$0xff] %v343
    %s360 = scalar_lea.vmem [#allocation1], 3
    %361 = vst [vmem:[%s360] ss:$4 sm:$0xff] %v345
    %s362 = scalar_lea.vmem [#allocation1], 32
    %363 = vst [vmem:[%s362] ss:$4 sm:$0xff] %v340
    %s364 = scalar_lea.vmem [#allocation1], 33
    %365 = vst [vmem:[%s364] ss:$4 sm:$0xff] %v342
    %s366 = scalar_lea.vmem [#allocation1], 34
    %367 = vst [vmem:[%s366] ss:$4 sm:$0xff] %v344
    %s368 = scalar_lea.vmem [#allocation1], 35
    %369 = vst [vmem:[%s368] ss:$4 sm:$0xff] %v346
    %v370 = vld.sshfl [vmem:[#allocation1] sm:$0xff pattern:$0x73625140]
    %v371 = vld.sshfl [vmem:[#allocation1 + $0x8] sm:$0xff pattern:$0x73625140]
    %v372 = vld.sshfl [vmem:[#allocation1 + $0x10] sm:$0xff pattern:$0x73625140]
    %v373 = vld.sshfl [vmem:[#allocation1 + $0x18] sm:$0xff pattern:$0x73625140]
    %v374 = vld.sshfl [vmem:[#allocation1 + $0x20] sm:$0xff pattern:$0x73625140]
    %v375 = vld.sshfl [vmem:[#allocation1 + $0x28] sm:$0xff pattern:$0x73625140]
    %v382 = vadd.f32 %v370, %v371
    %v383 = vadd.f32 %v382, %v372
    %v384 = vadd.f32 %v383, %v373
    %v385 = vadd.f32 %v384, %v374
    %v386 = vadd.f32 %v385, %v375
    %387 = vadd.xlane.f32.xlu0 %v386
    %v388 = vpop.xlane.xlu0 %387
    %v389 = vadd.f32 %v338, %v388
    %v390 = vmul.f32 %v288, %v288
    %v391 = vadd.f32 %v389, %v390
    %v392 = vmul.f32 %v391, 0.0006506181
    %v393 = vadd.f32 %v392, 1e-05
    %v394 = vrsqrt.pop %v393
    %v395 = vmul.f32 %v394, %v393
    %v396 = vmul.f32 %v395, %v394
    %v397 = vmul.f32 0.5, %v396
    %v398 = vsub.f32 1.5, %v397
    %v399 = vmul.f32 %v394, %v398
    %vm400 = vweird.f32 %v393
    %vm401 = vweird.f32 %v394
    %vm402 = vmor %vm400, %vm401
    %v403 = vsel %vm402, %v394, %v399
    %405 = vset.pattern.permute.xlu0 0
    %406 = vperm.xlu0 %405, %v403
    %v407 = vpop.permute.xlu0 %406
    %v409 = vunpack.c.l.s4 269488144
    %v410 = vunpack.c.0.s8 %v409
    %v411 = vperm.slane %v407, %v410
    %v413 = vunpack.c.l.s4 842150450
    %v414 = vunpack.c.0.s8 %v413
    %v415 = vperm.slane %v407, %v414
    %v417 = vunpack.c.l.s4 1414812756
    %v418 = vunpack.c.0.s8 %v417
    %v419 = vperm.slane %v407, %v418
    %v421 = vunpack.c.l.s4 1987475062
    %v422 = vunpack.c.0.s8 %v421
    %v423 = vperm.slane %v407, %v422
    %v428 = vmul.f32 %v272, %v411
    %v429 = vmul.f32 %v273, %v411
    %v430 = vmul.f32 %v274, %v415
    %v431 = vmul.f32 %v275, %v415
    %v432 = vmul.f32 %v276, %v419
    %v433 = vmul.f32 %v277, %v419
    %v434 = vmul.f32 %v278, %v423
    %v435 = vmul.f32 %v279, %v423
    %444 = vst [vmem:[#allocation1] ss:$4 sm:$0xff] %v428
    %s445 = scalar_lea.vmem [#allocation1], 1
    %446 = vst [vmem:[%s445] ss:$4 sm:$0xff] %v430
    %s447 = scalar_lea.vmem [#allocation1], 2
    %448 = vst [vmem:[%s447] ss:$4 sm:$0xff] %v432
    %s449 = scalar_lea.vmem [#allocation1], 3
    %450 = vst [vmem:[%s449] ss:$4 sm:$0xff] %v434
    %s451 = scalar_lea.vmem [#allocation1], 32
    %452 = vst [vmem:[%s451] ss:$4 sm:$0xff] %v429
    %s453 = scalar_lea.vmem [#allocation1], 33
    %454 = vst [vmem:[%s453] ss:$4 sm:$0xff] %v431
    %s455 = scalar_lea.vmem [#allocation1], 34
    %456 = vst [vmem:[%s455] ss:$4 sm:$0xff] %v433
    %s457 = scalar_lea.vmem [#allocation1], 35
    %458 = vst [vmem:[%s457] ss:$4 sm:$0xff] %v435
    %v459 = vld.sshfl [vmem:[#allocation1] sm:$0xff pattern:$0x73625140]
    %v460 = vld.sshfl [vmem:[#allocation1 + $0x8] sm:$0xff pattern:$0x73625140]
    %v461 = vld.sshfl [vmem:[#allocation1 + $0x10] sm:$0xff pattern:$0x73625140]
    %v462 = vld.sshfl [vmem:[#allocation1 + $0x18] sm:$0xff pattern:$0x73625140]
    %v463 = vld.sshfl [vmem:[#allocation1 + $0x20] sm:$0xff pattern:$0x73625140]
    %v464 = vld.sshfl [vmem:[#allocation1 + $0x28] sm:$0xff pattern:$0x73625140]
    %v471 = vpack.c.bf16 %v459, %v459
    %v472 = vpack.c.bf16 %v460, %v460
    %v473 = vpack.c.bf16 %v461, %v461
    %v474 = vpack.c.bf16 %v462, %v462
    %v475 = vpack.c.bf16 %v463, %v463
    %v476 = vpack.c.bf16 %v464, %v464
    %v477 = vmul.f32 %v280, %v411
    %v478 = vmul.f32 %v281, %v411
    %v479 = vmul.f32 %v282, %v415
    %v480 = vmul.f32 %v283, %v415
    %v481 = vmul.f32 %v284, %v419
    %v482 = vmul.f32 %v285, %v419
    %v483 = vmul.f32 %v286, %v423
    %v484 = vmul.f32 %v287, %v423
    %493 = vst [vmem:[#allocation1] ss:$4 sm:$0xff] %v477
    %s494 = scalar_lea.vmem [#allocation1], 1
    %495 = vst [vmem:[%s494] ss:$4 sm:$0xff] %v479
    %s496 = scalar_lea.vmem [#allocation1], 2
    %497 = vst [vmem:[%s496] ss:$4 sm:$0xff] %v481
    %s498 = scalar_lea.vmem [#allocation1], 3
    %499 = vst [vmem:[%s498] ss:$4 sm:$0xff] %v483
    %s500 = scalar_lea.vmem [#allocation1], 32
    %501 = vst [vmem:[%s500] ss:$4 sm:$0xff] %v478
    %s502 = scalar_lea.vmem [#allocation1], 33
    %503 = vst [vmem:[%s502] ss:$4 sm:$0xff] %v480
    %s504 = scalar_lea.vmem [#allocation1], 34
    %505 = vst [vmem:[%s504] ss:$4 sm:$0xff] %v482
    %s506 = scalar_lea.vmem [#allocation1], 35
    %507 = vst [vmem:[%s506] ss:$4 sm:$0xff] %v484
    %v508 = vld.sshfl [vmem:[#allocation1] sm:$0xff pattern:$0x73625140]
    %v509 = vld.sshfl [vmem:[#allocation1 + $0x8] sm:$0xff pattern:$0x73625140]
    %v510 = vld.sshfl [vmem:[#allocation1 + $0x10] sm:$0xff pattern:$0x73625140]
    %v511 = vld.sshfl [vmem:[#allocation1 + $0x18] sm:$0xff pattern:$0x73625140]
    %v512 = vld.sshfl [vmem:[#allocation1 + $0x20] sm:$0xff pattern:$0x73625140]
    %v513 = vld.sshfl [vmem:[#allocation1 + $0x28] sm:$0xff pattern:$0x73625140]
    %v520 = vpack.c.bf16 %v508, %v508
    %v521 = vpack.c.bf16 %v509, %v509
    %v522 = vpack.c.bf16 %v510, %v510
    %v523 = vpack.c.bf16 %v511, %v511
    %v524 = vpack.c.bf16 %v512, %v512
    %v525 = vpack.c.bf16 %v513, %v513
    %v526 = vld [vmem:[#allocation7] sm:$0xff]
    %v527 = vld [vmem:[#allocation7 + $0x8] sm:$0xff]
    %v528 = vld [vmem:[#allocation7 + $0x10] sm:$0xff]
    %v529 = vld [vmem:[#allocation7 + $0x18] sm:$0xff]
    %v530 = vld [vmem:[#allocation7 + $0x20] sm:$0xff]
    %v531 = vld [vmem:[#allocation7 + $0x28] sm:$0xff]
    %v532 = vld [vmem:[#allocation7 + $0x30] sm:$0xff]
    %v533 = vld [vmem:[#allocation7 + $0x38] sm:$0xff]
    %v534 = vld [vmem:[#allocation7 + $0x40] sm:$0xff]
    %v535 = vld [vmem:[#allocation7 + $0x48] sm:$0xff]
    %v536 = vld [vmem:[#allocation7 + $0x50] sm:$0xff]
    %v537 = vld [vmem:[#allocation7 + $0x58] sm:$0xff]
    %v538 = vld [vmem:[#allocation7 + $0x60] sm:$0xff]
    %v539 = vld [vmem:[#allocation7 + $0x68] sm:$0xff]
    %v540 = vld [vmem:[#allocation7 + $0x70] sm:$0xff]
    %v541 = vld [vmem:[#allocation7 + $0x78] sm:$0xff]
    %v542 = vld [vmem:[#allocation7 + $0x80] sm:$0xff]
    %v543 = vld [vmem:[#allocation7 + $0x88] sm:$0xff]
    %v544 = vld [vmem:[#allocation7 + $0x90] sm:$0xff]
    %v545 = vld [vmem:[#allocation7 + $0x98] sm:$0xff]
    %v546 = vld [vmem:[#allocation7 + $0xa0] sm:$0xff]
    %v547 = vld [vmem:[#allocation7 + $0xa8] sm:$0xff]
    %v548 = vld [vmem:[#allocation7 + $0xb0] sm:$0xff]
    %v549 = vld [vmem:[#allocation7 + $0xb8] sm:$0xff]
    %v550 = vld [vmem:[#allocation7 + $0xc0] sm:$0xff]
    %v551 = vld [vmem:[#allocation7 + $0xc8] sm:$0xff]
    %v552 = vld [vmem:[#allocation7 + $0xd0] sm:$0xff]
    %v553 = vld [vmem:[#allocation7 + $0xd8] sm:$0xff]
    %v554 = vld [vmem:[#allocation7 + $0xe0] sm:$0xff]
    %v555 = vld [vmem:[#allocation7 + $0xe8] sm:$0xff]
    %v556 = vld [vmem:[#allocation7 + $0xf0] sm:$0xff]
    %v557 = vld [vmem:[#allocation7 + $0xf8] sm:$0xff]
    %v558 = vld [vmem:[#allocation7 + $0x100] sm:$0xff]
    %v559 = vld [vmem:[#allocation7 + $0x108] sm:$0xff]
    %v560 = vld [vmem:[#allocation7 + $0x110] sm:$0xff]
    %v561 = vld [vmem:[#allocation7 + $0x118] sm:$0xff]
    %v562 = vld [vmem:[#allocation7 + $0x120] sm:$0xff]
    %v563 = vld [vmem:[#allocation7 + $0x128] sm:$0xff]
    %v564 = vld [vmem:[#allocation7 + $0x130] sm:$0xff]
    %v565 = vld [vmem:[#allocation7 + $0x138] sm:$0xff]
    %v566 = vld [vmem:[#allocation7 + $0x140] sm:$0xff]
    %v567 = vld [vmem:[#allocation7 + $0x148] sm:$0xff]
    %v568 = vld [vmem:[#allocation7 + $0x150] sm:$0xff]
    %v569 = vld [vmem:[#allocation7 + $0x158] sm:$0xff]
    %v570 = vld [vmem:[#allocation7 + $0x160] sm:$0xff]
    %v571 = vld [vmem:[#allocation7 + $0x168] sm:$0xff]
    %v572 = vld [vmem:[#allocation7 + $0x170] sm:$0xff]
    %v573 = vld [vmem:[#allocation7 + $0x178] sm:$0xff]
    %v574 = vld [vmem:[#allocation7 + $0x180] sm:$0xff]
    %v575 = vld [vmem:[#allocation7 + $0x188] sm:$0xff]
    %v576 = vld [vmem:[#allocation7 + $0x190] sm:$0xff]
    %v577 = vld [vmem:[#allocation7 + $0x198] sm:$0xff]
    %v578 = vld [vmem:[#allocation7 + $0x1a0] sm:$0xff]
    %v579 = vld [vmem:[#allocation7 + $0x1a8] sm:$0xff]
    %v580 = vld [vmem:[#allocation7 + $0x1b0] sm:$0xff]
    %v581 = vld [vmem:[#allocation7 + $0x1b8] sm:$0xff]
    %v582 = vld [vmem:[#allocation7 + $0x1c0] sm:$0xff]
    %v583 = vld [vmem:[#allocation7 + $0x1c8] sm:$0xff]
    %v584 = vld [vmem:[#allocation7 + $0x1d0] sm:$0xff]
    %v585 = vld [vmem:[#allocation7 + $0x1d8] sm:$0xff]
    %v586 = vld [vmem:[#allocation7 + $0x1e0] sm:$0xff]
    %v587 = vld [vmem:[#allocation7 + $0x1e8] sm:$0xff]
    %v588 = vld [vmem:[#allocation7 + $0x1f0] sm:$0xff]
    %v589 = vld [vmem:[#allocation7 + $0x1f8] sm:$0xff]
    %v590 = vld [vmem:[#allocation7 + $0x200] sm:$0xff]
    %v591 = vld [vmem:[#allocation7 + $0x208] sm:$0xff]
    %v592 = vld [vmem:[#allocation7 + $0x210] sm:$0xff]
    %v593 = vld [vmem:[#allocation7 + $0x218] sm:$0xff]
    %v594 = vld [vmem:[#allocation7 + $0x220] sm:$0xff]
    %v595 = vld [vmem:[#allocation7 + $0x228] sm:$0xff]
    %v596 = vld [vmem:[#allocation7 + $0x230] sm:$0xff]
    %v597 = vld [vmem:[#allocation7 + $0x238] sm:$0xff]
    %v598 = vld [vmem:[#allocation7 + $0x240] sm:$0xff]
    %v599 = vld [vmem:[#allocation7 + $0x248] sm:$0xff]
    %v600 = vld [vmem:[#allocation7 + $0x250] sm:$0xff]
    %v601 = vld [vmem:[#allocation7 + $0x258] sm:$0xff]
    %v602 = vld [vmem:[#allocation7 + $0x260] sm:$0xff]
    %v603 = vld [vmem:[#allocation7 + $0x268] sm:$0xff]
    %v604 = vld [vmem:[#allocation7 + $0x270] sm:$0xff]
    %v605 = vld [vmem:[#allocation7 + $0x278] sm:$0xff]
    %v606 = vld [vmem:[#allocation7 + $0x280] sm:$0xff]
    %v607 = vld [vmem:[#allocation7 + $0x288] sm:$0xff]
    %v608 = vld [vmem:[#allocation7 + $0x290] sm:$0xff]
    %v609 = vld [vmem:[#allocation7 + $0x298] sm:$0xff]
    %v610 = vld [vmem:[#allocation7 + $0x2a0] sm:$0xff]
    %v611 = vld [vmem:[#allocation7 + $0x2a8] sm:$0xff]
    %v612 = vld [vmem:[#allocation7 + $0x2b0] sm:$0xff]
    %v613 = vld [vmem:[#allocation7 + $0x2b8] sm:$0xff]
    %v614 = vld [vmem:[#allocation7 + $0x2c0] sm:$0xff]
    %v615 = vld [vmem:[#allocation7 + $0x2c8] sm:$0xff]
    %v616 = vld [vmem:[#allocation7 + $0x2d0] sm:$0xff]
    %v617 = vld [vmem:[#allocation7 + $0x2d8] sm:$0xff]
    %v618 = vld [vmem:[#allocation7 + $0x2e0] sm:$0xff]
    %v619 = vld [vmem:[#allocation7 + $0x2e8] sm:$0xff]
    %v620 = vld [vmem:[#allocation7 + $0x2f0] sm:$0xff]
    %v621 = vld [vmem:[#allocation7 + $0x2f8] sm:$0xff]
    %v622 = vld [vmem:[#allocation7 + $0x300] sm:$0xff]
    %v623 = vld [vmem:[#allocation7 + $0x308] sm:$0xff]
    %v624 = vld [vmem:[#allocation7 + $0x310] sm:$0xff]
    %v625 = vld [vmem:[#allocation7 + $0x318] sm:$0xff]
    %v626 = vld [vmem:[#allocation7 + $0x320] sm:$0xff]
    %v627 = vld [vmem:[#allocation7 + $0x328] sm:$0xff]
    %v628 = vld [vmem:[#allocation7 + $0x330] sm:$0xff]
    %v629 = vld [vmem:[#allocation7 + $0x338] sm:$0xff]
    %v630 = vld [vmem:[#allocation7 + $0x340] sm:$0xff]
    %v631 = vld [vmem:[#allocation7 + $0x348] sm:$0xff]
    %v632 = vld [vmem:[#allocation7 + $0x350] sm:$0xff]
    %v633 = vld [vmem:[#allocation7 + $0x358] sm:$0xff]
    %v634 = vld [vmem:[#allocation7 + $0x360] sm:$0xff]
    %v635 = vld [vmem:[#allocation7 + $0x368] sm:$0xff]
    %v636 = vld [vmem:[#allocation7 + $0x370] sm:$0xff]
    %v637 = vld [vmem:[#allocation7 + $0x378] sm:$0xff]
    %v638 = vld [vmem:[#allocation7 + $0x380] sm:$0xff]
    %v639 = vld [vmem:[#allocation7 + $0x388] sm:$0xff]
    %v640 = vld [vmem:[#allocation7 + $0x390] sm:$0xff]
    %v641 = vld [vmem:[#allocation7 + $0x398] sm:$0xff]
    %v642 = vld [vmem:[#allocation7 + $0x3a0] sm:$0xff]
    %v643 = vld [vmem:[#allocation7 + $0x3a8] sm:$0xff]
    %v644 = vld [vmem:[#allocation7 + $0x3b0] sm:$0xff]
    %v645 = vld [vmem:[#allocation7 + $0x3b8] sm:$0xff]
    %v646 = vld [vmem:[#allocation7 + $0x3c0] sm:$0xff]
    %v647 = vld [vmem:[#allocation7 + $0x3c8] sm:$0xff]
    %v648 = vld [vmem:[#allocation7 + $0x3d0] sm:$0xff]
    %v649 = vld [vmem:[#allocation7 + $0x3d8] sm:$0xff]
    %v650 = vld [vmem:[#allocation7 + $0x3e0] sm:$0xff]
    %v651 = vld [vmem:[#allocation7 + $0x3e8] sm:$0xff]
    %v652 = vld [vmem:[#allocation7 + $0x3f0] sm:$0xff]
    %v653 = vld [vmem:[#allocation7 + $0x3f8] sm:$0xff]
    %v654 = vld [vmem:[#allocation7 + $0x400] sm:$0xff]
    %v655 = vld [vmem:[#allocation7 + $0x408] sm:$0xff]
    %v656 = vld [vmem:[#allocation7 + $0x410] sm:$0xff]
    %v657 = vld [vmem:[#allocation7 + $0x418] sm:$0xff]
    %v658 = vld [vmem:[#allocation7 + $0x420] sm:$0xff]
    %v659 = vld [vmem:[#allocation7 + $0x428] sm:$0xff]
    %v660 = vld [vmem:[#allocation7 + $0x430] sm:$0xff]
    %v661 = vld [vmem:[#allocation7 + $0x438] sm:$0xff]
    %v662 = vld [vmem:[#allocation7 + $0x440] sm:$0xff]
    %v663 = vld [vmem:[#allocation7 + $0x448] sm:$0xff]
    %v664 = vld [vmem:[#allocation7 + $0x450] sm:$0xff]
    %v665 = vld [vmem:[#allocation7 + $0x458] sm:$0xff]
    %v666 = vld [vmem:[#allocation7 + $0x460] sm:$0xff]
    %v667 = vld [vmem:[#allocation7 + $0x468] sm:$0xff]
    %v668 = vld [vmem:[#allocation7 + $0x470] sm:$0xff]
    %v669 = vld [vmem:[#allocation7 + $0x478] sm:$0xff]
    %v670 = vld [vmem:[#allocation7 + $0x480] sm:$0xff]
    %v671 = vld [vmem:[#allocation7 + $0x488] sm:$0xff]
    %v672 = vld [vmem:[#allocation7 + $0x490] sm:$0xff]
    %v673 = vld [vmem:[#allocation7 + $0x498] sm:$0xff]
    %v674 = vld [vmem:[#allocation7 + $0x4a0] sm:$0xff]
    %v675 = vld [vmem:[#allocation7 + $0x4a8] sm:$0xff]
    %v676 = vld [vmem:[#allocation7 + $0x4b0] sm:$0xff]
    %v677 = vld [vmem:[#allocation7 + $0x4b8] sm:$0xff]
    %v678 = vld [vmem:[#allocation7 + $0x4c0] sm:$0xff]
    %v679 = vld [vmem:[#allocation7 + $0x4c8] sm:$0xff]
    %v680 = vld [vmem:[#allocation7 + $0x4d0] sm:$0xff]
    %v681 = vld [vmem:[#allocation7 + $0x4d8] sm:$0xff]
    %v682 = vld [vmem:[#allocation7 + $0x4e0] sm:$0xff]
    %v683 = vld [vmem:[#allocation7 + $0x4e8] sm:$0xff]
    %v684 = vld [vmem:[#allocation7 + $0x4f0] sm:$0xff]
    %v685 = vld [vmem:[#allocation7 + $0x4f8] sm:$0xff]
    %v686 = vld [vmem:[#allocation7 + $0x500] sm:$0xff]
    %v687 = vld [vmem:[#allocation7 + $0x508] sm:$0xff]
    %v688 = vld [vmem:[#allocation7 + $0x510] sm:$0xff]
    %v689 = vld [vmem:[#allocation7 + $0x518] sm:$0xff]
    %v690 = vld [vmem:[#allocation7 + $0x520] sm:$0xff]
    %v691 = vld [vmem:[#allocation7 + $0x528] sm:$0xff]
    %v692 = vld [vmem:[#allocation7 + $0x530] sm:$0xff]
    %v693 = vld [vmem:[#allocation7 + $0x538] sm:$0xff]
    %v694 = vld [vmem:[#allocation7 + $0x540] sm:$0xff]
    %v695 = vld [vmem:[#allocation7 + $0x548] sm:$0xff]
    %v696 = vld [vmem:[#allocation7 + $0x550] sm:$0xff]
    %v697 = vld [vmem:[#allocation7 + $0x558] sm:$0xff]
    %v698 = vld [vmem:[#allocation7 + $0x560] sm:$0xff]
    %v699 = vld [vmem:[#allocation7 + $0x568] sm:$0xff]
    %v700 = vld [vmem:[#allocation7 + $0x570] sm:$0xff]
    %v701 = vld [vmem:[#allocation7 + $0x578] sm:$0xff]
    %v702 = vld [vmem:[#allocation7 + $0x580] sm:$0xff]
    %v703 = vld [vmem:[#allocation7 + $0x588] sm:$0xff]
    %v704 = vld [vmem:[#allocation7 + $0x590] sm:$0xff]
    %v705 = vld [vmem:[#allocation7 + $0x598] sm:$0xff]
    %v706 = vld [vmem:[#allocation7 + $0x5a0] sm:$0xff]
    %v707 = vld [vmem:[#allocation7 + $0x5a8] sm:$0xff]
    %v708 = vld [vmem:[#allocation7 + $0x5b0] sm:$0xff]
    %v709 = vld [vmem:[#allocation7 + $0x5b8] sm:$0xff]
    %v710 = vld [vmem:[#allocation7 + $0x5c0] sm:$0xff]
    %v711 = vld [vmem:[#allocation7 + $0x5c8] sm:$0xff]
    %v712 = vld [vmem:[#allocation7 + $0x5d0] sm:$0xff]
    %v713 = vld [vmem:[#allocation7 + $0x5d8] sm:$0xff]
    %v714 = vld [vmem:[#allocation7 + $0x5e0] sm:$0xff]
    %v715 = vld [vmem:[#allocation7 + $0x5e8] sm:$0xff]
    %v716 = vld [vmem:[#allocation7 + $0x5f0] sm:$0xff]
    %v717 = vld [vmem:[#allocation7 + $0x5f8] sm:$0xff]
    %v718 = vld [vmem:[#allocation7 + $0x600] sm:$0xff]
    %v719 = vld [vmem:[#allocation7 + $0x608] sm:$0xff]
    %v720 = vld [vmem:[#allocation7 + $0x610] sm:$0xff]
    %v721 = vld [vmem:[#allocation7 + $0x618] sm:$0xff]
    %v722 = vld [vmem:[#allocation7 + $0x620] sm:$0xff]
    %v723 = vld [vmem:[#allocation7 + $0x628] sm:$0xff]
    %v724 = vld [vmem:[#allocation7 + $0x630] sm:$0xff]
    %v725 = vld [vmem:[#allocation7 + $0x638] sm:$0xff]
    %v726 = vld [vmem:[#allocation7 + $0x640] sm:$0xff]
    %v727 = vld [vmem:[#allocation7 + $0x648] sm:$0xff]
    %v728 = vld [vmem:[#allocation7 + $0x650] sm:$0xff]
    %v729 = vld [vmem:[#allocation7 + $0x658] sm:$0xff]
    %v730 = vld [vmem:[#allocation7 + $0x660] sm:$0xff]
    %v731 = vld [vmem:[#allocation7 + $0x668] sm:$0xff]
    %v732 = vld [vmem:[#allocation7 + $0x670] sm:$0xff]
    %v733 = vld [vmem:[#allocation7 + $0x678] sm:$0xff]
    %v734 = vld [vmem:[#allocation7 + $0x680] sm:$0xff]
    %v735 = vld [vmem:[#allocation7 + $0x688] sm:$0xff]
    %v736 = vld [vmem:[#allocation7 + $0x690] sm:$0xff]
    %v737 = vld [vmem:[#allocation7 + $0x698] sm:$0xff]
    %v738 = vld [vmem:[#allocation7 + $0x6a0] sm:$0xff]
    %v739 = vld [vmem:[#allocation7 + $0x6a8] sm:$0xff]
    %v740 = vld [vmem:[#allocation7 + $0x6b0] sm:$0xff]
    %v741 = vld [vmem:[#allocation7 + $0x6b8] sm:$0xff]
    %v742 = vld [vmem:[#allocation7 + $0x6c0] sm:$0xff]
    %v743 = vld [vmem:[#allocation7 + $0x6c8] sm:$0xff]
    %v744 = vld [vmem:[#allocation7 + $0x6d0] sm:$0xff]
    %v745 = vld [vmem:[#allocation7 + $0x6d8] sm:$0xff]
    %v746 = vld [vmem:[#allocation7 + $0x6e0] sm:$0xff]
    %v747 = vld [vmem:[#allocation7 + $0x6e8] sm:$0xff]
    %v748 = vld [vmem:[#allocation7 + $0x6f0] sm:$0xff]
    %v749 = vld [vmem:[#allocation7 + $0x6f8] sm:$0xff]
    %v750 = vld [vmem:[#allocation7 + $0x700] sm:$0xff]
    %v751 = vld [vmem:[#allocation7 + $0x708] sm:$0xff]
    %v752 = vld [vmem:[#allocation7 + $0x710] sm:$0xff]
    %v753 = vld [vmem:[#allocation7 + $0x718] sm:$0xff]
    %v754 = vld [vmem:[#allocation7 + $0x720] sm:$0xff]
    %v755 = vld [vmem:[#allocation7 + $0x728] sm:$0xff]
    %v756 = vld [vmem:[#allocation7 + $0x730] sm:$0xff]
    %v757 = vld [vmem:[#allocation7 + $0x738] sm:$0xff]
    %v758 = vld [vmem:[#allocation7 + $0x740] sm:$0xff]
    %v759 = vld [vmem:[#allocation7 + $0x748] sm:$0xff]
    %v760 = vld [vmem:[#allocation7 + $0x750] sm:$0xff]
    %v761 = vld [vmem:[#allocation7 + $0x758] sm:$0xff]
    %v762 = vld [vmem:[#allocation7 + $0x760] sm:$0xff]
    %v763 = vld [vmem:[#allocation7 + $0x768] sm:$0xff]
    %v764 = vld [vmem:[#allocation7 + $0x770] sm:$0xff]
    %v765 = vld [vmem:[#allocation7 + $0x778] sm:$0xff]
    %v766 = vld [vmem:[#allocation7 + $0x780] sm:$0xff]
    %v767 = vld [vmem:[#allocation7 + $0x788] sm:$0xff]
    %v768 = vld [vmem:[#allocation7 + $0x790] sm:$0xff]
    %v769 = vld [vmem:[#allocation7 + $0x798] sm:$0xff]
    %v770 = vld [vmem:[#allocation7 + $0x7a0] sm:$0xff]
    %v771 = vld [vmem:[#allocation7 + $0x7a8] sm:$0xff]
    %v772 = vld [vmem:[#allocation7 + $0x7b0] sm:$0xff]
    %v773 = vld [vmem:[#allocation7 + $0x7b8] sm:$0xff]
    %v774 = vld [vmem:[#allocation7 + $0x7c0] sm:$0xff]
    %v775 = vld [vmem:[#allocation7 + $0x7c8] sm:$0xff]
    %v776 = vld [vmem:[#allocation7 + $0x7d0] sm:$0xff]
    %v777 = vld [vmem:[#allocation7 + $0x7d8] sm:$0xff]
    %v778 = vld [vmem:[#allocation7 + $0x7e0] sm:$0xff]
    %v779 = vld [vmem:[#allocation7 + $0x7e8] sm:$0xff]
    %v780 = vld [vmem:[#allocation7 + $0x7f0] sm:$0xff]
    %v781 = vld [vmem:[#allocation7 + $0x7f8] sm:$0xff]
    %v782 = vld [vmem:[#allocation7 + $0x800] sm:$0xff]
    %v783 = vld [vmem:[#allocation7 + $0x808] sm:$0xff]
    %v784 = vld [vmem:[#allocation7 + $0x810] sm:$0xff]
    %v785 = vld [vmem:[#allocation7 + $0x818] sm:$0xff]
    %v786 = vld [vmem:[#allocation7 + $0x820] sm:$0xff]
    %v787 = vld [vmem:[#allocation7 + $0x828] sm:$0xff]
    %v788 = vld [vmem:[#allocation7 + $0x830] sm:$0xff]
    %v789 = vld [vmem:[#allocation7 + $0x838] sm:$0xff]
    %v790 = vld [vmem:[#allocation7 + $0x840] sm:$0xff]
    %v791 = vld [vmem:[#allocation7 + $0x848] sm:$0xff]
    %v792 = vld [vmem:[#allocation7 + $0x850] sm:$0xff]
    %v793 = vld [vmem:[#allocation7 + $0x858] sm:$0xff]
    %v794 = vld [vmem:[#allocation7 + $0x860] sm:$0xff]
    %v795 = vld [vmem:[#allocation7 + $0x868] sm:$0xff]
    %v796 = vld [vmem:[#allocation7 + $0x870] sm:$0xff]
    %v797 = vld [vmem:[#allocation7 + $0x878] sm:$0xff]
    %v798 = vld [vmem:[#allocation7 + $0x880] sm:$0xff]
    %v799 = vld [vmem:[#allocation7 + $0x888] sm:$0xff]
    %v800 = vld [vmem:[#allocation7 + $0x890] sm:$0xff]
    %v801 = vld [vmem:[#allocation7 + $0x898] sm:$0xff]
    %v802 = vld [vmem:[#allocation7 + $0x8a0] sm:$0xff]
    %v803 = vld [vmem:[#allocation7 + $0x8a8] sm:$0xff]
    %v804 = vld [vmem:[#allocation7 + $0x8b0] sm:$0xff]
    %v805 = vld [vmem:[#allocation7 + $0x8b8] sm:$0xff]
    %v806 = vld [vmem:[#allocation7 + $0x8c0] sm:$0xff]
    %v807 = vld [vmem:[#allocation7 + $0x8c8] sm:$0xff]
    %v808 = vld [vmem:[#allocation7 + $0x8d0] sm:$0xff]
    %v809 = vld [vmem:[#allocation7 + $0x8d8] sm:$0xff]
    %v810 = vld [vmem:[#allocation7 + $0x8e0] sm:$0xff]
    %v811 = vld [vmem:[#allocation7 + $0x8e8] sm:$0xff]
    %v812 = vld [vmem:[#allocation7 + $0x8f0] sm:$0xff]
    %v813 = vld [vmem:[#allocation7 + $0x8f8] sm:$0xff]
    %v814 = vld [vmem:[#allocation7 + $0x900] sm:$0xff]
    %v815 = vld [vmem:[#allocation7 + $0x908] sm:$0xff]
    %v816 = vld [vmem:[#allocation7 + $0x910] sm:$0xff]
    %v817 = vld [vmem:[#allocation7 + $0x918] sm:$0xff]
    %v818 = vld [vmem:[#allocation7 + $0x920] sm:$0xff]
    %v819 = vld [vmem:[#allocation7 + $0x928] sm:$0xff]
    %v820 = vld [vmem:[#allocation7 + $0x930] sm:$0xff]
    %v821 = vld [vmem:[#allocation7 + $0x938] sm:$0xff]
    %v822 = vld [vmem:[#allocation7 + $0x940] sm:$0xff]
    %v823 = vld [vmem:[#allocation7 + $0x948] sm:$0xff]
    %v824 = vld [vmem:[#allocation7 + $0x950] sm:$0xff]
    %v825 = vld [vmem:[#allocation7 + $0x958] sm:$0xff]
    %v826 = vld [vmem:[#allocation7 + $0x960] sm:$0xff]
    %v827 = vld [vmem:[#allocation7 + $0x968] sm:$0xff]
    %v828 = vld [vmem:[#allocation7 + $0x970] sm:$0xff]
    %v829 = vld [vmem:[#allocation7 + $0x978] sm:$0xff]
    %v830 = vld [vmem:[#allocation7 + $0x980] sm:$0xff]
    %v831 = vld [vmem:[#allocation7 + $0x988] sm:$0xff]
    %v832 = vld [vmem:[#allocation7 + $0x990] sm:$0xff]
    %v833 = vld [vmem:[#allocation7 + $0x998] sm:$0xff]
    %v834 = vld [vmem:[#allocation7 + $0x9a0] sm:$0xff]
    %v835 = vld [vmem:[#allocation7 + $0x9a8] sm:$0xff]
    %v836 = vld [vmem:[#allocation7 + $0x9b0] sm:$0xff]
    %v837 = vld [vmem:[#allocation7 + $0x9b8] sm:$0xff]
    %v838 = vld [vmem:[#allocation7 + $0x9c0] sm:$0xff]
    %v839 = vld [vmem:[#allocation7 + $0x9c8] sm:$0xff]
    %v840 = vld [vmem:[#allocation7 + $0x9d0] sm:$0xff]
    %v841 = vld [vmem:[#allocation7 + $0x9d8] sm:$0xff]
    %v842 = vld [vmem:[#allocation7 + $0x9e0] sm:$0xff]
    %v843 = vld [vmem:[#allocation7 + $0x9e8] sm:$0xff]
    %v844 = vld [vmem:[#allocation7 + $0x9f0] sm:$0xff]
    %v845 = vld [vmem:[#allocation7 + $0x9f8] sm:$0xff]
    %v846 = vld [vmem:[#allocation7 + $0xa00] sm:$0xff]
    %v847 = vld [vmem:[#allocation7 + $0xa08] sm:$0xff]
    %v848 = vld [vmem:[#allocation7 + $0xa10] sm:$0xff]
    %v849 = vld [vmem:[#allocation7 + $0xa18] sm:$0xff]
    %v850 = vld [vmem:[#allocation7 + $0xa20] sm:$0xff]
    %v851 = vld [vmem:[#allocation7 + $0xa28] sm:$0xff]
    %v852 = vld [vmem:[#allocation7 + $0xa30] sm:$0xff]
    %v853 = vld [vmem:[#allocation7 + $0xa38] sm:$0xff]
    %v854 = vld [vmem:[#allocation7 + $0xa40] sm:$0xff]
    %v855 = vld [vmem:[#allocation7 + $0xa48] sm:$0xff]
    %v856 = vld [vmem:[#allocation7 + $0xa50] sm:$0xff]
    %v857 = vld [vmem:[#allocation7 + $0xa58] sm:$0xff]
    %v858 = vld [vmem:[#allocation7 + $0xa60] sm:$0xff]
    %v859 = vld [vmem:[#allocation7 + $0xa68] sm:$0xff]
    %v860 = vld [vmem:[#allocation7 + $0xa70] sm:$0xff]
    %v861 = vld [vmem:[#allocation7 + $0xa78] sm:$0xff]
    %v862 = vld [vmem:[#allocation7 + $0xa80] sm:$0xff]
    %v863 = vld [vmem:[#allocation7 + $0xa88] sm:$0xff]
    %v864 = vld [vmem:[#allocation7 + $0xa90] sm:$0xff]
    %v865 = vld [vmem:[#allocation7 + $0xa98] sm:$0xff]
    %v866 = vld [vmem:[#allocation7 + $0xaa0] sm:$0xff]
    %v867 = vld [vmem:[#allocation7 + $0xaa8] sm:$0xff]
    %v868 = vld [vmem:[#allocation7 + $0xab0] sm:$0xff]
    %v869 = vld [vmem:[#allocation7 + $0xab8] sm:$0xff]
    %v870 = vld [vmem:[#allocation7 + $0xac0] sm:$0xff]
    %v871 = vld [vmem:[#allocation7 + $0xac8] sm:$0xff]
    %v872 = vld [vmem:[#allocation7 + $0xad0] sm:$0xff]
    %v873 = vld [vmem:[#allocation7 + $0xad8] sm:$0xff]
    %v874 = vld [vmem:[#allocation7 + $0xae0] sm:$0xff]
    %v875 = vld [vmem:[#allocation7 + $0xae8] sm:$0xff]
    %v876 = vld [vmem:[#allocation7 + $0xaf0] sm:$0xff]
    %v877 = vld [vmem:[#allocation7 + $0xaf8] sm:$0xff]
    %v878 = vld [vmem:[#allocation7 + $0xb00] sm:$0xff]
    %v879 = vld [vmem:[#allocation7 + $0xb08] sm:$0xff]
    %v880 = vld [vmem:[#allocation7 + $0xb10] sm:$0xff]
    %v881 = vld [vmem:[#allocation7 + $0xb18] sm:$0xff]
    %v882 = vld [vmem:[#allocation7 + $0xb20] sm:$0xff]
    %v883 = vld [vmem:[#allocation7 + $0xb28] sm:$0xff]
    %v884 = vld [vmem:[#allocation7 + $0xb30] sm:$0xff]
    %v885 = vld [vmem:[#allocation7 + $0xb38] sm:$0xff]
    %v886 = vld [vmem:[#allocation7 + $0xb40] sm:$0xff]
    %v887 = vld [vmem:[#allocation7 + $0xb48] sm:$0xff]
    %v888 = vld [vmem:[#allocation7 + $0xb50] sm:$0xff]
    %v889 = vld [vmem:[#allocation7 + $0xb58] sm:$0xff]
    %v890 = vld [vmem:[#allocation7 + $0xb60] sm:$0xff]
    %v891 = vld [vmem:[#allocation7 + $0xb68] sm:$0xff]
    %v892 = vld [vmem:[#allocation7 + $0xb70] sm:$0xff]
    %v893 = vld [vmem:[#allocation7 + $0xb78] sm:$0xff]
    %v894 = vld [vmem:[#allocation7 + $0xb80] sm:$0xff]
    %v895 = vld [vmem:[#allocation7 + $0xb88] sm:$0xff]
    %v896 = vld [vmem:[#allocation7 + $0xb90] sm:$0xff]
    %v897 = vld [vmem:[#allocation7 + $0xb98] sm:$0xff]
    %v898 = vld [vmem:[#allocation7 + $0xba0] sm:$0xff]
    %v899 = vld [vmem:[#allocation7 + $0xba8] sm:$0xff]
    %v900 = vld [vmem:[#allocation7 + $0xbb0] sm:$0xff]
    %v901 = vld [vmem:[#allocation7 + $0xbb8] sm:$0xff]
    %v902 = vld [vmem:[#allocation7 + $0xbc0] sm:$0xff]
    %v903 = vld [vmem:[#allocation7 + $0xbc8] sm:$0xff]
    %v904 = vld [vmem:[#allocation7 + $0xbd0] sm:$0xff]
    %v905 = vld [vmem:[#allocation7 + $0xbd8] sm:$0xff]
    %v906 = vld [vmem:[#allocation7 + $0xbe0] sm:$0xff]
    %v907 = vld [vmem:[#allocation7 + $0xbe8] sm:$0xff]
    %v908 = vld [vmem:[#allocation7 + $0xbf0] sm:$0xff]
    %v909 = vld [vmem:[#allocation7 + $0xbf8] sm:$0xff]
    %v910 = vld [vmem:[#allocation8] sm:$0xff]
    %v911 = vld [vmem:[#allocation8 + $0x8] sm:$0xff]
    %v912 = vld [vmem:[#allocation8 + $0x10] sm:$0xff]
    %v913 = vld [vmem:[#allocation8 + $0x18] sm:$0xff]
    %v914 = vld [vmem:[#allocation8 + $0x20] sm:$0xff]
    %v915 = vld [vmem:[#allocation8 + $0x28] sm:$0xff]
    %v916 = vld [vmem:[#allocation8 + $0x30] sm:$0xff]
    %v917 = vld [vmem:[#allocation8 + $0x38] sm:$0xff]
    %v918 = vld [vmem:[#allocation8 + $0x40] sm:$0xff]
    %v919 = vld [vmem:[#allocation8 + $0x48] sm:$0xff]
    %v920 = vld [vmem:[#allocation8 + $0x50] sm:$0xff]
    %v921 = vld [vmem:[#allocation8 + $0x58] sm:$0xff]
    %v922 = vld [vmem:[#allocation8 + $0x60] sm:$0xff]
    %v923 = vld [vmem:[#allocation8 + $0x68] sm:$0xff]
    %v924 = vld [vmem:[#allocation8 + $0x70] sm:$0xff]
    %v925 = vld [vmem:[#allocation8 + $0x78] sm:$0xff]
    %v926 = vld [vmem:[#allocation8 + $0x80] sm:$0xff]
    %v927 = vld [vmem:[#allocation8 + $0x88] sm:$0xff]
    %v928 = vld [vmem:[#allocation8 + $0x90] sm:$0xff]
    %v929 = vld [vmem:[#allocation8 + $0x98] sm:$0xff]
    %v930 = vld [vmem:[#allocation8 + $0xa0] sm:$0xff]
    %v931 = vld [vmem:[#allocation8 + $0xa8] sm:$0xff]
    %v932 = vld [vmem:[#allocation8 + $0xb0] sm:$0xff]
    %v933 = vld [vmem:[#allocation8 + $0xb8] sm:$0xff]
    %v934 = vld [vmem:[#allocation8 + $0xc0] sm:$0xff]
    %v935 = vld [vmem:[#allocation8 + $0xc8] sm:$0xff]
    %v936 = vld [vmem:[#allocation8 + $0xd0] sm:$0xff]
    %v937 = vld [vmem:[#allocation8 + $0xd8] sm:$0xff]
    %v938 = vld [vmem:[#allocation8 + $0xe0] sm:$0xff]
    %v939 = vld [vmem:[#allocation8 + $0xe8] sm:$0xff]
    %v940 = vld [vmem:[#allocation8 + $0xf0] sm:$0xff]
    %v941 = vld [vmem:[#allocation8 + $0xf8] sm:$0xff]
    %v942 = vld [vmem:[#allocation8 + $0x100] sm:$0xff]
    %v943 = vld [vmem:[#allocation8 + $0x108] sm:$0xff]
    %v944 = vld [vmem:[#allocation8 + $0x110] sm:$0xff]
    %v945 = vld [vmem:[#allocation8 + $0x118] sm:$0xff]
    %v946 = vld [vmem:[#allocation8 + $0x120] sm:$0xff]
    %v947 = vld [vmem:[#allocation8 + $0x128] sm:$0xff]
    %v948 = vld [vmem:[#allocation8 + $0x130] sm:$0xff]
    %v949 = vld [vmem:[#allocation8 + $0x138] sm:$0xff]
    %v950 = vld [vmem:[#allocation8 + $0x140] sm:$0xff]
    %v951 = vld [vmem:[#allocation8 + $0x148] sm:$0xff]
    %v952 = vld [vmem:[#allocation8 + $0x150] sm:$0xff]
    %v953 = vld [vmem:[#allocation8 + $0x158] sm:$0xff]
    %v954 = vld [vmem:[#allocation8 + $0x160] sm:$0xff]
    %v955 = vld [vmem:[#allocation8 + $0x168] sm:$0xff]
    %v956 = vld [vmem:[#allocation8 + $0x170] sm:$0xff]
    %v957 = vld [vmem:[#allocation8 + $0x178] sm:$0xff]
    %v958 = vld [vmem:[#allocation8 + $0x180] sm:$0xff]
    %v959 = vld [vmem:[#allocation8 + $0x188] sm:$0xff]
    %v960 = vld [vmem:[#allocation8 + $0x190] sm:$0xff]
    %v961 = vld [vmem:[#allocation8 + $0x198] sm:$0xff]
    %v962 = vld [vmem:[#allocation8 + $0x1a0] sm:$0xff]
    %v963 = vld [vmem:[#allocation8 + $0x1a8] sm:$0xff]
    %v964 = vld [vmem:[#allocation8 + $0x1b0] sm:$0xff]
    %v965 = vld [vmem:[#allocation8 + $0x1b8] sm:$0xff]
    %v966 = vld [vmem:[#allocation8 + $0x1c0] sm:$0xff]
    %v967 = vld [vmem:[#allocation8 + $0x1c8] sm:$0xff]
    %v968 = vld [vmem:[#allocation8 + $0x1d0] sm:$0xff]
    %v969 = vld [vmem:[#allocation8 + $0x1d8] sm:$0xff]
    %v970 = vld [vmem:[#allocation8 + $0x1e0] sm:$0xff]
    %v971 = vld [vmem:[#allocation8 + $0x1e8] sm:$0xff]
    %v972 = vld [vmem:[#allocation8 + $0x1f0] sm:$0xff]
    %v973 = vld [vmem:[#allocation8 + $0x1f8] sm:$0xff]
    %v974 = vld [vmem:[#allocation8 + $0x200] sm:$0xff]
    %v975 = vld [vmem:[#allocation8 + $0x208] sm:$0xff]
    %v976 = vld [vmem:[#allocation8 + $0x210] sm:$0xff]
    %v977 = vld [vmem:[#allocation8 + $0x218] sm:$0xff]
    %v978 = vld [vmem:[#allocation8 + $0x220] sm:$0xff]
    %v979 = vld [vmem:[#allocation8 + $0x228] sm:$0xff]
    %v980 = vld [vmem:[#allocation8 + $0x230] sm:$0xff]
    %v981 = vld [vmem:[#allocation8 + $0x238] sm:$0xff]
    %v982 = vld [vmem:[#allocation8 + $0x240] sm:$0xff]
    %v983 = vld [vmem:[#allocation8 + $0x248] sm:$0xff]
    %v984 = vld [vmem:[#allocation8 + $0x250] sm:$0xff]
    %v985 = vld [vmem:[#allocation8 + $0x258] sm:$0xff]
    %v986 = vld [vmem:[#allocation8 + $0x260] sm:$0xff]
    %v987 = vld [vmem:[#allocation8 + $0x268] sm:$0xff]
    %v988 = vld [vmem:[#allocation8 + $0x270] sm:$0xff]
    %v989 = vld [vmem:[#allocation8 + $0x278] sm:$0xff]
    %v990 = vld [vmem:[#allocation8 + $0x280] sm:$0xff]
    %v991 = vld [vmem:[#allocation8 + $0x288] sm:$0xff]
    %v992 = vld [vmem:[#allocation8 + $0x290] sm:$0xff]
    %v993 = vld [vmem:[#allocation8 + $0x298] sm:$0xff]
    %v994 = vld [vmem:[#allocation8 + $0x2a0] sm:$0xff]
    %v995 = vld [vmem:[#allocation8 + $0x2a8] sm:$0xff]
    %v996 = vld [vmem:[#allocation8 + $0x2b0] sm:$0xff]
    %v997 = vld [vmem:[#allocation8 + $0x2b8] sm:$0xff]
    %v998 = vld [vmem:[#allocation8 + $0x2c0] sm:$0xff]
    %v999 = vld [vmem:[#allocation8 + $0x2c8] sm:$0xff]
    %v1000 = vld [vmem:[#allocation8 + $0x2d0] sm:$0xff]
    %v1001 = vld [vmem:[#allocation8 + $0x2d8] sm:$0xff]
    %v1002 = vld [vmem:[#allocation8 + $0x2e0] sm:$0xff]
    %v1003 = vld [vmem:[#allocation8 + $0x2e8] sm:$0xff]
    %v1004 = vld [vmem:[#allocation8 + $0x2f0] sm:$0xff]
    %v1005 = vld [vmem:[#allocation8 + $0x2f8] sm:$0xff]
    %v1006 = vld [vmem:[#allocation8 + $0x300] sm:$0xff]
    %v1007 = vld [vmem:[#allocation8 + $0x308] sm:$0xff]
    %v1008 = vld [vmem:[#allocation8 + $0x310] sm:$0xff]
    %v1009 = vld [vmem:[#allocation8 + $0x318] sm:$0xff]
    %v1010 = vld [vmem:[#allocation8 + $0x320] sm:$0xff]
    %v1011 = vld [vmem:[#allocation8 + $0x328] sm:$0xff]
    %v1012 = vld [vmem:[#allocation8 + $0x330] sm:$0xff]
    %v1013 = vld [vmem:[#allocation8 + $0x338] sm:$0xff]
    %v1014 = vld [vmem:[#allocation8 + $0x340] sm:$0xff]
    %v1015 = vld [vmem:[#allocation8 + $0x348] sm:$0xff]
    %v1016 = vld [vmem:[#allocation8 + $0x350] sm:$0xff]
    %v1017 = vld [vmem:[#allocation8 + $0x358] sm:$0xff]
    %v1018 = vld [vmem:[#allocation8 + $0x360] sm:$0xff]
    %v1019 = vld [vmem:[#allocation8 + $0x368] sm:$0xff]
    %v1020 = vld [vmem:[#allocation8 + $0x370] sm:$0xff]
    %v1021 = vld [vmem:[#allocation8 + $0x378] sm:$0xff]
    %v1022 = vld [vmem:[#allocation8 + $0x380] sm:$0xff]
    %v1023 = vld [vmem:[#allocation8 + $0x388] sm:$0xff]
    %v1024 = vld [vmem:[#allocation8 + $0x390] sm:$0xff]
    %v1025 = vld [vmem:[#allocation8 + $0x398] sm:$0xff]
    %v1026 = vld [vmem:[#allocation8 + $0x3a0] sm:$0xff]
    %v1027 = vld [vmem:[#allocation8 + $0x3a8] sm:$0xff]
    %v1028 = vld [vmem:[#allocation8 + $0x3b0] sm:$0xff]
    %v1029 = vld [vmem:[#allocation8 + $0x3b8] sm:$0xff]
    %v1030 = vld [vmem:[#allocation8 + $0x3c0] sm:$0xff]
    %v1031 = vld [vmem:[#allocation8 + $0x3c8] sm:$0xff]
    %v1032 = vld [vmem:[#allocation8 + $0x3d0] sm:$0xff]
    %v1033 = vld [vmem:[#allocation8 + $0x3d8] sm:$0xff]
    %v1034 = vld [vmem:[#allocation8 + $0x3e0] sm:$0xff]
    %v1035 = vld [vmem:[#allocation8 + $0x3e8] sm:$0xff]
    %v1036 = vld [vmem:[#allocation8 + $0x3f0] sm:$0xff]
    %v1037 = vld [vmem:[#allocation8 + $0x3f8] sm:$0xff]
    %v1038 = vld [vmem:[#allocation8 + $0x400] sm:$0xff]
    %v1039 = vld [vmem:[#allocation8 + $0x408] sm:$0xff]
    %v1040 = vld [vmem:[#allocation8 + $0x410] sm:$0xff]
    %v1041 = vld [vmem:[#allocation8 + $0x418] sm:$0xff]
    %v1042 = vld [vmem:[#allocation8 + $0x420] sm:$0xff]
    %v1043 = vld [vmem:[#allocation8 + $0x428] sm:$0xff]
    %v1044 = vld [vmem:[#allocation8 + $0x430] sm:$0xff]
    %v1045 = vld [vmem:[#allocation8 + $0x438] sm:$0xff]
    %v1046 = vld [vmem:[#allocation8 + $0x440] sm:$0xff]
    %v1047 = vld [vmem:[#allocation8 + $0x448] sm:$0xff]
    %v1048 = vld [vmem:[#allocation8 + $0x450] sm:$0xff]
    %v1049 = vld [vmem:[#allocation8 + $0x458] sm:$0xff]
    %v1050 = vld [vmem:[#allocation8 + $0x460] sm:$0xff]
    %v1051 = vld [vmem:[#allocation8 + $0x468] sm:$0xff]
    %v1052 = vld [vmem:[#allocation8 + $0x470] sm:$0xff]
    %v1053 = vld [vmem:[#allocation8 + $0x478] sm:$0xff]
    %v1054 = vld [vmem:[#allocation8 + $0x480] sm:$0xff]
    %v1055 = vld [vmem:[#allocation8 + $0x488] sm:$0xff]
    %v1056 = vld [vmem:[#allocation8 + $0x490] sm:$0xff]
    %v1057 = vld [vmem:[#allocation8 + $0x498] sm:$0xff]
    %v1058 = vld [vmem:[#allocation8 + $0x4a0] sm:$0xff]
    %v1059 = vld [vmem:[#allocation8 + $0x4a8] sm:$0xff]
    %v1060 = vld [vmem:[#allocation8 + $0x4b0] sm:$0xff]
    %v1061 = vld [vmem:[#allocation8 + $0x4b8] sm:$0xff]
    %v1062 = vld [vmem:[#allocation8 + $0x4c0] sm:$0xff]
    %v1063 = vld [vmem:[#allocation8 + $0x4c8] sm:$0xff]
    %v1064 = vld [vmem:[#allocation8 + $0x4d0] sm:$0xff]
    %v1065 = vld [vmem:[#allocation8 + $0x4d8] sm:$0xff]
    %v1066 = vld [vmem:[#allocation8 + $0x4e0] sm:$0xff]
    %v1067 = vld [vmem:[#allocation8 + $0x4e8] sm:$0xff]
    %v1068 = vld [vmem:[#allocation8 + $0x4f0] sm:$0xff]
    %v1069 = vld [vmem:[#allocation8 + $0x4f8] sm:$0xff]
    %v1070 = vld [vmem:[#allocation8 + $0x500] sm:$0xff]
    %v1071 = vld [vmem:[#allocation8 + $0x508] sm:$0xff]
    %v1072 = vld [vmem:[#allocation8 + $0x510] sm:$0xff]
    %v1073 = vld [vmem:[#allocation8 + $0x518] sm:$0xff]
    %v1074 = vld [vmem:[#allocation8 + $0x520] sm:$0xff]
    %v1075 = vld [vmem:[#allocation8 + $0x528] sm:$0xff]
    %v1076 = vld [vmem:[#allocation8 + $0x530] sm:$0xff]
    %v1077 = vld [vmem:[#allocation8 + $0x538] sm:$0xff]
    %v1078 = vld [vmem:[#allocation8 + $0x540] sm:$0xff]
    %v1079 = vld [vmem:[#allocation8 + $0x548] sm:$0xff]
    %v1080 = vld [vmem:[#allocation8 + $0x550] sm:$0xff]
    %v1081 = vld [vmem:[#allocation8 + $0x558] sm:$0xff]
    %v1082 = vld [vmem:[#allocation8 + $0x560] sm:$0xff]
    %v1083 = vld [vmem:[#allocation8 + $0x568] sm:$0xff]
    %v1084 = vld [vmem:[#allocation8 + $0x570] sm:$0xff]
    %v1085 = vld [vmem:[#allocation8 + $0x578] sm:$0xff]
    %v1086 = vld [vmem:[#allocation8 + $0x580] sm:$0xff]
    %v1087 = vld [vmem:[#allocation8 + $0x588] sm:$0xff]
    %v1088 = vld [vmem:[#allocation8 + $0x590] sm:$0xff]
    %v1089 = vld [vmem:[#allocation8 + $0x598] sm:$0xff]
    %v1090 = vld [vmem:[#allocation8 + $0x5a0] sm:$0xff]
    %v1091 = vld [vmem:[#allocation8 + $0x5a8] sm:$0xff]
    %v1092 = vld [vmem:[#allocation8 + $0x5b0] sm:$0xff]
    %v1093 = vld [vmem:[#allocation8 + $0x5b8] sm:$0xff]
    %v1094 = vld [vmem:[#allocation8 + $0x5c0] sm:$0xff]
    %v1095 = vld [vmem:[#allocation8 + $0x5c8] sm:$0xff]
    %v1096 = vld [vmem:[#allocation8 + $0x5d0] sm:$0xff]
    %v1097 = vld [vmem:[#allocation8 + $0x5d8] sm:$0xff]
    %v1098 = vld [vmem:[#allocation8 + $0x5e0] sm:$0xff]
    %v1099 = vld [vmem:[#allocation8 + $0x5e8] sm:$0xff]
    %v1100 = vld [vmem:[#allocation8 + $0x5f0] sm:$0xff]
    %v1101 = vld [vmem:[#allocation8 + $0x5f8] sm:$0xff]
    %v1102 = vld [vmem:[#allocation8 + $0x600] sm:$0xff]
    %v1103 = vld [vmem:[#allocation8 + $0x608] sm:$0xff]
    %v1104 = vld [vmem:[#allocation8 + $0x610] sm:$0xff]
    %v1105 = vld [vmem:[#allocation8 + $0x618] sm:$0xff]
    %v1106 = vld [vmem:[#allocation8 + $0x620] sm:$0xff]
    %v1107 = vld [vmem:[#allocation8 + $0x628] sm:$0xff]
    %v1108 = vld [vmem:[#allocation8 + $0x630] sm:$0xff]
    %v1109 = vld [vmem:[#allocation8 + $0x638] sm:$0xff]
    %v1110 = vld [vmem:[#allocation8 + $0x640] sm:$0xff]
    %v1111 = vld [vmem:[#allocation8 + $0x648] sm:$0xff]
    %v1112 = vld [vmem:[#allocation8 + $0x650] sm:$0xff]
    %v1113 = vld [vmem:[#allocation8 + $0x658] sm:$0xff]
    %v1114 = vld [vmem:[#allocation8 + $0x660] sm:$0xff]
    %v1115 = vld [vmem:[#allocation8 + $0x668] sm:$0xff]
    %v1116 = vld [vmem:[#allocation8 + $0x670] sm:$0xff]
    %v1117 = vld [vmem:[#allocation8 + $0x678] sm:$0xff]
    %v1118 = vld [vmem:[#allocation8 + $0x680] sm:$0xff]
    %v1119 = vld [vmem:[#allocation8 + $0x688] sm:$0xff]
    %v1120 = vld [vmem:[#allocation8 + $0x690] sm:$0xff]
    %v1121 = vld [vmem:[#allocation8 + $0x698] sm:$0xff]
    %v1122 = vld [vmem:[#allocation8 + $0x6a0] sm:$0xff]
    %v1123 = vld [vmem:[#allocation8 + $0x6a8] sm:$0xff]
    %v1124 = vld [vmem:[#allocation8 + $0x6b0] sm:$0xff]
    %v1125 = vld [vmem:[#allocation8 + $0x6b8] sm:$0xff]
    %v1126 = vld [vmem:[#allocation8 + $0x6c0] sm:$0xff]
    %v1127 = vld [vmem:[#allocation8 + $0x6c8] sm:$0xff]
    %v1128 = vld [vmem:[#allocation8 + $0x6d0] sm:$0xff]
    %v1129 = vld [vmem:[#allocation8 + $0x6d8] sm:$0xff]
    %v1130 = vld [vmem:[#allocation8 + $0x6e0] sm:$0xff]
    %v1131 = vld [vmem:[#allocation8 + $0x6e8] sm:$0xff]
    %v1132 = vld [vmem:[#allocation8 + $0x6f0] sm:$0xff]
    %v1133 = vld [vmem:[#allocation8 + $0x6f8] sm:$0xff]
    %v1134 = vld [vmem:[#allocation8 + $0x700] sm:$0xff]
    %v1135 = vld [vmem:[#allocation8 + $0x708] sm:$0xff]
    %v1136 = vld [vmem:[#allocation8 + $0x710] sm:$0xff]
    %v1137 = vld [vmem:[#allocation8 + $0x718] sm:$0xff]
    %v1138 = vld [vmem:[#allocation8 + $0x720] sm:$0xff]
    %v1139 = vld [vmem:[#allocation8 + $0x728] sm:$0xff]
    %v1140 = vld [vmem:[#allocation8 + $0x730] sm:$0xff]
    %v1141 = vld [vmem:[#allocation8 + $0x738] sm:$0xff]
    %v1142 = vld [vmem:[#allocation8 + $0x740] sm:$0xff]
    %v1143 = vld [vmem:[#allocation8 + $0x748] sm:$0xff]
    %v1144 = vld [vmem:[#allocation8 + $0x750] sm:$0xff]
    %v1145 = vld [vmem:[#allocation8 + $0x758] sm:$0xff]
    %v1146 = vld [vmem:[#allocation8 + $0x760] sm:$0xff]
    %v1147 = vld [vmem:[#allocation8 + $0x768] sm:$0xff]
    %v1148 = vld [vmem:[#allocation8 + $0x770] sm:$0xff]
    %v1149 = vld [vmem:[#allocation8 + $0x778] sm:$0xff]
    %v1150 = vld [vmem:[#allocation8 + $0x780] sm:$0xff]
    %v1151 = vld [vmem:[#allocation8 + $0x788] sm:$0xff]
    %v1152 = vld [vmem:[#allocation8 + $0x790] sm:$0xff]
    %v1153 = vld [vmem:[#allocation8 + $0x798] sm:$0xff]
    %v1154 = vld [vmem:[#allocation8 + $0x7a0] sm:$0xff]
    %v1155 = vld [vmem:[#allocation8 + $0x7a8] sm:$0xff]
    %v1156 = vld [vmem:[#allocation8 + $0x7b0] sm:$0xff]
    %v1157 = vld [vmem:[#allocation8 + $0x7b8] sm:$0xff]
    %v1158 = vld [vmem:[#allocation8 + $0x7c0] sm:$0xff]
    %v1159 = vld [vmem:[#allocation8 + $0x7c8] sm:$0xff]
    %v1160 = vld [vmem:[#allocation8 + $0x7d0] sm:$0xff]
    %v1161 = vld [vmem:[#allocation8 + $0x7d8] sm:$0xff]
    %v1162 = vld [vmem:[#allocation8 + $0x7e0] sm:$0xff]
    %v1163 = vld [vmem:[#allocation8 + $0x7e8] sm:$0xff]
    %v1164 = vld [vmem:[#allocation8 + $0x7f0] sm:$0xff]
    %v1165 = vld [vmem:[#allocation8 + $0x7f8] sm:$0xff]
    %v1166 = vld [vmem:[#allocation8 + $0x800] sm:$0xff]
    %v1167 = vld [vmem:[#allocation8 + $0x808] sm:$0xff]
    %v1168 = vld [vmem:[#allocation8 + $0x810] sm:$0xff]
    %v1169 = vld [vmem:[#allocation8 + $0x818] sm:$0xff]
    %v1170 = vld [vmem:[#allocation8 + $0x820] sm:$0xff]
    %v1171 = vld [vmem:[#allocation8 + $0x828] sm:$0xff]
    %v1172 = vld [vmem:[#allocation8 + $0x830] sm:$0xff]
    %v1173 = vld [vmem:[#allocation8 + $0x838] sm:$0xff]
    %v1174 = vld [vmem:[#allocation8 + $0x840] sm:$0xff]
    %v1175 = vld [vmem:[#allocation8 + $0x848] sm:$0xff]
    %v1176 = vld [vmem:[#allocation8 + $0x850] sm:$0xff]
    %v1177 = vld [vmem:[#allocation8 + $0x858] sm:$0xff]
    %v1178 = vld [vmem:[#allocation8 + $0x860] sm:$0xff]
    %v1179 = vld [vmem:[#allocation8 + $0x868] sm:$0xff]
    %v1180 = vld [vmem:[#allocation8 + $0x870] sm:$0xff]
    %v1181 = vld [vmem:[#allocation8 + $0x878] sm:$0xff]
    %v1182 = vld [vmem:[#allocation8 + $0x880] sm:$0xff]
    %v1183 = vld [vmem:[#allocation8 + $0x888] sm:$0xff]
    %v1184 = vld [vmem:[#allocation8 + $0x890] sm:$0xff]
    %v1185 = vld [vmem:[#allocation8 + $0x898] sm:$0xff]
    %v1186 = vld [vmem:[#allocation8 + $0x8a0] sm:$0xff]
    %v1187 = vld [vmem:[#allocation8 + $0x8a8] sm:$0xff]
    %v1188 = vld [vmem:[#allocation8 + $0x8b0] sm:$0xff]
    %v1189 = vld [vmem:[#allocation8 + $0x8b8] sm:$0xff]
    %v1190 = vld [vmem:[#allocation8 + $0x8c0] sm:$0xff]
    %v1191 = vld [vmem:[#allocation8 + $0x8c8] sm:$0xff]
    %v1192 = vld [vmem:[#allocation8 + $0x8d0] sm:$0xff]
    %v1193 = vld [vmem:[#allocation8 + $0x8d8] sm:$0xff]
    %v1194 = vld [vmem:[#allocation8 + $0x8e0] sm:$0xff]
    %v1195 = vld [vmem:[#allocation8 + $0x8e8] sm:$0xff]
    %v1196 = vld [vmem:[#allocation8 + $0x8f0] sm:$0xff]
    %v1197 = vld [vmem:[#allocation8 + $0x8f8] sm:$0xff]
    %v1198 = vld [vmem:[#allocation8 + $0x900] sm:$0xff]
    %v1199 = vld [vmem:[#allocation8 + $0x908] sm:$0xff]
    %v1200 = vld [vmem:[#allocation8 + $0x910] sm:$0xff]
    %v1201 = vld [vmem:[#allocation8 + $0x918] sm:$0xff]
    %v1202 = vld [vmem:[#allocation8 + $0x920] sm:$0xff]
    %v1203 = vld [vmem:[#allocation8 + $0x928] sm:$0xff]
    %v1204 = vld [vmem:[#allocation8 + $0x930] sm:$0xff]
    %v1205 = vld [vmem:[#allocation8 + $0x938] sm:$0xff]
    %v1206 = vld [vmem:[#allocation8 + $0x940] sm:$0xff]
    %v1207 = vld [vmem:[#allocation8 + $0x948] sm:$0xff]
    %v1208 = vld [vmem:[#allocation8 + $0x950] sm:$0xff]
    %v1209 = vld [vmem:[#allocation8 + $0x958] sm:$0xff]
    %v1210 = vld [vmem:[#allocation8 + $0x960] sm:$0xff]
    %v1211 = vld [vmem:[#allocation8 + $0x968] sm:$0xff]
    %v1212 = vld [vmem:[#allocation8 + $0x970] sm:$0xff]
    %v1213 = vld [vmem:[#allocation8 + $0x978] sm:$0xff]
    %v1214 = vld [vmem:[#allocation8 + $0x980] sm:$0xff]
    %v1215 = vld [vmem:[#allocation8 + $0x988] sm:$0xff]
    %v1216 = vld [vmem:[#allocation8 + $0x990] sm:$0xff]
    %v1217 = vld [vmem:[#allocation8 + $0x998] sm:$0xff]
    %v1218 = vld [vmem:[#allocation8 + $0x9a0] sm:$0xff]
    %v1219 = vld [vmem:[#allocation8 + $0x9a8] sm:$0xff]
    %v1220 = vld [vmem:[#allocation8 + $0x9b0] sm:$0xff]
    %v1221 = vld [vmem:[#allocation8 + $0x9b8] sm:$0xff]
    %v1222 = vld [vmem:[#allocation8 + $0x9c0] sm:$0xff]
    %v1223 = vld [vmem:[#allocation8 + $0x9c8] sm:$0xff]
    %v1224 = vld [vmem:[#allocation8 + $0x9d0] sm:$0xff]
    %v1225 = vld [vmem:[#allocation8 + $0x9d8] sm:$0xff]
    %v1226 = vld [vmem:[#allocation8 + $0x9e0] sm:$0xff]
    %v1227 = vld [vmem:[#allocation8 + $0x9e8] sm:$0xff]
    %v1228 = vld [vmem:[#allocation8 + $0x9f0] sm:$0xff]
    %v1229 = vld [vmem:[#allocation8 + $0x9f8] sm:$0xff]
    %v1230 = vld [vmem:[#allocation8 + $0xa00] sm:$0xff]
    %v1231 = vld [vmem:[#allocation8 + $0xa08] sm:$0xff]
    %v1232 = vld [vmem:[#allocation8 + $0xa10] sm:$0xff]
    %v1233 = vld [vmem:[#allocation8 + $0xa18] sm:$0xff]
    %v1234 = vld [vmem:[#allocation8 + $0xa20] sm:$0xff]
    %v1235 = vld [vmem:[#allocation8 + $0xa28] sm:$0xff]
    %v1236 = vld [vmem:[#allocation8 + $0xa30] sm:$0xff]
    %v1237 = vld [vmem:[#allocation8 + $0xa38] sm:$0xff]
    %v1238 = vld [vmem:[#allocation8 + $0xa40] sm:$0xff]
    %v1239 = vld [vmem:[#allocation8 + $0xa48] sm:$0xff]
    %v1240 = vld [vmem:[#allocation8 + $0xa50] sm:$0xff]
    %v1241 = vld [vmem:[#allocation8 + $0xa58] sm:$0xff]
    %v1242 = vld [vmem:[#allocation8 + $0xa60] sm:$0xff]
    %v1243 = vld [vmem:[#allocation8 + $0xa68] sm:$0xff]
    %v1244 = vld [vmem:[#allocation8 + $0xa70] sm:$0xff]
    %v1245 = vld [vmem:[#allocation8 + $0xa78] sm:$0xff]
    %v1246 = vld [vmem:[#allocation8 + $0xa80] sm:$0xff]
    %v1247 = vld [vmem:[#allocation8 + $0xa88] sm:$0xff]
    %v1248 = vld [vmem:[#allocation8 + $0xa90] sm:$0xff]
    %v1249 = vld [vmem:[#allocation8 + $0xa98] sm:$0xff]
    %v1250 = vld [vmem:[#allocation8 + $0xaa0] sm:$0xff]
    %v1251 = vld [vmem:[#allocation8 + $0xaa8] sm:$0xff]
    %v1252 = vld [vmem:[#allocation8 + $0xab0] sm:$0xff]
    %v1253 = vld [vmem:[#allocation8 + $0xab8] sm:$0xff]
    %v1254 = vld [vmem:[#allocation8 + $0xac0] sm:$0xff]
    %v1255 = vld [vmem:[#allocation8 + $0xac8] sm:$0xff]
    %v1256 = vld [vmem:[#allocation8 + $0xad0] sm:$0xff]
    %v1257 = vld [vmem:[#allocation8 + $0xad8] sm:$0xff]
    %v1258 = vld [vmem:[#allocation8 + $0xae0] sm:$0xff]
    %v1259 = vld [vmem:[#allocation8 + $0xae8] sm:$0xff]
    %v1260 = vld [vmem:[#allocation8 + $0xaf0] sm:$0xff]
    %v1261 = vld [vmem:[#allocation8 + $0xaf8] sm:$0xff]
    %v1262 = vld [vmem:[#allocation8 + $0xb00] sm:$0xff]
    %v1263 = vld [vmem:[#allocation8 + $0xb08] sm:$0xff]
    %v1264 = vld [vmem:[#allocation8 + $0xb10] sm:$0xff]
    %v1265 = vld [vmem:[#allocation8 + $0xb18] sm:$0xff]
    %v1266 = vld [vmem:[#allocation8 + $0xb20] sm:$0xff]
    %v1267 = vld [vmem:[#allocation8 + $0xb28] sm:$0xff]
    %v1268 = vld [vmem:[#allocation8 + $0xb30] sm:$0xff]
    %v1269 = vld [vmem:[#allocation8 + $0xb38] sm:$0xff]
    %v1270 = vld [vmem:[#allocation8 + $0xb40] sm:$0xff]
    %v1271 = vld [vmem:[#allocation8 + $0xb48] sm:$0xff]
    %v1272 = vld [vmem:[#allocation8 + $0xb50] sm:$0xff]
    %v1273 = vld [vmem:[#allocation8 + $0xb58] sm:$0xff]
    %v1274 = vld [vmem:[#allocation8 + $0xb60] sm:$0xff]
    %v1275 = vld [vmem:[#allocation8 + $0xb68] sm:$0xff]
    %v1276 = vld [vmem:[#allocation8 + $0xb70] sm:$0xff]
    %v1277 = vld [vmem:[#allocation8 + $0xb78] sm:$0xff]
    %v1278 = vld [vmem:[#allocation8 + $0xb80] sm:$0xff]
    %v1279 = vld [vmem:[#allocation8 + $0xb88] sm:$0xff]
    %v1280 = vld [vmem:[#allocation8 + $0xb90] sm:$0xff]
    %v1281 = vld [vmem:[#allocation8 + $0xb98] sm:$0xff]
    %v1282 = vld [vmem:[#allocation8 + $0xba0] sm:$0xff]
    %v1283 = vld [vmem:[#allocation8 + $0xba8] sm:$0xff]
    %v1284 = vld [vmem:[#allocation8 + $0xbb0] sm:$0xff]
    %v1285 = vld [vmem:[#allocation8 + $0xbb8] sm:$0xff]
    %v1286 = vld [vmem:[#allocation8 + $0xbc0] sm:$0xff]
    %v1287 = vld [vmem:[#allocation8 + $0xbc8] sm:$0xff]
    %v1288 = vld [vmem:[#allocation8 + $0xbd0] sm:$0xff]
    %v1289 = vld [vmem:[#allocation8 + $0xbd8] sm:$0xff]
    %v1290 = vld [vmem:[#allocation8 + $0xbe0] sm:$0xff]
    %v1291 = vld [vmem:[#allocation8 + $0xbe8] sm:$0xff]
    %v1292 = vld [vmem:[#allocation8 + $0xbf0] sm:$0xff]
    %v1293 = vld [vmem:[#allocation8 + $0xbf8] sm:$0xff]
    %v1678 = vunpack.c.l.b16 %v910
    %v1679 = vunpack.c.h.b16 %v910
    %v1680 = vunpack.c.l.b16 %v911
    %v1681 = vunpack.c.h.b16 %v911
    %v1682 = vunpack.c.l.b16 %v912
    %v1683 = vunpack.c.h.b16 %v912
    %v1684 = vunpack.c.l.b16 %v913
    %v1685 = vunpack.c.h.b16 %v913
    %v1686 = vunpack.c.l.b16 %v914
    %v1687 = vunpack.c.h.b16 %v914
    %v1688 = vunpack.c.l.b16 %v915
    %v1689 = vunpack.c.h.b16 %v915
    %v1690 = vunpack.c.l.b16 %v916
    %v1691 = vunpack.c.h.b16 %v916
    %v1692 = vunpack.c.l.b16 %v917
    %v1693 = vunpack.c.h.b16 %v917
    %v1694 = vunpack.c.l.b16 %v918
    %v1695 = vunpack.c.h.b16 %v918
    %v1696 = vunpack.c.l.b16 %v919
    %v1697 = vunpack.c.h.b16 %v919
    %v1698 = vunpack.c.l.b16 %v920
    %v1699 = vunpack.c.h.b16 %v920
    %v1700 = vunpack.c.l.b16 %v921
    %v1701 = vunpack.c.h.b16 %v921
    %v1702 = vunpack.c.l.b16 %v922
    %v1703 = vunpack.c.h.b16 %v922
    %v1704 = vunpack.c.l.b16 %v923
    %v1705 = vunpack.c.h.b16 %v923
    %v1706 = vunpack.c.l.b16 %v924
    %v1707 = vunpack.c.h.b16 %v924
    %v1708 = vunpack.c.l.b16 %v925
    %v1709 = vunpack.c.h.b16 %v925
    %v1710 = vunpack.c.l.b16 %v926
    %v1711 = vunpack.c.h.b16 %v926
    %v1712 = vunpack.c.l.b16 %v927
    %v1713 = vunpack.c.h.b16 %v927
    %v1714 = vunpack.c.l.b16 %v928
    %v1715 = vunpack.c.h.b16 %v928
    %v1716 = vunpack.c.l.b16 %v929
    %v1717 = vunpack.c.h.b16 %v929
    %v1718 = vunpack.c.l.b16 %v930
    %v1719 = vunpack.c.h.b16 %v930
    %v1720 = vunpack.c.l.b16 %v931
    %v1721 = vunpack.c.h.b16 %v931
    %v1722 = vunpack.c.l.b16 %v932
    %v1723 = vunpack.c.h.b16 %v932
    %v1724 = vunpack.c.l.b16 %v933
    %v1725 = vunpack.c.h.b16 %v933
    %v1726 = vunpack.c.l.b16 %v934
    %v1727 = vunpack.c.h.b16 %v934
    %v1728 = vunpack.c.l.b16 %v935
    %v1729 = vunpack.c.h.b16 %v935
    %v1730 = vunpack.c.l.b16 %v936
    %v1731 = vunpack.c.h.b16 %v936
    %v1732 = vunpack.c.l.b16 %v937
    %v1733 = vunpack.c.h.b16 %v937
    %v1734 = vunpack.c.l.b16 %v938
    %v1735 = vunpack.c.h.b16 %v938
    %v1736 = vunpack.c.l.b16 %v939
    %v1737 = vunpack.c.h.b16 %v939
    %v1738 = vunpack.c.l.b16 %v940
    %v1739 = vunpack.c.h.b16 %v940
    %v1740 = vunpack.c.l.b16 %v941
    %v1741 = vunpack.c.h.b16 %v941
    %v1742 = vunpack.c.l.b16 %v942
    %v1743 = vunpack.c.h.b16 %v942
    %v1744 = vunpack.c.l.b16 %v943
    %v1745 = vunpack.c.h.b16 %v943
    %v1746 = vunpack.c.l.b16 %v944
    %v1747 = vunpack.c.h.b16 %v944
    %v1748 = vunpack.c.l.b16 %v945
    %v1749 = vunpack.c.h.b16 %v945
    %v1750 = vunpack.c.l.b16 %v946
    %v1751 = vunpack.c.h.b16 %v946
    %v1752 = vunpack.c.l.b16 %v947
    %v1753 = vunpack.c.h.b16 %v947
    %v1754 = vunpack.c.l.b16 %v948
    %v1755 = vunpack.c.h.b16 %v948
    %v1756 = vunpack.c.l.b16 %v949
    %v1757 = vunpack.c.h.b16 %v949
    %v1758 = vunpack.c.l.b16 %v950
    %v1759 = vunpack.c.h.b16 %v950
    %v1760 = vunpack.c.l.b16 %v951
    %v1761 = vunpack.c.h.b16 %v951
    %v1762 = vunpack.c.l.b16 %v952
    %v1763 = vunpack.c.h.b16 %v952
    %v1764 = vunpack.c.l.b16 %v953
    %v1765 = vunpack.c.h.b16 %v953
    %v1766 = vunpack.c.l.b16 %v954
    %v1767 = vunpack.c.h.b16 %v954
    %v1768 = vunpack.c.l.b16 %v955
    %v1769 = vunpack.c.h.b16 %v955
    %v1770 = vunpack.c.l.b16 %v956
    %v1771 = vunpack.c.h.b16 %v956
    %v1772 = vunpack.c.l.b16 %v957
    %v1773 = vunpack.c.h.b16 %v957
    %v1774 = vunpack.c.l.b16 %v958
    %v1775 = vunpack.c.h.b16 %v958
    %v1776 = vunpack.c.l.b16 %v959
    %v1777 = vunpack.c.h.b16 %v959
    %v1778 = vunpack.c.l.b16 %v960
    %v1779 = vunpack.c.h.b16 %v960
    %v1780 = vunpack.c.l.b16 %v961
    %v1781 = vunpack.c.h.b16 %v961
    %v1782 = vunpack.c.l.b16 %v962
    %v1783 = vunpack.c.h.b16 %v962
    %v1784 = vunpack.c.l.b16 %v963
    %v1785 = vunpack.c.h.b16 %v963
    %v1786 = vunpack.c.l.b16 %v964
    %v1787 = vunpack.c.h.b16 %v964
    %v1788 = vunpack.c.l.b16 %v965
    %v1789 = vunpack.c.h.b16 %v965
    %v1790 = vunpack.c.l.b16 %v966
    %v1791 = vunpack.c.h.b16 %v966
    %v1792 = vunpack.c.l.b16 %v967
    %v1793 = vunpack.c.h.b16 %v967
    %v1794 = vunpack.c.l.b16 %v968
    %v1795 = vunpack.c.h.b16 %v968
    %v1796 = vunpack.c.l.b16 %v969
    %v1797 = vunpack.c.h.b16 %v969
    %v1798 = vunpack.c.l.b16 %v970
    %v1799 = vunpack.c.h.b16 %v970
    %v1800 = vunpack.c.l.b16 %v971
    %v1801 = vunpack.c.h.b16 %v971
    %v1802 = vunpack.c.l.b16 %v972
    %v1803 = vunpack.c.h.b16 %v972
    %v1804 = vunpack.c.l.b16 %v973
    %v1805 = vunpack.c.h.b16 %v973
    %v1806 = vunpack.c.l.b16 %v974
    %v1807 = vunpack.c.h.b16 %v974
    %v1808 = vunpack.c.l.b16 %v975
    %v1809 = vunpack.c.h.b16 %v975
    %v1810 = vunpack.c.l.b16 %v976
    %v1811 = vunpack.c.h.b16 %v976
    %v1812 = vunpack.c.l.b16 %v977
    %v1813 = vunpack.c.h.b16 %v977
    %v1814 = vunpack.c.l.b16 %v978
    %v1815 = vunpack.c.h.b16 %v978
    %v1816 = vunpack.c.l.b16 %v979
    %v1817 = vunpack.c.h.b16 %v979
    %v1818 = vunpack.c.l.b16 %v980
    %v1819 = vunpack.c.h.b16 %v980
    %v1820 = vunpack.c.l.b16 %v981
    %v1821 = vunpack.c.h.b16 %v981
    %v1822 = vunpack.c.l.b16 %v982
    %v1823 = vunpack.c.h.b16 %v982
    %v1824 = vunpack.c.l.b16 %v983
    %v1825 = vunpack.c.h.b16 %v983
    %v1826 = vunpack.c.l.b16 %v984
    %v1827 = vunpack.c.h.b16 %v984
    %v1828 = vunpack.c.l.b16 %v985
    %v1829 = vunpack.c.h.b16 %v985
    %v1830 = vunpack.c.l.b16 %v986
    %v1831 = vunpack.c.h.b16 %v986
    %v1832 = vunpack.c.l.b16 %v987
    %v1833 = vunpack.c.h.b16 %v987
    %v1834 = vunpack.c.l.b16 %v988
    %v1835 = vunpack.c.h.b16 %v988
    %v1836 = vunpack.c.l.b16 %v989
    %v1837 = vunpack.c.h.b16 %v989
    %v1838 = vunpack.c.l.b16 %v990
    %v1839 = vunpack.c.h.b16 %v990
    %v1840 = vunpack.c.l.b16 %v991
    %v1841 = vunpack.c.h.b16 %v991
    %v1842 = vunpack.c.l.b16 %v992
    %v1843 = vunpack.c.h.b16 %v992
    %v1844 = vunpack.c.l.b16 %v993
    %v1845 = vunpack.c.h.b16 %v993
    %v1846 = vunpack.c.l.b16 %v994
    %v1847 = vunpack.c.h.b16 %v994
    %v1848 = vunpack.c.l.b16 %v995
    %v1849 = vunpack.c.h.b16 %v995
    %v1850 = vunpack.c.l.b16 %v996
    %v1851 = vunpack.c.h.b16 %v996
    %v1852 = vunpack.c.l.b16 %v997
    %v1853 = vunpack.c.h.b16 %v997
    %v1854 = vunpack.c.l.b16 %v998
    %v1855 = vunpack.c.h.b16 %v998
    %v1856 = vunpack.c.l.b16 %v999
    %v1857 = vunpack.c.h.b16 %v999
    %v1858 = vunpack.c.l.b16 %v1000
    %v1859 = vunpack.c.h.b16 %v1000
    %v1860 = vunpack.c.l.b16 %v1001
    %v1861 = vunpack.c.h.b16 %v1001
    %v1862 = vunpack.c.l.b16 %v1002
    %v1863 = vunpack.c.h.b16 %v1002
    %v1864 = vunpack.c.l.b16 %v1003
    %v1865 = vunpack.c.h.b16 %v1003
    %v1866 = vunpack.c.l.b16 %v1004
    %v1867 = vunpack.c.h.b16 %v1004
    %v1868 = vunpack.c.l.b16 %v1005
    %v1869 = vunpack.c.h.b16 %v1005
    %v1870 = vunpack.c.l.b16 %v1006
    %v1871 = vunpack.c.h.b16 %v1006
    %v1872 = vunpack.c.l.b16 %v1007
    %v1873 = vunpack.c.h.b16 %v1007
    %v1874 = vunpack.c.l.b16 %v1008
    %v1875 = vunpack.c.h.b16 %v1008
    %v1876 = vunpack.c.l.b16 %v1009
    %v1877 = vunpack.c.h.b16 %v1009
    %v1878 = vunpack.c.l.b16 %v1010
    %v1879 = vunpack.c.h.b16 %v1010
    %v1880 = vunpack.c.l.b16 %v1011
    %v1881 = vunpack.c.h.b16 %v1011
    %v1882 = vunpack.c.l.b16 %v1012
    %v1883 = vunpack.c.h.b16 %v1012
    %v1884 = vunpack.c.l.b16 %v1013
    %v1885 = vunpack.c.h.b16 %v1013
    %v1886 = vunpack.c.l.b16 %v1014
    %v1887 = vunpack.c.h.b16 %v1014
    %v1888 = vunpack.c.l.b16 %v1015
    %v1889 = vunpack.c.h.b16 %v1015
    %v1890 = vunpack.c.l.b16 %v1016
    %v1891 = vunpack.c.h.b16 %v1016
    %v1892 = vunpack.c.l.b16 %v1017
    %v1893 = vunpack.c.h.b16 %v1017
    %v1894 = vunpack.c.l.b16 %v1018
    %v1895 = vunpack.c.h.b16 %v1018
    %v1896 = vunpack.c.l.b16 %v1019
    %v1897 = vunpack.c.h.b16 %v1019
    %v1898 = vunpack.c.l.b16 %v1020
    %v1899 = vunpack.c.h.b16 %v1020
    %v1900 = vunpack.c.l.b16 %v1021
    %v1901 = vunpack.c.h.b16 %v1021
    %v1902 = vunpack.c.l.b16 %v1022
    %v1903 = vunpack.c.h.b16 %v1022
    %v1904 = vunpack.c.l.b16 %v1023
    %v1905 = vunpack.c.h.b16 %v1023
    %v1906 = vunpack.c.l.b16 %v1024
    %v1907 = vunpack.c.h.b16 %v1024
    %v1908 = vunpack.c.l.b16 %v1025
    %v1909 = vunpack.c.h.b16 %v1025
    %v1910 = vunpack.c.l.b16 %v1026
    %v1911 = vunpack.c.h.b16 %v1026
    %v1912 = vunpack.c.l.b16 %v1027
    %v1913 = vunpack.c.h.b16 %v1027
    %v1914 = vunpack.c.l.b16 %v1028
    %v1915 = vunpack.c.h.b16 %v1028
    %v1916 = vunpack.c.l.b16 %v1029
    %v1917 = vunpack.c.h.b16 %v1029
    %v1918 = vunpack.c.l.b16 %v1030
    %v1919 = vunpack.c.h.b16 %v1030
    %v1920 = vunpack.c.l.b16 %v1031
    %v1921 = vunpack.c.h.b16 %v1031
    %v1922 = vunpack.c.l.b16 %v1032
    %v1923 = vunpack.c.h.b16 %v1032
    %v1924 = vunpack.c.l.b16 %v1033
    %v1925 = vunpack.c.h.b16 %v1033
    %v1926 = vunpack.c.l.b16 %v1034
    %v1927 = vunpack.c.h.b16 %v1034
    %v1928 = vunpack.c.l.b16 %v1035
    %v1929 = vunpack.c.h.b16 %v1035
    %v1930 = vunpack.c.l.b16 %v1036
    %v1931 = vunpack.c.h.b16 %v1036
    %v1932 = vunpack.c.l.b16 %v1037
    %v1933 = vunpack.c.h.b16 %v1037
    %v1934 = vunpack.c.l.b16 %v1038
    %v1935 = vunpack.c.h.b16 %v1038
    %v1936 = vunpack.c.l.b16 %v1039
    %v1937 = vunpack.c.h.b16 %v1039
    %v1938 = vunpack.c.l.b16 %v1040
    %v1939 = vunpack.c.h.b16 %v1040
    %v1940 = vunpack.c.l.b16 %v1041
    %v1941 = vunpack.c.h.b16 %v1041
    %v1942 = vunpack.c.l.b16 %v1042
    %v1943 = vunpack.c.h.b16 %v1042
    %v1944 = vunpack.c.l.b16 %v1043
    %v1945 = vunpack.c.h.b16 %v1043
    %v1946 = vunpack.c.l.b16 %v1044
    %v1947 = vunpack.c.h.b16 %v1044
    %v1948 = vunpack.c.l.b16 %v1045
    %v1949 = vunpack.c.h.b16 %v1045
    %v1950 = vunpack.c.l.b16 %v1046
    %v1951 = vunpack.c.h.b16 %v1046
    %v1952 = vunpack.c.l.b16 %v1047
    %v1953 = vunpack.c.h.b16 %v1047
    %v1954 = vunpack.c.l.b16 %v1048
    %v1955 = vunpack.c.h.b16 %v1048
    %v1956 = vunpack.c.l.b16 %v1049
    %v1957 = vunpack.c.h.b16 %v1049
    %v1958 = vunpack.c.l.b16 %v1050
    %v1959 = vunpack.c.h.b16 %v1050
    %v1960 = vunpack.c.l.b16 %v1051
    %v1961 = vunpack.c.h.b16 %v1051
    %v1962 = vunpack.c.l.b16 %v1052
    %v1963 = vunpack.c.h.b16 %v1052
    %v1964 = vunpack.c.l.b16 %v1053
    %v1965 = vunpack.c.h.b16 %v1053
    %v1966 = vunpack.c.l.b16 %v1054
    %v1967 = vunpack.c.h.b16 %v1054
    %v1968 = vunpack.c.l.b16 %v1055
    %v1969 = vunpack.c.h.b16 %v1055
    %v1970 = vunpack.c.l.b16 %v1056
    %v1971 = vunpack.c.h.b16 %v1056
    %v1972 = vunpack.c.l.b16 %v1057
    %v1973 = vunpack.c.h.b16 %v1057
    %v1974 = vunpack.c.l.b16 %v1058
    %v1975 = vunpack.c.h.b16 %v1058
    %v1976 = vunpack.c.l.b16 %v1059
    %v1977 = vunpack.c.h.b16 %v1059
    %v1978 = vunpack.c.l.b16 %v1060
    %v1979 = vunpack.c.h.b16 %v1060
    %v1980 = vunpack.c.l.b16 %v1061
    %v1981 = vunpack.c.h.b16 %v1061
    %v1982 = vunpack.c.l.b16 %v1062
    %v1983 = vunpack.c.h.b16 %v1062
    %v1984 = vunpack.c.l.b16 %v1063
    %v1985 = vunpack.c.h.b16 %v1063
    %v1986 = vunpack.c.l.b16 %v1064
    %v1987 = vunpack.c.h.b16 %v1064
    %v1988 = vunpack.c.l.b16 %v1065
    %v1989 = vunpack.c.h.b16 %v1065
    %v1990 = vunpack.c.l.b16 %v1066
    %v1991 = vunpack.c.h.b16 %v1066
    %v1992 = vunpack.c.l.b16 %v1067
    %v1993 = vunpack.c.h.b16 %v1067
    %v1994 = vunpack.c.l.b16 %v1068
    %v1995 = vunpack.c.h.b16 %v1068
    %v1996 = vunpack.c.l.b16 %v1069
    %v1997 = vunpack.c.h.b16 %v1069
    %v1998 = vunpack.c.l.b16 %v1070
    %v1999 = vunpack.c.h.b16 %v1070
    %v2000 = vunpack.c.l.b16 %v1071
    %v2001 = vunpack.c.h.b16 %v1071
    %v2002 = vunpack.c.l.b16 %v1072
    %v2003 = vunpack.c.h.b16 %v1072
    %v2004 = vunpack.c.l.b16 %v1073
    %v2005 = vunpack.c.h.b16 %v1073
    %v2006 = vunpack.c.l.b16 %v1074
    %v2007 = vunpack.c.h.b16 %v1074
    %v2008 = vunpack.c.l.b16 %v1075
    %v2009 = vunpack.c.h.b16 %v1075
    %v2010 = vunpack.c.l.b16 %v1076
    %v2011 = vunpack.c.h.b16 %v1076
    %v2012 = vunpack.c.l.b16 %v1077
    %v2013 = vunpack.c.h.b16 %v1077
    %v2014 = vunpack.c.l.b16 %v1078
    %v2015 = vunpack.c.h.b16 %v1078
    %v2016 = vunpack.c.l.b16 %v1079
    %v2017 = vunpack.c.h.b16 %v1079
    %v2018 = vunpack.c.l.b16 %v1080
    %v2019 = vunpack.c.h.b16 %v1080
    %v2020 = vunpack.c.l.b16 %v1081
    %v2021 = vunpack.c.h.b16 %v1081
    %v2022 = vunpack.c.l.b16 %v1082
    %v2023 = vunpack.c.h.b16 %v1082
    %v2024 = vunpack.c.l.b16 %v1083
    %v2025 = vunpack.c.h.b16 %v1083
    %v2026 = vunpack.c.l.b16 %v1084
    %v2027 = vunpack.c.h.b16 %v1084
    %v2028 = vunpack.c.l.b16 %v1085
    %v2029 = vunpack.c.h.b16 %v1085
    %v2030 = vunpack.c.l.b16 %v1086
    %v2031 = vunpack.c.h.b16 %v1086
    %v2032 = vunpack.c.l.b16 %v1087
    %v2033 = vunpack.c.h.b16 %v1087
    %v2034 = vunpack.c.l.b16 %v1088
    %v2035 = vunpack.c.h.b16 %v1088
    %v2036 = vunpack.c.l.b16 %v1089
    %v2037 = vunpack.c.h.b16 %v1089
    %v2038 = vunpack.c.l.b16 %v1090
    %v2039 = vunpack.c.h.b16 %v1090
    %v2040 = vunpack.c.l.b16 %v1091
    %v2041 = vunpack.c.h.b16 %v1091
    %v2042 = vunpack.c.l.b16 %v1092
    %v2043 = vunpack.c.h.b16 %v1092
    %v2044 = vunpack.c.l.b16 %v1093
    %v2045 = vunpack.c.h.b16 %v1093
    %v2046 = vunpack.c.l.b16 %v1094
    %v2047 = vunpack.c.h.b16 %v1094
    %v2048 = vunpack.c.l.b16 %v1095
    %v2049 = vunpack.c.h.b16 %v1095
    %v2050 = vunpack.c.l.b16 %v1096
    %v2051 = vunpack.c.h.b16 %v1096
    %v2052 = vunpack.c.l.b16 %v1097
    %v2053 = vunpack.c.h.b16 %v1097
    %v2054 = vunpack.c.l.b16 %v1098
    %v2055 = vunpack.c.h.b16 %v1098
    %v2056 = vunpack.c.l.b16 %v1099
    %v2057 = vunpack.c.h.b16 %v1099
    %v2058 = vunpack.c.l.b16 %v1100
    %v2059 = vunpack.c.h.b16 %v1100
    %v2060 = vunpack.c.l.b16 %v1101
    %v2061 = vunpack.c.h.b16 %v1101
    %v2062 = vunpack.c.l.b16 %v1102
    %v2063 = vunpack.c.h.b16 %v1102
    %v2064 = vunpack.c.l.b16 %v1103
    %v2065 = vunpack.c.h.b16 %v1103
    %v2066 = vunpack.c.l.b16 %v1104
    %v2067 = vunpack.c.h.b16 %v1104
    %v2068 = vunpack.c.l.b16 %v1105
    %v2069 = vunpack.c.h.b16 %v1105
    %v2070 = vunpack.c.l.b16 %v1106
    %v2071 = vunpack.c.h.b16 %v1106
    %v2072 = vunpack.c.l.b16 %v1107
    %v2073 = vunpack.c.h.b16 %v1107
    %v2074 = vunpack.c.l.b16 %v1108
    %v2075 = vunpack.c.h.b16 %v1108
    %v2076 = vunpack.c.l.b16 %v1109
    %v2077 = vunpack.c.h.b16 %v1109
    %v2078 = vunpack.c.l.b16 %v1110
    %v2079 = vunpack.c.h.b16 %v1110
    %v2080 = vunpack.c.l.b16 %v1111
    %v2081 = vunpack.c.h.b16 %v1111
    %v2082 = vunpack.c.l.b16 %v1112
    %v2083 = vunpack.c.h.b16 %v1112
    %v2084 = vunpack.c.l.b16 %v1113
    %v2085 = vunpack.c.h.b16 %v1113
    %v2086 = vunpack.c.l.b16 %v1114
    %v2087 = vunpack.c.h.b16 %v1114
    %v2088 = vunpack.c.l.b16 %v1115
    %v2089 = vunpack.c.h.b16 %v1115
    %v2090 = vunpack.c.l.b16 %v1116
    %v2091 = vunpack.c.h.b16 %v1116
    %v2092 = vunpack.c.l.b16 %v1117
    %v2093 = vunpack.c.h.b16 %v1117
    %v2094 = vunpack.c.l.b16 %v1118
    %v2095 = vunpack.c.h.b16 %v1118
    %v2096 = vunpack.c.l.b16 %v1119
    %v2097 = vunpack.c.h.b16 %v1119
    %v2098 = vunpack.c.l.b16 %v1120
    %v2099 = vunpack.c.h.b16 %v1120
    %v2100 = vunpack.c.l.b16 %v1121
    %v2101 = vunpack.c.h.b16 %v1121
    %v2102 = vunpack.c.l.b16 %v1122
    %v2103 = vunpack.c.h.b16 %v1122
    %v2104 = vunpack.c.l.b16 %v1123
    %v2105 = vunpack.c.h.b16 %v1123
    %v2106 = vunpack.c.l.b16 %v1124
    %v2107 = vunpack.c.h.b16 %v1124
    %v2108 = vunpack.c.l.b16 %v1125
    %v2109 = vunpack.c.h.b16 %v1125
    %v2110 = vunpack.c.l.b16 %v1126
    %v2111 = vunpack.c.h.b16 %v1126
    %v2112 = vunpack.c.l.b16 %v1127
    %v2113 = vunpack.c.h.b16 %v1127
    %v2114 = vunpack.c.l.b16 %v1128
    %v2115 = vunpack.c.h.b16 %v1128
    %v2116 = vunpack.c.l.b16 %v1129
    %v2117 = vunpack.c.h.b16 %v1129
    %v2118 = vunpack.c.l.b16 %v1130
    %v2119 = vunpack.c.h.b16 %v1130
    %v2120 = vunpack.c.l.b16 %v1131
    %v2121 = vunpack.c.h.b16 %v1131
    %v2122 = vunpack.c.l.b16 %v1132
    %v2123 = vunpack.c.h.b16 %v1132
    %v2124 = vunpack.c.l.b16 %v1133
    %v2125 = vunpack.c.h.b16 %v1133
    %v2126 = vunpack.c.l.b16 %v1134
    %v2127 = vunpack.c.h.b16 %v1134
    %v2128 = vunpack.c.l.b16 %v1135
    %v2129 = vunpack.c.h.b16 %v1135
    %v2130 = vunpack.c.l.b16 %v1136
    %v2131 = vunpack.c.h.b16 %v1136
    %v2132 = vunpack.c.l.b16 %v1137
    %v2133 = vunpack.c.h.b16 %v1137
    %v2134 = vunpack.c.l.b16 %v1138
    %v2135 = vunpack.c.h.b16 %v1138
    %v2136 = vunpack.c.l.b16 %v1139
    %v2137 = vunpack.c.h.b16 %v1139
    %v2138 = vunpack.c.l.b16 %v1140
    %v2139 = vunpack.c.h.b16 %v1140
    %v2140 = vunpack.c.l.b16 %v1141
    %v2141 = vunpack.c.h.b16 %v1141
    %v2142 = vunpack.c.l.b16 %v1142
    %v2143 = vunpack.c.h.b16 %v1142
    %v2144 = vunpack.c.l.b16 %v1143
    %v2145 = vunpack.c.h.b16 %v1143
    %v2146 = vunpack.c.l.b16 %v1144
    %v2147 = vunpack.c.h.b16 %v1144
    %v2148 = vunpack.c.l.b16 %v1145
    %v2149 = vunpack.c.h.b16 %v1145
    %v2150 = vunpack.c.l.b16 %v1146
    %v2151 = vunpack.c.h.b16 %v1146
    %v2152 = vunpack.c.l.b16 %v1147
    %v2153 = vunpack.c.h.b16 %v1147
    %v2154 = vunpack.c.l.b16 %v1148
    %v2155 = vunpack.c.h.b16 %v1148
    %v2156 = vunpack.c.l.b16 %v1149
    %v2157 = vunpack.c.h.b16 %v1149
    %v2158 = vunpack.c.l.b16 %v1150
    %v2159 = vunpack.c.h.b16 %v1150
    %v2160 = vunpack.c.l.b16 %v1151
    %v2161 = vunpack.c.h.b16 %v1151
    %v2162 = vunpack.c.l.b16 %v1152
    %v2163 = vunpack.c.h.b16 %v1152
    %v2164 = vunpack.c.l.b16 %v1153
    %v2165 = vunpack.c.h.b16 %v1153
    %v2166 = vunpack.c.l.b16 %v1154
    %v2167 = vunpack.c.h.b16 %v1154
    %v2168 = vunpack.c.l.b16 %v1155
    %v2169 = vunpack.c.h.b16 %v1155
    %v2170 = vunpack.c.l.b16 %v1156
    %v2171 = vunpack.c.h.b16 %v1156
    %v2172 = vunpack.c.l.b16 %v1157
    %v2173 = vunpack.c.h.b16 %v1157
    %v2174 = vunpack.c.l.b16 %v1158
    %v2175 = vunpack.c.h.b16 %v1158
    %v2176 = vunpack.c.l.b16 %v1159
    %v2177 = vunpack.c.h.b16 %v1159
    %v2178 = vunpack.c.l.b16 %v1160
    %v2179 = vunpack.c.h.b16 %v1160
    %v2180 = vunpack.c.l.b16 %v1161
    %v2181 = vunpack.c.h.b16 %v1161
    %v2182 = vunpack.c.l.b16 %v1162
    %v2183 = vunpack.c.h.b16 %v1162
    %v2184 = vunpack.c.l.b16 %v1163
    %v2185 = vunpack.c.h.b16 %v1163
    %v2186 = vunpack.c.l.b16 %v1164
    %v2187 = vunpack.c.h.b16 %v1164
    %v2188 = vunpack.c.l.b16 %v1165
    %v2189 = vunpack.c.h.b16 %v1165
    %v2190 = vunpack.c.l.b16 %v1166
    %v2191 = vunpack.c.h.b16 %v1166
    %v2192 = vunpack.c.l.b16 %v1167
    %v2193 = vunpack.c.h.b16 %v1167
    %v2194 = vunpack.c.l.b16 %v1168
    %v2195 = vunpack.c.h.b16 %v1168
    %v2196 = vunpack.c.l.b16 %v1169
    %v2197 = vunpack.c.h.b16 %v1169
    %v2198 = vunpack.c.l.b16 %v1170
    %v2199 = vunpack.c.h.b16 %v1170
    %v2200 = vunpack.c.l.b16 %v1171
    %v2201 = vunpack.c.h.b16 %v1171
    %v2202 = vunpack.c.l.b16 %v1172
    %v2203 = vunpack.c.h.b16 %v1172
    %v2204 = vunpack.c.l.b16 %v1173
    %v2205 = vunpack.c.h.b16 %v1173
    %v2206 = vunpack.c.l.b16 %v1174
    %v2207 = vunpack.c.h.b16 %v1174
    %v2208 = vunpack.c.l.b16 %v1175
    %v2209 = vunpack.c.h.b16 %v1175
    %v2210 = vunpack.c.l.b16 %v1176
    %v2211 = vunpack.c.h.b16 %v1176
    %v2212 = vunpack.c.l.b16 %v1177
    %v2213 = vunpack.c.h.b16 %v1177
    %v2214 = vunpack.c.l.b16 %v1178
    %v2215 = vunpack.c.h.b16 %v1178
    %v2216 = vunpack.c.l.b16 %v1179
    %v2217 = vunpack.c.h.b16 %v1179
    %v2218 = vunpack.c.l.b16 %v1180
    %v2219 = vunpack.c.h.b16 %v1180
    %v2220 = vunpack.c.l.b16 %v1181
    %v2221 = vunpack.c.h.b16 %v1181
    %v2222 = vunpack.c.l.b16 %v1182
    %v2223 = vunpack.c.h.b16 %v1182
    %v2224 = vunpack.c.l.b16 %v1183
    %v2225 = vunpack.c.h.b16 %v1183
    %v2226 = vunpack.c.l.b16 %v1184
    %v2227 = vunpack.c.h.b16 %v1184
    %v2228 = vunpack.c.l.b16 %v1185
    %v2229 = vunpack.c.h.b16 %v1185
    %v2230 = vunpack.c.l.b16 %v1186
    %v2231 = vunpack.c.h.b16 %v1186
    %v2232 = vunpack.c.l.b16 %v1187
    %v2233 = vunpack.c.h.b16 %v1187
    %v2234 = vunpack.c.l.b16 %v1188
    %v2235 = vunpack.c.h.b16 %v1188
    %v2236 = vunpack.c.l.b16 %v1189
    %v2237 = vunpack.c.h.b16 %v1189
    %v2238 = vunpack.c.l.b16 %v1190
    %v2239 = vunpack.c.h.b16 %v1190
    %v2240 = vunpack.c.l.b16 %v1191
    %v2241 = vunpack.c.h.b16 %v1191
    %v2242 = vunpack.c.l.b16 %v1192
    %v2243 = vunpack.c.h.b16 %v1192
    %v2244 = vunpack.c.l.b16 %v1193
    %v2245 = vunpack.c.h.b16 %v1193
    %v2246 = vunpack.c.l.b16 %v1194
    %v2247 = vunpack.c.h.b16 %v1194
    %v2248 = vunpack.c.l.b16 %v1195
    %v2249 = vunpack.c.h.b16 %v1195
    %v2250 = vunpack.c.l.b16 %v1196
    %v2251 = vunpack.c.h.b16 %v1196
    %v2252 = vunpack.c.l.b16 %v1197
    %v2253 = vunpack.c.h.b16 %v1197
    %v2254 = vunpack.c.l.b16 %v1198
    %v2255 = vunpack.c.h.b16 %v1198
    %v2256 = vunpack.c.l.b16 %v1199
    %v2257 = vunpack.c.h.b16 %v1199
    %v2258 = vunpack.c.l.b16 %v1200
    %v2259 = vunpack.c.h.b16 %v1200
    %v2260 = vunpack.c.l.b16 %v1201
    %v2261 = vunpack.c.h.b16 %v1201
    %v2262 = vunpack.c.l.b16 %v1202
    %v2263 = vunpack.c.h.b16 %v1202
    %v2264 = vunpack.c.l.b16 %v1203
    %v2265 = vunpack.c.h.b16 %v1203
    %v2266 = vunpack.c.l.b16 %v1204
    %v2267 = vunpack.c.h.b16 %v1204
    %v2268 = vunpack.c.l.b16 %v1205
    %v2269 = vunpack.c.h.b16 %v1205
    %v2270 = vunpack.c.l.b16 %v1206
    %v2271 = vunpack.c.h.b16 %v1206
    %v2272 = vunpack.c.l.b16 %v1207
    %v2273 = vunpack.c.h.b16 %v1207
    %v2274 = vunpack.c.l.b16 %v1208
    %v2275 = vunpack.c.h.b16 %v1208
    %v2276 = vunpack.c.l.b16 %v1209
    %v2277 = vunpack.c.h.b16 %v1209
    %v2278 = vunpack.c.l.b16 %v1210
    %v2279 = vunpack.c.h.b16 %v1210
    %v2280 = vunpack.c.l.b16 %v1211
    %v2281 = vunpack.c.h.b16 %v1211
    %v2282 = vunpack.c.l.b16 %v1212
    %v2283 = vunpack.c.h.b16 %v1212
    %v2284 = vunpack.c.l.b16 %v1213
    %v2285 = vunpack.c.h.b16 %v1213
    %v2286 = vunpack.c.l.b16 %v1214
    %v2287 = vunpack.c.h.b16 %v1214
    %v2288 = vunpack.c.l.b16 %v1215
    %v2289 = vunpack.c.h.b16 %v1215
    %v2290 = vunpack.c.l.b16 %v1216
    %v2291 = vunpack.c.h.b16 %v1216
    %v2292 = vunpack.c.l.b16 %v1217
    %v2293 = vunpack.c.h.b16 %v1217
    %v2294 = vunpack.c.l.b16 %v1218
    %v2295 = vunpack.c.h.b16 %v1218
    %v2296 = vunpack.c.l.b16 %v1219
    %v2297 = vunpack.c.h.b16 %v1219
    %v2298 = vunpack.c.l.b16 %v1220
    %v2299 = vunpack.c.h.b16 %v1220
    %v2300 = vunpack.c.l.b16 %v1221
    %v2301 = vunpack.c.h.b16 %v1221
    %v2302 = vunpack.c.l.b16 %v1222
    %v2303 = vunpack.c.h.b16 %v1222
    %v2304 = vunpack.c.l.b16 %v1223
    %v2305 = vunpack.c.h.b16 %v1223
    %v2306 = vunpack.c.l.b16 %v1224
    %v2307 = vunpack.c.h.b16 %v1224
    %v2308 = vunpack.c.l.b16 %v1225
    %v2309 = vunpack.c.h.b16 %v1225
    %v2310 = vunpack.c.l.b16 %v1226
    %v2311 = vunpack.c.h.b16 %v1226
    %v2312 = vunpack.c.l.b16 %v1227
    %v2313 = vunpack.c.h.b16 %v1227
    %v2314 = vunpack.c.l.b16 %v1228
    %v2315 = vunpack.c.h.b16 %v1228
    %v2316 = vunpack.c.l.b16 %v1229
    %v2317 = vunpack.c.h.b16 %v1229
    %v2318 = vunpack.c.l.b16 %v1230
    %v2319 = vunpack.c.h.b16 %v1230
    %v2320 = vunpack.c.l.b16 %v1231
    %v2321 = vunpack.c.h.b16 %v1231
    %v2322 = vunpack.c.l.b16 %v1232
    %v2323 = vunpack.c.h.b16 %v1232
    %v2324 = vunpack.c.l.b16 %v1233
    %v2325 = vunpack.c.h.b16 %v1233
    %v2326 = vunpack.c.l.b16 %v1234
    %v2327 = vunpack.c.h.b16 %v1234
    %v2328 = vunpack.c.l.b16 %v1235
    %v2329 = vunpack.c.h.b16 %v1235
    %v2330 = vunpack.c.l.b16 %v1236
    %v2331 = vunpack.c.h.b16 %v1236
    %v2332 = vunpack.c.l.b16 %v1237
    %v2333 = vunpack.c.h.b16 %v1237
    %v2334 = vunpack.c.l.b16 %v1238
    %v2335 = vunpack.c.h.b16 %v1238
    %v2336 = vunpack.c.l.b16 %v1239
    %v2337 = vunpack.c.h.b16 %v1239
    %v2338 = vunpack.c.l.b16 %v1240
    %v2339 = vunpack.c.h.b16 %v1240
    %v2340 = vunpack.c.l.b16 %v1241
    %v2341 = vunpack.c.h.b16 %v1241
    %v2342 = vunpack.c.l.b16 %v1242
    %v2343 = vunpack.c.h.b16 %v1242
    %v2344 = vunpack.c.l.b16 %v1243
    %v2345 = vunpack.c.h.b16 %v1243
    %v2346 = vunpack.c.l.b16 %v1244
    %v2347 = vunpack.c.h.b16 %v1244
    %v2348 = vunpack.c.l.b16 %v1245
    %v2349 = vunpack.c.h.b16 %v1245
    %v2350 = vunpack.c.l.b16 %v1246
    %v2351 = vunpack.c.h.b16 %v1246
    %v2352 = vunpack.c.l.b16 %v1247
    %v2353 = vunpack.c.h.b16 %v1247
    %v2354 = vunpack.c.l.b16 %v1248
    %v2355 = vunpack.c.h.b16 %v1248
    %v2356 = vunpack.c.l.b16 %v1249
    %v2357 = vunpack.c.h.b16 %v1249
    %v2358 = vunpack.c.l.b16 %v1250
    %v2359 = vunpack.c.h.b16 %v1250
    %v2360 = vunpack.c.l.b16 %v1251
    %v2361 = vunpack.c.h.b16 %v1251
    %v2362 = vunpack.c.l.b16 %v1252
    %v2363 = vunpack.c.h.b16 %v1252
    %v2364 = vunpack.c.l.b16 %v1253
    %v2365 = vunpack.c.h.b16 %v1253
    %v2366 = vunpack.c.l.b16 %v1254
    %v2367 = vunpack.c.h.b16 %v1254
    %v2368 = vunpack.c.l.b16 %v1255
    %v2369 = vunpack.c.h.b16 %v1255
    %v2370 = vunpack.c.l.b16 %v1256
    %v2371 = vunpack.c.h.b16 %v1256
    %v2372 = vunpack.c.l.b16 %v1257
    %v2373 = vunpack.c.h.b16 %v1257
    %v2374 = vunpack.c.l.b16 %v1258
    %v2375 = vunpack.c.h.b16 %v1258
    %v2376 = vunpack.c.l.b16 %v1259
    %v2377 = vunpack.c.h.b16 %v1259
    %v2378 = vunpack.c.l.b16 %v1260
    %v2379 = vunpack.c.h.b16 %v1260
    %v2380 = vunpack.c.l.b16 %v1261
    %v2381 = vunpack.c.h.b16 %v1261
    %v2382 = vunpack.c.l.b16 %v1262
    %v2383 = vunpack.c.h.b16 %v1262
    %v2384 = vunpack.c.l.b16 %v1263
    %v2385 = vunpack.c.h.b16 %v1263
    %v2386 = vunpack.c.l.b16 %v1264
    %v2387 = vunpack.c.h.b16 %v1264
    %v2388 = vunpack.c.l.b16 %v1265
    %v2389 = vunpack.c.h.b16 %v1265
    %v2390 = vunpack.c.l.b16 %v1266
    %v2391 = vunpack.c.h.b16 %v1266
    %v2392 = vunpack.c.l.b16 %v1267
    %v2393 = vunpack.c.h.b16 %v1267
    %v2394 = vunpack.c.l.b16 %v1268
    %v2395 = vunpack.c.h.b16 %v1268
    %v2396 = vunpack.c.l.b16 %v1269
    %v2397 = vunpack.c.h.b16 %v1269
    %v2398 = vunpack.c.l.b16 %v1270
    %v2399 = vunpack.c.h.b16 %v1270
    %v2400 = vunpack.c.l.b16 %v1271
    %v2401 = vunpack.c.h.b16 %v1271
    %v2402 = vunpack.c.l.b16 %v1272
    %v2403 = vunpack.c.h.b16 %v1272
    %v2404 = vunpack.c.l.b16 %v1273
    %v2405 = vunpack.c.h.b16 %v1273
    %v2406 = vunpack.c.l.b16 %v1274
    %v2407 = vunpack.c.h.b16 %v1274
    %v2408 = vunpack.c.l.b16 %v1275
    %v2409 = vunpack.c.h.b16 %v1275
    %v2410 = vunpack.c.l.b16 %v1276
    %v2411 = vunpack.c.h.b16 %v1276
    %v2412 = vunpack.c.l.b16 %v1277
    %v2413 = vunpack.c.h.b16 %v1277
    %v2414 = vunpack.c.l.b16 %v1278
    %v2415 = vunpack.c.h.b16 %v1278
    %v2416 = vunpack.c.l.b16 %v1279
    %v2417 = vunpack.c.h.b16 %v1279
    %v2418 = vunpack.c.l.b16 %v1280
    %v2419 = vunpack.c.h.b16 %v1280
    %v2420 = vunpack.c.l.b16 %v1281
    %v2421 = vunpack.c.h.b16 %v1281
    %v2422 = vunpack.c.l.b16 %v1282
    %v2423 = vunpack.c.h.b16 %v1282
    %v2424 = vunpack.c.l.b16 %v1283
    %v2425 = vunpack.c.h.b16 %v1283
    %v2426 = vunpack.c.l.b16 %v1284
    %v2427 = vunpack.c.h.b16 %v1284
    %v2428 = vunpack.c.l.b16 %v1285
    %v2429 = vunpack.c.h.b16 %v1285
    %v2430 = vunpack.c.l.b16 %v1286
    %v2431 = vunpack.c.h.b16 %v1286
    %v2432 = vunpack.c.l.b16 %v1287
    %v2433 = vunpack.c.h.b16 %v1287
    %v2434 = vunpack.c.l.b16 %v1288
    %v2435 = vunpack.c.h.b16 %v1288
    %v2436 = vunpack.c.l.b16 %v1289
    %v2437 = vunpack.c.h.b16 %v1289
    %v2438 = vunpack.c.l.b16 %v1290
    %v2439 = vunpack.c.h.b16 %v1290
    %v2440 = vunpack.c.l.b16 %v1291
    %v2441 = vunpack.c.h.b16 %v1291
    %v2442 = vunpack.c.l.b16 %v1292
    %v2443 = vunpack.c.h.b16 %v1292
    %v2444 = vunpack.c.l.b16 %v1293
    %v2445 = vunpack.c.h.b16 %v1293
    %v2446 = vpack.c.b16 %v1686, %v1678
    %v2447 = vpack.c.b16 %v1687, %v1679
    %v2448 = vpack.c.b16 %v1688, %v1680
    %v2449 = vpack.c.b16 %v1689, %v1681
    %v2450 = vpack.c.b16 %v1690, %v1682
    %v2451 = vpack.c.b16 %v1691, %v1683
    %v2452 = vpack.c.b16 %v1692, %v1684
    %v2453 = vpack.c.b16 %v1693, %v1685
    %v2454 = vpack.c.b16 %v1702, %v1694
    %v2455 = vpack.c.b16 %v1703, %v1695
    %v2456 = vpack.c.b16 %v1704, %v1696
    %v2457 = vpack.c.b16 %v1705, %v1697
    %v2458 = vpack.c.b16 %v1706, %v1698
    %v2459 = vpack.c.b16 %v1707, %v1699
    %v2460 = vpack.c.b16 %v1708, %v1700
    %v2461 = vpack.c.b16 %v1709, %v1701
    %v2462 = vpack.c.b16 %v1718, %v1710
    %v2463 = vpack.c.b16 %v1719, %v1711
    %v2464 = vpack.c.b16 %v1720, %v1712
    %v2465 = vpack.c.b16 %v1721, %v1713
    %v2466 = vpack.c.b16 %v1722, %v1714
    %v2467 = vpack.c.b16 %v1723, %v1715
    %v2468 = vpack.c.b16 %v1724, %v1716
    %v2469 = vpack.c.b16 %v1725, %v1717
    %v2470 = vpack.c.b16 %v1734, %v1726
    %v2471 = vpack.c.b16 %v1735, %v1727
    %v2472 = vpack.c.b16 %v1736, %v1728
    %v2473 = vpack.c.b16 %v1737, %v1729
    %v2474 = vpack.c.b16 %v1738, %v1730
    %v2475 = vpack.c.b16 %v1739, %v1731
    %v2476 = vpack.c.b16 %v1740, %v1732
    %v2477 = vpack.c.b16 %v1741, %v1733
    %v2478 = vpack.c.b16 %v1750, %v1742
    %v2479 = vpack.c.b16 %v1751, %v1743
    %v2480 = vpack.c.b16 %v1752, %v1744
    %v2481 = vpack.c.b16 %v1753, %v1745
    %v2482 = vpack.c.b16 %v1754, %v1746
    %v2483 = vpack.c.b16 %v1755, %v1747
    %v2484 = vpack.c.b16 %v1756, %v1748
    %v2485 = vpack.c.b16 %v1757, %v1749
    %v2486 = vpack.c.b16 %v1766, %v1758
    %v2487 = vpack.c.b16 %v1767, %v1759
    %v2488 = vpack.c.b16 %v1768, %v1760
    %v2489 = vpack.c.b16 %v1769, %v1761
    %v2490 = vpack.c.b16 %v1770, %v1762
    %v2491 = vpack.c.b16 %v1771, %v1763
    %v2492 = vpack.c.b16 %v1772, %v1764
    %v2493 = vpack.c.b16 %v1773, %v1765
    %v2494 = vpack.c.b16 %v1782, %v1774
    %v2495 = vpack.c.b16 %v1783, %v1775
    %v2496 = vpack.c.b16 %v1784, %v1776
    %v2497 = vpack.c.b16 %v1785, %v1777
    %v2498 = vpack.c.b16 %v1786, %v1778
    %v2499 = vpack.c.b16 %v1787, %v1779
    %v2500 = vpack.c.b16 %v1788, %v1780
    %v2501 = vpack.c.b16 %v1789, %v1781
    %v2502 = vpack.c.b16 %v1798, %v1790
    %v2503 = vpack.c.b16 %v1799, %v1791
    %v2504 = vpack.c.b16 %v1800, %v1792
    %v2505 = vpack.c.b16 %v1801, %v1793
    %v2506 = vpack.c.b16 %v1802, %v1794
    %v2507 = vpack.c.b16 %v1803, %v1795
    %v2508 = vpack.c.b16 %v1804, %v1796
    %v2509 = vpack.c.b16 %v1805, %v1797
    %v2510 = vpack.c.b16 %v1814, %v1806
    %v2511 = vpack.c.b16 %v1815, %v1807
    %v2512 = vpack.c.b16 %v1816, %v1808
    %v2513 = vpack.c.b16 %v1817, %v1809
    %v2514 = vpack.c.b16 %v1818, %v1810
    %v2515 = vpack.c.b16 %v1819, %v1811
    %v2516 = vpack.c.b16 %v1820, %v1812
    %v2517 = vpack.c.b16 %v1821, %v1813
    %v2518 = vpack.c.b16 %v1830, %v1822
    %v2519 = vpack.c.b16 %v1831, %v1823
    %v2520 = vpack.c.b16 %v1832, %v1824
    %v2521 = vpack.c.b16 %v1833, %v1825
    %v2522 = vpack.c.b16 %v1834, %v1826
    %v2523 = vpack.c.b16 %v1835, %v1827
    %v2524 = vpack.c.b16 %v1836, %v1828
    %v2525 = vpack.c.b16 %v1837, %v1829
    %v2526 = vpack.c.b16 %v1846, %v1838
    %v2527 = vpack.c.b16 %v1847, %v1839
    %v2528 = vpack.c.b16 %v1848, %v1840
    %v2529 = vpack.c.b16 %v1849, %v1841
    %v2530 = vpack.c.b16 %v1850, %v1842
    %v2531 = vpack.c.b16 %v1851, %v1843
    %v2532 = vpack.c.b16 %v1852, %v1844
    %v2533 = vpack.c.b16 %v1853, %v1845
    %v2534 = vpack.c.b16 %v1862, %v1854
    %v2535 = vpack.c.b16 %v1863, %v1855
    %v2536 = vpack.c.b16 %v1864, %v1856
    %v2537 = vpack.c.b16 %v1865, %v1857
    %v2538 = vpack.c.b16 %v1866, %v1858
    %v2539 = vpack.c.b16 %v1867, %v1859
    %v2540 = vpack.c.b16 %v1868, %v1860
    %v2541 = vpack.c.b16 %v1869, %v1861
    %v2542 = vpack.c.b16 %v1878, %v1870
    %v2543 = vpack.c.b16 %v1879, %v1871
    %v2544 = vpack.c.b16 %v1880, %v1872
    %v2545 = vpack.c.b16 %v1881, %v1873
    %v2546 = vpack.c.b16 %v1882, %v1874
    %v2547 = vpack.c.b16 %v1883, %v1875
    %v2548 = vpack.c.b16 %v1884, %v1876
    %v2549 = vpack.c.b16 %v1885, %v1877
    %v2550 = vpack.c.b16 %v1894, %v1886
    %v2551 = vpack.c.b16 %v1895, %v1887
    %v2552 = vpack.c.b16 %v1896, %v1888
    %v2553 = vpack.c.b16 %v1897, %v1889
    %v2554 = vpack.c.b16 %v1898, %v1890
    %v2555 = vpack.c.b16 %v1899, %v1891
    %v2556 = vpack.c.b16 %v1900, %v1892
    %v2557 = vpack.c.b16 %v1901, %v1893
    %v2558 = vpack.c.b16 %v1910, %v1902
    %v2559 = vpack.c.b16 %v1911, %v1903
    %v2560 = vpack.c.b16 %v1912, %v1904
    %v2561 = vpack.c.b16 %v1913, %v1905
    %v2562 = vpack.c.b16 %v1914, %v1906
    %v2563 = vpack.c.b16 %v1915, %v1907
    %v2564 = vpack.c.b16 %v1916, %v1908
    %v2565 = vpack.c.b16 %v1917, %v1909
    %v2566 = vpack.c.b16 %v1926, %v1918
    %v2567 = vpack.c.b16 %v1927, %v1919
    %v2568 = vpack.c.b16 %v1928, %v1920
    %v2569 = vpack.c.b16 %v1929, %v1921
    %v2570 = vpack.c.b16 %v1930, %v1922
    %v2571 = vpack.c.b16 %v1931, %v1923
    %v2572 = vpack.c.b16 %v1932, %v1924
    %v2573 = vpack.c.b16 %v1933, %v1925
    %v2574 = vpack.c.b16 %v1942, %v1934
    %v2575 = vpack.c.b16 %v1943, %v1935
    %v2576 = vpack.c.b16 %v1944, %v1936
    %v2577 = vpack.c.b16 %v1945, %v1937
    %v2578 = vpack.c.b16 %v1946, %v1938
    %v2579 = vpack.c.b16 %v1947, %v1939
    %v2580 = vpack.c.b16 %v1948, %v1940
    %v2581 = vpack.c.b16 %v1949, %v1941
    %v2582 = vpack.c.b16 %v1958, %v1950
    %v2583 = vpack.c.b16 %v1959, %v1951
    %v2584 = vpack.c.b16 %v1960, %v1952
    %v2585 = vpack.c.b16 %v1961, %v1953
    %v2586 = vpack.c.b16 %v1962, %v1954
    %v2587 = vpack.c.b16 %v1963, %v1955
    %v2588 = vpack.c.b16 %v1964, %v1956
    %v2589 = vpack.c.b16 %v1965, %v1957
    %v2590 = vpack.c.b16 %v1974, %v1966
    %v2591 = vpack.c.b16 %v1975, %v1967
    %v2592 = vpack.c.b16 %v1976, %v1968
    %v2593 = vpack.c.b16 %v1977, %v1969
    %v2594 = vpack.c.b16 %v1978, %v1970
    %v2595 = vpack.c.b16 %v1979, %v1971
    %v2596 = vpack.c.b16 %v1980, %v1972
    %v2597 = vpack.c.b16 %v1981, %v1973
    %v2598 = vpack.c.b16 %v1990, %v1982
    %v2599 = vpack.c.b16 %v1991, %v1983
    %v2600 = vpack.c.b16 %v1992, %v1984
    %v2601 = vpack.c.b16 %v1993, %v1985
    %v2602 = vpack.c.b16 %v1994, %v1986
    %v2603 = vpack.c.b16 %v1995, %v1987
    %v2604 = vpack.c.b16 %v1996, %v1988
    %v2605 = vpack.c.b16 %v1997, %v1989
    %v2606 = vpack.c.b16 %v2006, %v1998
    %v2607 = vpack.c.b16 %v2007, %v1999
    %v2608 = vpack.c.b16 %v2008, %v2000
    %v2609 = vpack.c.b16 %v2009, %v2001
    %v2610 = vpack.c.b16 %v2010, %v2002
    %v2611 = vpack.c.b16 %v2011, %v2003
    %v2612 = vpack.c.b16 %v2012, %v2004
    %v2613 = vpack.c.b16 %v2013, %v2005
    %v2614 = vpack.c.b16 %v2022, %v2014
    %v2615 = vpack.c.b16 %v2023, %v2015
    %v2616 = vpack.c.b16 %v2024, %v2016
    %v2617 = vpack.c.b16 %v2025, %v2017
    %v2618 = vpack.c.b16 %v2026, %v2018
    %v2619 = vpack.c.b16 %v2027, %v2019
    %v2620 = vpack.c.b16 %v2028, %v2020
    %v2621 = vpack.c.b16 %v2029, %v2021
    %v2622 = vpack.c.b16 %v2038, %v2030
    %v2623 = vpack.c.b16 %v2039, %v2031
    %v2624 = vpack.c.b16 %v2040, %v2032
    %v2625 = vpack.c.b16 %v2041, %v2033
    %v2626 = vpack.c.b16 %v2042, %v2034
    %v2627 = vpack.c.b16 %v2043, %v2035
    %v2628 = vpack.c.b16 %v2044, %v2036
    %v2629 = vpack.c.b16 %v2045, %v2037
    %v2630 = vpack.c.b16 %v2054, %v2046
    %v2631 = vpack.c.b16 %v2055, %v2047
    %v2632 = vpack.c.b16 %v2056, %v2048
    %v2633 = vpack.c.b16 %v2057, %v2049
    %v2634 = vpack.c.b16 %v2058, %v2050
    %v2635 = vpack.c.b16 %v2059, %v2051
    %v2636 = vpack.c.b16 %v2060, %v2052
    %v2637 = vpack.c.b16 %v2061, %v2053
    %v2638 = vpack.c.b16 %v2070, %v2062
    %v2639 = vpack.c.b16 %v2071, %v2063
    %v2640 = vpack.c.b16 %v2072, %v2064
    %v2641 = vpack.c.b16 %v2073, %v2065
    %v2642 = vpack.c.b16 %v2074, %v2066
    %v2643 = vpack.c.b16 %v2075, %v2067
    %v2644 = vpack.c.b16 %v2076, %v2068
    %v2645 = vpack.c.b16 %v2077, %v2069
    %v2646 = vpack.c.b16 %v2086, %v2078
    %v2647 = vpack.c.b16 %v2087, %v2079
    %v2648 = vpack.c.b16 %v2088, %v2080
    %v2649 = vpack.c.b16 %v2089, %v2081
    %v2650 = vpack.c.b16 %v2090, %v2082
    %v2651 = vpack.c.b16 %v2091, %v2083
    %v2652 = vpack.c.b16 %v2092, %v2084
    %v2653 = vpack.c.b16 %v2093, %v2085
    %v2654 = vpack.c.b16 %v2102, %v2094
    %v2655 = vpack.c.b16 %v2103, %v2095
    %v2656 = vpack.c.b16 %v2104, %v2096
    %v2657 = vpack.c.b16 %v2105, %v2097
    %v2658 = vpack.c.b16 %v2106, %v2098
    %v2659 = vpack.c.b16 %v2107, %v2099
    %v2660 = vpack.c.b16 %v2108, %v2100
    %v2661 = vpack.c.b16 %v2109, %v2101
    %v2662 = vpack.c.b16 %v2118, %v2110
    %v2663 = vpack.c.b16 %v2119, %v2111
    %v2664 = vpack.c.b16 %v2120, %v2112
    %v2665 = vpack.c.b16 %v2121, %v2113
    %v2666 = vpack.c.b16 %v2122, %v2114
    %v2667 = vpack.c.b16 %v2123, %v2115
    %v2668 = vpack.c.b16 %v2124, %v2116
    %v2669 = vpack.c.b16 %v2125, %v2117
    %v2670 = vpack.c.b16 %v2134, %v2126
    %v2671 = vpack.c.b16 %v2135, %v2127
    %v2672 = vpack.c.b16 %v2136, %v2128
    %v2673 = vpack.c.b16 %v2137, %v2129
    %v2674 = vpack.c.b16 %v2138, %v2130
    %v2675 = vpack.c.b16 %v2139, %v2131
    %v2676 = vpack.c.b16 %v2140, %v2132
    %v2677 = vpack.c.b16 %v2141, %v2133
    %v2678 = vpack.c.b16 %v2150, %v2142
    %v2679 = vpack.c.b16 %v2151, %v2143
    %v2680 = vpack.c.b16 %v2152, %v2144
    %v2681 = vpack.c.b16 %v2153, %v2145
    %v2682 = vpack.c.b16 %v2154, %v2146
    %v2683 = vpack.c.b16 %v2155, %v2147
    %v2684 = vpack.c.b16 %v2156, %v2148
    %v2685 = vpack.c.b16 %v2157, %v2149
    %v2686 = vpack.c.b16 %v2166, %v2158
    %v2687 = vpack.c.b16 %v2167, %v2159
    %v2688 = vpack.c.b16 %v2168, %v2160
    %v2689 = vpack.c.b16 %v2169, %v2161
    %v2690 = vpack.c.b16 %v2170, %v2162
    %v2691 = vpack.c.b16 %v2171, %v2163
    %v2692 = vpack.c.b16 %v2172, %v2164
    %v2693 = vpack.c.b16 %v2173, %v2165
    %v2694 = vpack.c.b16 %v2182, %v2174
    %v2695 = vpack.c.b16 %v2183, %v2175
    %v2696 = vpack.c.b16 %v2184, %v2176
    %v2697 = vpack.c.b16 %v2185, %v2177
    %v2698 = vpack.c.b16 %v2186, %v2178
    %v2699 = vpack.c.b16 %v2187, %v2179
    %v2700 = vpack.c.b16 %v2188, %v2180
    %v2701 = vpack.c.b16 %v2189, %v2181
    %v2702 = vpack.c.b16 %v2198, %v2190
    %v2703 = vpack.c.b16 %v2199, %v2191
    %v2704 = vpack.c.b16 %v2200, %v2192
    %v2705 = vpack.c.b16 %v2201, %v2193
    %v2706 = vpack.c.b16 %v2202, %v2194
    %v2707 = vpack.c.b16 %v2203, %v2195
    %v2708 = vpack.c.b16 %v2204, %v2196
    %v2709 = vpack.c.b16 %v2205, %v2197
    %v2710 = vpack.c.b16 %v2214, %v2206
    %v2711 = vpack.c.b16 %v2215, %v2207
    %v2712 = vpack.c.b16 %v2216, %v2208
    %v2713 = vpack.c.b16 %v2217, %v2209
    %v2714 = vpack.c.b16 %v2218, %v2210
    %v2715 = vpack.c.b16 %v2219, %v2211
    %v2716 = vpack.c.b16 %v2220, %v2212
    %v2717 = vpack.c.b16 %v2221, %v2213
    %v2718 = vpack.c.b16 %v2230, %v2222
    %v2719 = vpack.c.b16 %v2231, %v2223
    %v2720 = vpack.c.b16 %v2232, %v2224
    %v2721 = vpack.c.b16 %v2233, %v2225
    %v2722 = vpack.c.b16 %v2234, %v2226
    %v2723 = vpack.c.b16 %v2235, %v2227
    %v2724 = vpack.c.b16 %v2236, %v2228
    %v2725 = vpack.c.b16 %v2237, %v2229
    %v2726 = vpack.c.b16 %v2246, %v2238
    %v2727 = vpack.c.b16 %v2247, %v2239
    %v2728 = vpack.c.b16 %v2248, %v2240
    %v2729 = vpack.c.b16 %v2249, %v2241
    %v2730 = vpack.c.b16 %v2250, %v2242
    %v2731 = vpack.c.b16 %v2251, %v2243
    %v2732 = vpack.c.b16 %v2252, %v2244
    %v2733 = vpack.c.b16 %v2253, %v2245
    %v2734 = vpack.c.b16 %v2262, %v2254
    %v2735 = vpack.c.b16 %v2263, %v2255
    %v2736 = vpack.c.b16 %v2264, %v2256
    %v2737 = vpack.c.b16 %v2265, %v2257
    %v2738 = vpack.c.b16 %v2266, %v2258
    %v2739 = vpack.c.b16 %v2267, %v2259
    %v2740 = vpack.c.b16 %v2268, %v2260
    %v2741 = vpack.c.b16 %v2269, %v2261
    %v2742 = vpack.c.b16 %v2278, %v2270
    %v2743 = vpack.c.b16 %v2279, %v2271
    %v2744 = vpack.c.b16 %v2280, %v2272
    %v2745 = vpack.c.b16 %v2281, %v2273
    %v2746 = vpack.c.b16 %v2282, %v2274
    %v2747 = vpack.c.b16 %v2283, %v2275
    %v2748 = vpack.c.b16 %v2284, %v2276
    %v2749 = vpack.c.b16 %v2285, %v2277
    %v2750 = vpack.c.b16 %v2294, %v2286
    %v2751 = vpack.c.b16 %v2295, %v2287
    %v2752 = vpack.c.b16 %v2296, %v2288
    %v2753 = vpack.c.b16 %v2297, %v2289
    %v2754 = vpack.c.b16 %v2298, %v2290
    %v2755 = vpack.c.b16 %v2299, %v2291
    %v2756 = vpack.c.b16 %v2300, %v2292
    %v2757 = vpack.c.b16 %v2301, %v2293
    %v2758 = vpack.c.b16 %v2310, %v2302
    %v2759 = vpack.c.b16 %v2311, %v2303
    %v2760 = vpack.c.b16 %v2312, %v2304
    %v2761 = vpack.c.b16 %v2313, %v2305
    %v2762 = vpack.c.b16 %v2314, %v2306
    %v2763 = vpack.c.b16 %v2315, %v2307
    %v2764 = vpack.c.b16 %v2316, %v2308
    %v2765 = vpack.c.b16 %v2317, %v2309
    %v2766 = vpack.c.b16 %v2326, %v2318
    %v2767 = vpack.c.b16 %v2327, %v2319
    %v2768 = vpack.c.b16 %v2328, %v2320
    %v2769 = vpack.c.b16 %v2329, %v2321
    %v2770 = vpack.c.b16 %v2330, %v2322
    %v2771 = vpack.c.b16 %v2331, %v2323
    %v2772 = vpack.c.b16 %v2332, %v2324
    %v2773 = vpack.c.b16 %v2333, %v2325
    %v2774 = vpack.c.b16 %v2342, %v2334
    %v2775 = vpack.c.b16 %v2343, %v2335
    %v2776 = vpack.c.b16 %v2344, %v2336
    %v2777 = vpack.c.b16 %v2345, %v2337
    %v2778 = vpack.c.b16 %v2346, %v2338
    %v2779 = vpack.c.b16 %v2347, %v2339
    %v2780 = vpack.c.b16 %v2348, %v2340
    %v2781 = vpack.c.b16 %v2349, %v2341
    %v2782 = vpack.c.b16 %v2358, %v2350
    %v2783 = vpack.c.b16 %v2359, %v2351
    %v2784 = vpack.c.b16 %v2360, %v2352
    %v2785 = vpack.c.b16 %v2361, %v2353
    %v2786 = vpack.c.b16 %v2362, %v2354
    %v2787 = vpack.c.b16 %v2363, %v2355
    %v2788 = vpack.c.b16 %v2364, %v2356
    %v2789 = vpack.c.b16 %v2365, %v2357
    %v2790 = vpack.c.b16 %v2374, %v2366
    %v2791 = vpack.c.b16 %v2375, %v2367
    %v2792 = vpack.c.b16 %v2376, %v2368
    %v2793 = vpack.c.b16 %v2377, %v2369
    %v2794 = vpack.c.b16 %v2378, %v2370
    %v2795 = vpack.c.b16 %v2379, %v2371
    %v2796 = vpack.c.b16 %v2380, %v2372
    %v2797 = vpack.c.b16 %v2381, %v2373
    %v2798 = vpack.c.b16 %v2390, %v2382
    %v2799 = vpack.c.b16 %v2391, %v2383
    %v2800 = vpack.c.b16 %v2392, %v2384
    %v2801 = vpack.c.b16 %v2393, %v2385
    %v2802 = vpack.c.b16 %v2394, %v2386
    %v2803 = vpack.c.b16 %v2395, %v2387
    %v2804 = vpack.c.b16 %v2396, %v2388
    %v2805 = vpack.c.b16 %v2397, %v2389
    %v2806 = vpack.c.b16 %v2406, %v2398
    %v2807 = vpack.c.b16 %v2407, %v2399
    %v2808 = vpack.c.b16 %v2408, %v2400
    %v2809 = vpack.c.b16 %v2409, %v2401
    %v2810 = vpack.c.b16 %v2410, %v2402
    %v2811 = vpack.c.b16 %v2411, %v2403
    %v2812 = vpack.c.b16 %v2412, %v2404
    %v2813 = vpack.c.b16 %v2413, %v2405
    %v2814 = vpack.c.b16 %v2422, %v2414
    %v2815 = vpack.c.b16 %v2423, %v2415
    %v2816 = vpack.c.b16 %v2424, %v2416
    %v2817 = vpack.c.b16 %v2425, %v2417
    %v2818 = vpack.c.b16 %v2426, %v2418
    %v2819 = vpack.c.b16 %v2427, %v2419
    %v2820 = vpack.c.b16 %v2428, %v2420
    %v2821 = vpack.c.b16 %v2429, %v2421
    %v2822 = vpack.c.b16 %v2438, %v2430
    %v2823 = vpack.c.b16 %v2439, %v2431
    %v2824 = vpack.c.b16 %v2440, %v2432
    %v2825 = vpack.c.b16 %v2441, %v2433
    %v2826 = vpack.c.b16 %v2442, %v2434
    %v2827 = vpack.c.b16 %v2443, %v2435
    %v2828 = vpack.c.b16 %v2444, %v2436
    %v2829 = vpack.c.b16 %v2445, %v2437
    %3214 = vmatpush.bf16.msra.mxu0 %v2502
    %3215 = vmatpush.bf16.msra.mxu0 %v2494
    %3216 = vmatpush.bf16.msra.mxu0 %v2486
    %3217 = vmatpush.bf16.msra.mxu0 %v2478
    %3218 = vmatpush.bf16.msra.mxu0 %v2470
    %3219 = vmatpush.bf16.msra.mxu0 %v2462
    %3220 = vmatpush.bf16.msra.mxu0 %v2454
    %3221 = vmatpush.bf16.msra.mxu0 %v2446
    %3222 = vmatmul.bf16.gmra.mxu0 %v520
    %v3223 = vpop.f32.mrf.mxu0
    %v3224 = vadd.f32 0.0, %v3223
    %v3225 = vpop.f32.mrf.mxu0
    %3226 = vdwg.mxu0
    %3227 = vmatpush.bf16.msra.mxu0 %v2566
    %3228 = vmatpush.bf16.msra.mxu0 %v2558
    %3229 = vmatpush.bf16.msra.mxu0 %v2550
    %3230 = vmatpush.bf16.msra.mxu0 %v2542
    %3231 = vmatpush.bf16.msra.mxu0 %v2534
    %3232 = vmatpush.bf16.msra.mxu0 %v2526
    %3233 = vmatpush.bf16.msra.mxu0 %v2518
    %3234 = vmatpush.bf16.msra.mxu0 %v2510
    %3235 = vmatmul.bf16.gmra.mxu0 %v521
    %v3236 = vpop.f32.mrf.mxu0
    %v3237 = vadd.f32 %v3224, %v3236
    %v3238 = vpop.f32.mrf.mxu0
    %3239 = vdwg.mxu0
    %3240 = vmatpush.bf16.msra.mxu0 %v2630
    %3241 = vmatpush.bf16.msra.mxu0 %v2622
    %3242 = vmatpush.bf16.msra.mxu0 %v2614
    %3243 = vmatpush.bf16.msra.mxu0 %v2606
    %3244 = vmatpush.bf16.msra.mxu0 %v2598
    %3245 = vmatpush.bf16.msra.mxu0 %v2590
    %3246 = vmatpush.bf16.msra.mxu0 %v2582
    %3247 = vmatpush.bf16.msra.mxu0 %v2574
    %3248 = vmatmul.bf16.gmra.mxu0 %v522
    %v3249 = vpop.f32.mrf.mxu0
    %v3250 = vadd.f32 %v3237, %v3249
    %v3251 = vpop.f32.mrf.mxu0
    %3252 = vdwg.mxu0
    %3253 = vmatpush.bf16.msra.mxu0 %v2694
    %3254 = vmatpush.bf16.msra.mxu0 %v2686
    %3255 = vmatpush.bf16.msra.mxu0 %v2678
    %3256 = vmatpush.bf16.msra.mxu0 %v2670
    %3257 = vmatpush.bf16.msra.mxu0 %v2662
    %3258 = vmatpush.bf16.msra.mxu0 %v2654
    %3259 = vmatpush.bf16.msra.mxu0 %v2646
    %3260 = vmatpush.bf16.msra.mxu0 %v2638
    %3261 = vmatmul.bf16.gmra.mxu0 %v523
    %v3262 = vpop.f32.mrf.mxu0
    %v3263 = vadd.f32 %v3250, %v3262
    %v3264 = vpop.f32.mrf.mxu0
    %3265 = vdwg.mxu0
    %3266 = vmatpush.bf16.msra.mxu0 %v2758
    %3267 = vmatpush.bf16.msra.mxu0 %v2750
    %3268 = vmatpush.bf16.msra.mxu0 %v2742
    %3269 = vmatpush.bf16.msra.mxu0 %v2734
    %3270 = vmatpush.bf16.msra.mxu0 %v2726
    %3271 = vmatpush.bf16.msra.mxu0 %v2718
    %3272 = vmatpush.bf16.msra.mxu0 %v2710
    %3273 = vmatpush.bf16.msra.mxu0 %v2702
    %3274 = vmatmul.bf16.gmra.mxu0 %v524
    %v3275 = vpop.f32.mrf.mxu0
    %v3276 = vadd.f32 %v3263, %v3275
    %v3277 = vpop.f32.mrf.mxu0
    %3278 = vdwg.mxu0
    %3279 = vmatpush.bf16.msra.mxu0 %v2822
    %3280 = vmatpush.bf16.msra.mxu0 %v2814
    %3281 = vmatpush.bf16.msra.mxu0 %v2806
    %3282 = vmatpush.bf16.msra.mxu0 %v2798
    %3283 = vmatpush.bf16.msra.mxu0 %v2790
    %3284 = vmatpush.bf16.msra.mxu0 %v2782
    %3285 = vmatpush.bf16.msra.mxu0 %v2774
    %3286 = vmatpush.bf16.msra.mxu0 %v2766
    %3287 = vmatmul.bf16.gmra.mxu0 %v525
    %v3288 = vpop.f32.mrf.mxu0
    %v3289 = vadd.f32 %v3276, %v3288
    %v3290 = vpop.f32.mrf.mxu0
    %3291 = vdwg.mxu0
    %3292 = vmatpush.bf16.msra.mxu0 %v2503
    %3293 = vmatpush.bf16.msra.mxu0 %v2495
    %3294 = vmatpush.bf16.msra.mxu0 %v2487
    %3295 = vmatpush.bf16.msra.mxu0 %v2479
    %3296 = vmatpush.bf16.msra.mxu0 %v2471
    %3297 = vmatpush.bf16.msra.mxu0 %v2463
    %3298 = vmatpush.bf16.msra.mxu0 %v2455
    %3299 = vmatpush.bf16.msra.mxu0 %v2447
    %3300 = vmatmul.bf16.gmra.mxu0 %v520
    %v3301 = vpop.f32.mrf.mxu0
    %v3302 = vadd.f32 0.0, %v3301
    %v3303 = vpop.f32.mrf.mxu0
    %3304 = vdwg.mxu0
    %3305 = vmatpush.bf16.msra.mxu0 %v2567
    %3306 = vmatpush.bf16.msra.mxu0 %v2559
    %3307 = vmatpush.bf16.msra.mxu0 %v2551
    %3308 = vmatpush.bf16.msra.mxu0 %v2543
    %3309 = vmatpush.bf16.msra.mxu0 %v2535
    %3310 = vmatpush.bf16.msra.mxu0 %v2527
    %3311 = vmatpush.bf16.msra.mxu0 %v2519
    %3312 = vmatpush.bf16.msra.mxu0 %v2511
    %3313 = vmatmul.bf16.gmra.mxu0 %v521
    %v3314 = vpop.f32.mrf.mxu0
    %v3315 = vadd.f32 %v3302, %v3314
    %v3316 = vpop.f32.mrf.mxu0
    %3317 = vdwg.mxu0
    %3318 = vmatpush.bf16.msra.mxu0 %v2631
    %3319 = vmatpush.bf16.msra.mxu0 %v2623
    %3320 = vmatpush.bf16.msra.mxu0 %v2615
    %3321 = vmatpush.bf16.msra.mxu0 %v2607
    %3322 = vmatpush.bf16.msra.mxu0 %v2599
    %3323 = vmatpush.bf16.msra.mxu0 %v2591
    %3324 = vmatpush.bf16.msra.mxu0 %v2583
    %3325 = vmatpush.bf16.msra.mxu0 %v2575
    %3326 = vmatmul.bf16.gmra.mxu0 %v522
    %v3327 = vpop.f32.mrf.mxu0
    %v3328 = vadd.f32 %v3315, %v3327
    %v3329 = vpop.f32.mrf.mxu0
    %3330 = vdwg.mxu0
    %3331 = vmatpush.bf16.msra.mxu0 %v2695
    %3332 = vmatpush.bf16.msra.mxu0 %v2687
    %3333 = vmatpush.bf16.msra.mxu0 %v2679
    %3334 = vmatpush.bf16.msra.mxu0 %v2671
    %3335 = vmatpush.bf16.msra.mxu0 %v2663
    %3336 = vmatpush.bf16.msra.mxu0 %v2655
    %3337 = vmatpush.bf16.msra.mxu0 %v2647
    %3338 = vmatpush.bf16.msra.mxu0 %v2639
    %3339 = vmatmul.bf16.gmra.mxu0 %v523
    %v3340 = vpop.f32.mrf.mxu0
    %v3341 = vadd.f32 %v3328, %v3340
    %v3342 = vpop.f32.mrf.mxu0
    %3343 = vdwg.mxu0
    %3344 = vmatpush.bf16.msra.mxu0 %v2759
    %3345 = vmatpush.bf16.msra.mxu0 %v2751
    %3346 = vmatpush.bf16.msra.mxu0 %v2743
    %3347 = vmatpush.bf16.msra.mxu0 %v2735
    %3348 = vmatpush.bf16.msra.mxu0 %v2727
    %3349 = vmatpush.bf16.msra.mxu0 %v2719
    %3350 = vmatpush.bf16.msra.mxu0 %v2711
    %3351 = vmatpush.bf16.msra.mxu0 %v2703
    %3352 = vmatmul.bf16.gmra.mxu0 %v524
    %v3353 = vpop.f32.mrf.mxu0
    %v3354 = vadd.f32 %v3341, %v3353
    %v3355 = vpop.f32.mrf.mxu0
    %3356 = vdwg.mxu0
    %3357 = vmatpush.bf16.msra.mxu0 %v2823
    %3358 = vmatpush.bf16.msra.mxu0 %v2815
    %3359 = vmatpush.bf16.msra.mxu0 %v2807
    %3360 = vmatpush.bf16.msra.mxu0 %v2799
    %3361 = vmatpush.bf16.msra.mxu0 %v2791
    %3362 = vmatpush.bf16.msra.mxu0 %v2783
    %3363 = vmatpush.bf16.msra.mxu0 %v2775
    %3364 = vmatpush.bf16.msra.mxu0 %v2767
    %3365 = vmatmul.bf16.gmra.mxu0 %v525
    %v3366 = vpop.f32.mrf.mxu0
    %v3367 = vadd.f32 %v3354, %v3366
    %v3368 = vpop.f32.mrf.mxu0
    %3369 = vdwg.mxu0
    %3370 = vmatpush.bf16.msra.mxu0 %v2504
    %3371 = vmatpush.bf16.msra.mxu0 %v2496
    %3372 = vmatpush.bf16.msra.mxu0 %v2488
    %3373 = vmatpush.bf16.msra.mxu0 %v2480
    %3374 = vmatpush.bf16.msra.mxu0 %v2472
    %3375 = vmatpush.bf16.msra.mxu0 %v2464
    %3376 = vmatpush.bf16.msra.mxu0 %v2456
    %3377 = vmatpush.bf16.msra.mxu0 %v2448
    %3378 = vmatmul.bf16.gmra.mxu0 %v520
    %v3379 = vpop.f32.mrf.mxu0
    %v3380 = vadd.f32 0.0, %v3379
    %v3381 = vpop.f32.mrf.mxu0
    %3382 = vdwg.mxu0
    %3383 = vmatpush.bf16.msra.mxu0 %v2568
    %3384 = vmatpush.bf16.msra.mxu0 %v2560
    %3385 = vmatpush.bf16.msra.mxu0 %v2552
    %3386 = vmatpush.bf16.msra.mxu0 %v2544
    %3387 = vmatpush.bf16.msra.mxu0 %v2536
    %3388 = vmatpush.bf16.msra.mxu0 %v2528
    %3389 = vmatpush.bf16.msra.mxu0 %v2520
    %3390 = vmatpush.bf16.msra.mxu0 %v2512
    %3391 = vmatmul.bf16.gmra.mxu0 %v521
    %v3392 = vpop.f32.mrf.mxu0
    %v3393 = vadd.f32 %v3380, %v3392
    %v3394 = vpop.f32.mrf.mxu0
    %3395 = vdwg.mxu0
    %3396 = vmatpush.bf16.msra.mxu0 %v2632
    %3397 = vmatpush.bf16.msra.mxu0 %v2624
    %3398 = vmatpush.bf16.msra.mxu0 %v2616
    %3399 = vmatpush.bf16.msra.mxu0 %v2608
    %3400 = vmatpush.bf16.msra.mxu0 %v2600
    %3401 = vmatpush.bf16.msra.mxu0 %v2592
    %3402 = vmatpush.bf16.msra.mxu0 %v2584
    %3403 = vmatpush.bf16.msra.mxu0 %v2576
    %3404 = vmatmul.bf16.gmra.mxu0 %v522
    %v3405 = vpop.f32.mrf.mxu0
    %v3406 = vadd.f32 %v3393, %v3405
    %v3407 = vpop.f32.mrf.mxu0
    %3408 = vdwg.mxu0
    %3409 = vmatpush.bf16.msra.mxu0 %v2696
    %3410 = vmatpush.bf16.msra.mxu0 %v2688
    %3411 = vmatpush.bf16.msra.mxu0 %v2680
    %3412 = vmatpush.bf16.msra.mxu0 %v2672
    %3413 = vmatpush.bf16.msra.mxu0 %v2664
    %3414 = vmatpush.bf16.msra.mxu0 %v2656
    %3415 = vmatpush.bf16.msra.mxu0 %v2648
    %3416 = vmatpush.bf16.msra.mxu0 %v2640
    %3417 = vmatmul.bf16.gmra.mxu0 %v523
    %v3418 = vpop.f32.mrf.mxu0
    %v3419 = vadd.f32 %v3406, %v3418
    %v3420 = vpop.f32.mrf.mxu0
    %3421 = vdwg.mxu0
    %3422 = vmatpush.bf16.msra.mxu0 %v2760
    %3423 = vmatpush.bf16.msra.mxu0 %v2752
    %3424 = vmatpush.bf16.msra.mxu0 %v2744
    %3425 = vmatpush.bf16.msra.mxu0 %v2736
    %3426 = vmatpush.bf16.msra.mxu0 %v2728
    %3427 = vmatpush.bf16.msra.mxu0 %v2720
    %3428 = vmatpush.bf16.msra.mxu0 %v2712
    %3429 = vmatpush.bf16.msra.mxu0 %v2704
    %3430 = vmatmul.bf16.gmra.mxu0 %v524
    %v3431 = vpop.f32.mrf.mxu0
    %v3432 = vadd.f32 %v3419, %v3431
    %v3433 = vpop.f32.mrf.mxu0
    %3434 = vdwg.mxu0
    %3435 = vmatpush.bf16.msra.mxu0 %v2824
    %3436 = vmatpush.bf16.msra.mxu0 %v2816
    %3437 = vmatpush.bf16.msra.mxu0 %v2808
    %3438 = vmatpush.bf16.msra.mxu0 %v2800
    %3439 = vmatpush.bf16.msra.mxu0 %v2792
    %3440 = vmatpush.bf16.msra.mxu0 %v2784
    %3441 = vmatpush.bf16.msra.mxu0 %v2776
    %3442 = vmatpush.bf16.msra.mxu0 %v2768
    %3443 = vmatmul.bf16.gmra.mxu0 %v525
    %v3444 = vpop.f32.mrf.mxu0
    %v3445 = vadd.f32 %v3432, %v3444
    %v3446 = vpop.f32.mrf.mxu0
    %3447 = vdwg.mxu0
    %3448 = vmatpush.bf16.msra.mxu0 %v2505
    %3449 = vmatpush.bf16.msra.mxu0 %v2497
    %3450 = vmatpush.bf16.msra.mxu0 %v2489
    %3451 = vmatpush.bf16.msra.mxu0 %v2481
    %3452 = vmatpush.bf16.msra.mxu0 %v2473
    %3453 = vmatpush.bf16.msra.mxu0 %v2465
    %3454 = vmatpush.bf16.msra.mxu0 %v2457
    %3455 = vmatpush.bf16.msra.mxu0 %v2449
    %3456 = vmatmul.bf16.gmra.mxu0 %v520
    %v3457 = vpop.f32.mrf.mxu0
    %v3458 = vadd.f32 0.0, %v3457
    %v3459 = vpop.f32.mrf.mxu0
    %3460 = vdwg.mxu0
    %3461 = vmatpush.bf16.msra.mxu0 %v2569
    %3462 = vmatpush.bf16.msra.mxu0 %v2561
    %3463 = vmatpush.bf16.msra.mxu0 %v2553
    %3464 = vmatpush.bf16.msra.mxu0 %v2545
    %3465 = vmatpush.bf16.msra.mxu0 %v2537
    %3466 = vmatpush.bf16.msra.mxu0 %v2529
    %3467 = vmatpush.bf16.msra.mxu0 %v2521
    %3468 = vmatpush.bf16.msra.mxu0 %v2513
    %3469 = vmatmul.bf16.gmra.mxu0 %v521
    %v3470 = vpop.f32.mrf.mxu0
    %v3471 = vadd.f32 %v3458, %v3470
    %v3472 = vpop.f32.mrf.mxu0
    %3473 = vdwg.mxu0
    %3474 = vmatpush.bf16.msra.mxu0 %v2633
    %3475 = vmatpush.bf16.msra.mxu0 %v2625
    %3476 = vmatpush.bf16.msra.mxu0 %v2617
    %3477 = vmatpush.bf16.msra.mxu0 %v2609
    %3478 = vmatpush.bf16.msra.mxu0 %v2601
    %3479 = vmatpush.bf16.msra.mxu0 %v2593
    %3480 = vmatpush.bf16.msra.mxu0 %v2585
    %3481 = vmatpush.bf16.msra.mxu0 %v2577
    %3482 = vmatmul.bf16.gmra.mxu0 %v522
    %v3483 = vpop.f32.mrf.mxu0
    %v3484 = vadd.f32 %v3471, %v3483
    %v3485 = vpop.f32.mrf.mxu0
    %3486 = vdwg.mxu0
    %3487 = vmatpush.bf16.msra.mxu0 %v2697
    %3488 = vmatpush.bf16.msra.mxu0 %v2689
    %3489 = vmatpush.bf16.msra.mxu0 %v2681
    %3490 = vmatpush.bf16.msra.mxu0 %v2673
    %3491 = vmatpush.bf16.msra.mxu0 %v2665
    %3492 = vmatpush.bf16.msra.mxu0 %v2657
    %3493 = vmatpush.bf16.msra.mxu0 %v2649
    %3494 = vmatpush.bf16.msra.mxu0 %v2641
    %3495 = vmatmul.bf16.gmra.mxu0 %v523
    %v3496 = vpop.f32.mrf.mxu0
    %v3497 = vadd.f32 %v3484, %v3496
    %v3498 = vpop.f32.mrf.mxu0
    %3499 = vdwg.mxu0
    %3500 = vmatpush.bf16.msra.mxu0 %v2761
    %3501 = vmatpush.bf16.msra.mxu0 %v2753
    %3502 = vmatpush.bf16.msra.mxu0 %v2745
    %3503 = vmatpush.bf16.msra.mxu0 %v2737
    %3504 = vmatpush.bf16.msra.mxu0 %v2729
    %3505 = vmatpush.bf16.msra.mxu0 %v2721
    %3506 = vmatpush.bf16.msra.mxu0 %v2713
    %3507 = vmatpush.bf16.msra.mxu0 %v2705
    %3508 = vmatmul.bf16.gmra.mxu0 %v524
    %v3509 = vpop.f32.mrf.mxu0
    %v3510 = vadd.f32 %v3497, %v3509
    %v3511 = vpop.f32.mrf.mxu0
    %3512 = vdwg.mxu0
    %3513 = vmatpush.bf16.msra.mxu0 %v2825
    %3514 = vmatpush.bf16.msra.mxu0 %v2817
    %3515 = vmatpush.bf16.msra.mxu0 %v2809
    %3516 = vmatpush.bf16.msra.mxu0 %v2801
    %3517 = vmatpush.bf16.msra.mxu0 %v2793
    %3518 = vmatpush.bf16.msra.mxu0 %v2785
    %3519 = vmatpush.bf16.msra.mxu0 %v2777
    %3520 = vmatpush.bf16.msra.mxu0 %v2769
    %3521 = vmatmul.bf16.gmra.mxu0 %v525
    %v3522 = vpop.f32.mrf.mxu0
    %v3523 = vadd.f32 %v3510, %v3522
    %v3524 = vpop.f32.mrf.mxu0
    %3525 = vdwg.mxu0
    %3526 = vmatpush.bf16.msra.mxu0 %v2506
    %3527 = vmatpush.bf16.msra.mxu0 %v2498
    %3528 = vmatpush.bf16.msra.mxu0 %v2490
    %3529 = vmatpush.bf16.msra.mxu0 %v2482
    %3530 = vmatpush.bf16.msra.mxu0 %v2474
    %3531 = vmatpush.bf16.msra.mxu0 %v2466
    %3532 = vmatpush.bf16.msra.mxu0 %v2458
    %3533 = vmatpush.bf16.msra.mxu0 %v2450
    %3534 = vmatmul.bf16.gmra.mxu0 %v520
    %v3535 = vpop.f32.mrf.mxu0
    %v3536 = vadd.f32 0.0, %v3535
    %v3537 = vpop.f32.mrf.mxu0
    %3538 = vdwg.mxu0
    %3539 = vmatpush.bf16.msra.mxu0 %v2570
    %3540 = vmatpush.bf16.msra.mxu0 %v2562
    %3541 = vmatpush.bf16.msra.mxu0 %v2554
    %3542 = vmatpush.bf16.msra.mxu0 %v2546
    %3543 = vmatpush.bf16.msra.mxu0 %v2538
    %3544 = vmatpush.bf16.msra.mxu0 %v2530
    %3545 = vmatpush.bf16.msra.mxu0 %v2522
    %3546 = vmatpush.bf16.msra.mxu0 %v2514
    %3547 = vmatmul.bf16.gmra.mxu0 %v521
    %v3548 = vpop.f32.mrf.mxu0
    %v3549 = vadd.f32 %v3536, %v3548
    %v3550 = vpop.f32.mrf.mxu0
    %3551 = vdwg.mxu0
    %3552 = vmatpush.bf16.msra.mxu0 %v2634
    %3553 = vmatpush.bf16.msra.mxu0 %v2626
    %3554 = vmatpush.bf16.msra.mxu0 %v2618
    %3555 = vmatpush.bf16.msra.mxu0 %v2610
    %3556 = vmatpush.bf16.msra.mxu0 %v2602
    %3557 = vmatpush.bf16.msra.mxu0 %v2594
    %3558 = vmatpush.bf16.msra.mxu0 %v2586
    %3559 = vmatpush.bf16.msra.mxu0 %v2578
    %3560 = vmatmul.bf16.gmra.mxu0 %v522
    %v3561 = vpop.f32.mrf.mxu0
    %v3562 = vadd.f32 %v3549, %v3561
    %v3563 = vpop.f32.mrf.mxu0
    %3564 = vdwg.mxu0
    %3565 = vmatpush.bf16.msra.mxu0 %v2698
    %3566 = vmatpush.bf16.msra.mxu0 %v2690
    %3567 = vmatpush.bf16.msra.mxu0 %v2682
    %3568 = vmatpush.bf16.msra.mxu0 %v2674
    %3569 = vmatpush.bf16.msra.mxu0 %v2666
    %3570 = vmatpush.bf16.msra.mxu0 %v2658
    %3571 = vmatpush.bf16.msra.mxu0 %v2650
    %3572 = vmatpush.bf16.msra.mxu0 %v2642
    %3573 = vmatmul.bf16.gmra.mxu0 %v523
    %v3574 = vpop.f32.mrf.mxu0
    %v3575 = vadd.f32 %v3562, %v3574
    %v3576 = vpop.f32.mrf.mxu0
    %3577 = vdwg.mxu0
    %3578 = vmatpush.bf16.msra.mxu0 %v2762
    %3579 = vmatpush.bf16.msra.mxu0 %v2754
    %3580 = vmatpush.bf16.msra.mxu0 %v2746
    %3581 = vmatpush.bf16.msra.mxu0 %v2738
    %3582 = vmatpush.bf16.msra.mxu0 %v2730
    %3583 = vmatpush.bf16.msra.mxu0 %v2722
    %3584 = vmatpush.bf16.msra.mxu0 %v2714
    %3585 = vmatpush.bf16.msra.mxu0 %v2706
    %3586 = vmatmul.bf16.gmra.mxu0 %v524
    %v3587 = vpop.f32.mrf.mxu0
    %v3588 = vadd.f32 %v3575, %v3587
    %v3589 = vpop.f32.mrf.mxu0
    %3590 = vdwg.mxu0
    %3591 = vmatpush.bf16.msra.mxu0 %v2826
    %3592 = vmatpush.bf16.msra.mxu0 %v2818
    %3593 = vmatpush.bf16.msra.mxu0 %v2810
    %3594 = vmatpush.bf16.msra.mxu0 %v2802
    %3595 = vmatpush.bf16.msra.mxu0 %v2794
    %3596 = vmatpush.bf16.msra.mxu0 %v2786
    %3597 = vmatpush.bf16.msra.mxu0 %v2778
    %3598 = vmatpush.bf16.msra.mxu0 %v2770
    %3599 = vmatmul.bf16.gmra.mxu0 %v525
    %v3600 = vpop.f32.mrf.mxu0
    %v3601 = vadd.f32 %v3588, %v3600
    %v3602 = vpop.f32.mrf.mxu0
    %3603 = vdwg.mxu0
    %3604 = vmatpush.bf16.msra.mxu0 %v2507
    %3605 = vmatpush.bf16.msra.mxu0 %v2499
    %3606 = vmatpush.bf16.msra.mxu0 %v2491
    %3607 = vmatpush.bf16.msra.mxu0 %v2483
    %3608 = vmatpush.bf16.msra.mxu0 %v2475
    %3609 = vmatpush.bf16.msra.mxu0 %v2467
    %3610 = vmatpush.bf16.msra.mxu0 %v2459
    %3611 = vmatpush.bf16.msra.mxu0 %v2451
    %3612 = vmatmul.bf16.gmra.mxu0 %v520
    %v3613 = vpop.f32.mrf.mxu0
    %v3614 = vadd.f32 0.0, %v3613
    %v3615 = vpop.f32.mrf.mxu0
    %3616 = vdwg.mxu0
    %3617 = vmatpush.bf16.msra.mxu0 %v2571
    %3618 = vmatpush.bf16.msra.mxu0 %v2563
    %3619 = vmatpush.bf16.msra.mxu0 %v2555
    %3620 = vmatpush.bf16.msra.mxu0 %v2547
    %3621 = vmatpush.bf16.msra.mxu0 %v2539
    %3622 = vmatpush.bf16.msra.mxu0 %v2531
    %3623 = vmatpush.bf16.msra.mxu0 %v2523
    %3624 = vmatpush.bf16.msra.mxu0 %v2515
    %3625 = vmatmul.bf16.gmra.mxu0 %v521
    %v3626 = vpop.f32.mrf.mxu0
    %v3627 = vadd.f32 %v3614, %v3626
    %v3628 = vpop.f32.mrf.mxu0
    %3629 = vdwg.mxu0
    %3630 = vmatpush.bf16.msra.mxu0 %v2635
    %3631 = vmatpush.bf16.msra.mxu0 %v2627
    %3632 = vmatpush.bf16.msra.mxu0 %v2619
    %3633 = vmatpush.bf16.msra.mxu0 %v2611
    %3634 = vmatpush.bf16.msra.mxu0 %v2603
    %3635 = vmatpush.bf16.msra.mxu0 %v2595
    %3636 = vmatpush.bf16.msra.mxu0 %v2587
    %3637 = vmatpush.bf16.msra.mxu0 %v2579
    %3638 = vmatmul.bf16.gmra.mxu0 %v522
    %v3639 = vpop.f32.mrf.mxu0
    %v3640 = vadd.f32 %v3627, %v3639
    %v3641 = vpop.f32.mrf.mxu0
    %3642 = vdwg.mxu0
    %3643 = vmatpush.bf16.msra.mxu0 %v2699
    %3644 = vmatpush.bf16.msra.mxu0 %v2691
    %3645 = vmatpush.bf16.msra.mxu0 %v2683
    %3646 = vmatpush.bf16.msra.mxu0 %v2675
    %3647 = vmatpush.bf16.msra.mxu0 %v2667
    %3648 = vmatpush.bf16.msra.mxu0 %v2659
    %3649 = vmatpush.bf16.msra.mxu0 %v2651
    %3650 = vmatpush.bf16.msra.mxu0 %v2643
    %3651 = vmatmul.bf16.gmra.mxu0 %v523
    %v3652 = vpop.f32.mrf.mxu0
    %v3653 = vadd.f32 %v3640, %v3652
    %v3654 = vpop.f32.mrf.mxu0
    %3655 = vdwg.mxu0
    %3656 = vmatpush.bf16.msra.mxu0 %v2763
    %3657 = vmatpush.bf16.msra.mxu0 %v2755
    %3658 = vmatpush.bf16.msra.mxu0 %v2747
    %3659 = vmatpush.bf16.msra.mxu0 %v2739
    %3660 = vmatpush.bf16.msra.mxu0 %v2731
    %3661 = vmatpush.bf16.msra.mxu0 %v2723
    %3662 = vmatpush.bf16.msra.mxu0 %v2715
    %3663 = vmatpush.bf16.msra.mxu0 %v2707
    %3664 = vmatmul.bf16.gmra.mxu0 %v524
    %v3665 = vpop.f32.mrf.mxu0
    %v3666 = vadd.f32 %v3653, %v3665
    %v3667 = vpop.f32.mrf.mxu0
    %3668 = vdwg.mxu0
    %3669 = vmatpush.bf16.msra.mxu0 %v2827
    %3670 = vmatpush.bf16.msra.mxu0 %v2819
    %3671 = vmatpush.bf16.msra.mxu0 %v2811
    %3672 = vmatpush.bf16.msra.mxu0 %v2803
    %3673 = vmatpush.bf16.msra.mxu0 %v2795
    %3674 = vmatpush.bf16.msra.mxu0 %v2787
    %3675 = vmatpush.bf16.msra.mxu0 %v2779
    %3676 = vmatpush.bf16.msra.mxu0 %v2771
    %3677 = vmatmul.bf16.gmra.mxu0 %v525
    %v3678 = vpop.f32.mrf.mxu0
    %v3679 = vadd.f32 %v3666, %v3678
    %v3680 = vpop.f32.mrf.mxu0
    %3681 = vdwg.mxu0
    %3682 = vmatpush.bf16.msra.mxu0 %v2508
    %3683 = vmatpush.bf16.msra.mxu0 %v2500
    %3684 = vmatpush.bf16.msra.mxu0 %v2492
    %3685 = vmatpush.bf16.msra.mxu0 %v2484
    %3686 = vmatpush.bf16.msra.mxu0 %v2476
    %3687 = vmatpush.bf16.msra.mxu0 %v2468
    %3688 = vmatpush.bf16.msra.mxu0 %v2460
    %3689 = vmatpush.bf16.msra.mxu0 %v2452
    %3690 = vmatmul.bf16.gmra.mxu0 %v520
    %v3691 = vpop.f32.mrf.mxu0
    %v3692 = vadd.f32 0.0, %v3691
    %v3693 = vpop.f32.mrf.mxu0
    %3694 = vdwg.mxu0
    %3695 = vmatpush.bf16.msra.mxu0 %v2572
    %3696 = vmatpush.bf16.msra.mxu0 %v2564
    %3697 = vmatpush.bf16.msra.mxu0 %v2556
    %3698 = vmatpush.bf16.msra.mxu0 %v2548
    %3699 = vmatpush.bf16.msra.mxu0 %v2540
    %3700 = vmatpush.bf16.msra.mxu0 %v2532
    %3701 = vmatpush.bf16.msra.mxu0 %v2524
    %3702 = vmatpush.bf16.msra.mxu0 %v2516
    %3703 = vmatmul.bf16.gmra.mxu0 %v521
    %v3704 = vpop.f32.mrf.mxu0
    %v3705 = vadd.f32 %v3692, %v3704
    %v3706 = vpop.f32.mrf.mxu0
    %3707 = vdwg.mxu0
    %3708 = vmatpush.bf16.msra.mxu0 %v2636
    %3709 = vmatpush.bf16.msra.mxu0 %v2628
    %3710 = vmatpush.bf16.msra.mxu0 %v2620
    %3711 = vmatpush.bf16.msra.mxu0 %v2612
    %3712 = vmatpush.bf16.msra.mxu0 %v2604
    %3713 = vmatpush.bf16.msra.mxu0 %v2596
    %3714 = vmatpush.bf16.msra.mxu0 %v2588
    %3715 = vmatpush.bf16.msra.mxu0 %v2580
    %3716 = vmatmul.bf16.gmra.mxu0 %v522
    %v3717 = vpop.f32.mrf.mxu0
    %v3718 = vadd.f32 %v3705, %v3717
    %v3719 = vpop.f32.mrf.mxu0
    %3720 = vdwg.mxu0
    %3721 = vmatpush.bf16.msra.mxu0 %v2700
    %3722 = vmatpush.bf16.msra.mxu0 %v2692
    %3723 = vmatpush.bf16.msra.mxu0 %v2684
    %3724 = vmatpush.bf16.msra.mxu0 %v2676
    %3725 = vmatpush.bf16.msra.mxu0 %v2668
    %3726 = vmatpush.bf16.msra.mxu0 %v2660
    %3727 = vmatpush.bf16.msra.mxu0 %v2652
    %3728 = vmatpush.bf16.msra.mxu0 %v2644
    %3729 = vmatmul.bf16.gmra.mxu0 %v523
    %v3730 = vpop.f32.mrf.mxu0
    %v3731 = vadd.f32 %v3718, %v3730
    %v3732 = vpop.f32.mrf.mxu0
    %3733 = vdwg.mxu0
    %3734 = vmatpush.bf16.msra.mxu0 %v2764
    %3735 = vmatpush.bf16.msra.mxu0 %v2756
    %3736 = vmatpush.bf16.msra.mxu0 %v2748
    %3737 = vmatpush.bf16.msra.mxu0 %v2740
    %3738 = vmatpush.bf16.msra.mxu0 %v2732
    %3739 = vmatpush.bf16.msra.mxu0 %v2724
    %3740 = vmatpush.bf16.msra.mxu0 %v2716
    %3741 = vmatpush.bf16.msra.mxu0 %v2708
    %3742 = vmatmul.bf16.gmra.mxu0 %v524
    %v3743 = vpop.f32.mrf.mxu0
    %v3744 = vadd.f32 %v3731, %v3743
    %v3745 = vpop.f32.mrf.mxu0
    %3746 = vdwg.mxu0
    %3747 = vmatpush.bf16.msra.mxu0 %v2828
    %3748 = vmatpush.bf16.msra.mxu0 %v2820
    %3749 = vmatpush.bf16.msra.mxu0 %v2812
    %3750 = vmatpush.bf16.msra.mxu0 %v2804
    %3751 = vmatpush.bf16.msra.mxu0 %v2796
    %3752 = vmatpush.bf16.msra.mxu0 %v2788
    %3753 = vmatpush.bf16.msra.mxu0 %v2780
    %3754 = vmatpush.bf16.msra.mxu0 %v2772
    %3755 = vmatmul.bf16.gmra.mxu0 %v525
    %v3756 = vpop.f32.mrf.mxu0
    %v3757 = vadd.f32 %v3744, %v3756
    %v3758 = vpop.f32.mrf.mxu0
    %3759 = vdwg.mxu0
    %3760 = vmatpush.bf16.msra.mxu0 %v2509
    %3761 = vmatpush.bf16.msra.mxu0 %v2501
    %3762 = vmatpush.bf16.msra.mxu0 %v2493
    %3763 = vmatpush.bf16.msra.mxu0 %v2485
    %3764 = vmatpush.bf16.msra.mxu0 %v2477
    %3765 = vmatpush.bf16.msra.mxu0 %v2469
    %3766 = vmatpush.bf16.msra.mxu0 %v2461
    %3767 = vmatpush.bf16.msra.mxu0 %v2453
    %3768 = vmatmul.bf16.gmra.mxu0 %v520
    %v3769 = vpop.f32.mrf.mxu0
    %v3770 = vadd.f32 0.0, %v3769
    %v3771 = vpop.f32.mrf.mxu0
    %3772 = vdwg.mxu0
    %3773 = vmatpush.bf16.msra.mxu0 %v2573
    %3774 = vmatpush.bf16.msra.mxu0 %v2565
    %3775 = vmatpush.bf16.msra.mxu0 %v2557
    %3776 = vmatpush.bf16.msra.mxu0 %v2549
    %3777 = vmatpush.bf16.msra.mxu0 %v2541
    %3778 = vmatpush.bf16.msra.mxu0 %v2533
    %3779 = vmatpush.bf16.msra.mxu0 %v2525
    %3780 = vmatpush.bf16.msra.mxu0 %v2517
    %3781 = vmatmul.bf16.gmra.mxu0 %v521
    %v3782 = vpop.f32.mrf.mxu0
    %v3783 = vadd.f32 %v3770, %v3782
    %v3784 = vpop.f32.mrf.mxu0
    %3785 = vdwg.mxu0
    %3786 = vmatpush.bf16.msra.mxu0 %v2637
    %3787 = vmatpush.bf16.msra.mxu0 %v2629
    %3788 = vmatpush.bf16.msra.mxu0 %v2621
    %3789 = vmatpush.bf16.msra.mxu0 %v2613
    %3790 = vmatpush.bf16.msra.mxu0 %v2605
    %3791 = vmatpush.bf16.msra.mxu0 %v2597
    %3792 = vmatpush.bf16.msra.mxu0 %v2589
    %3793 = vmatpush.bf16.msra.mxu0 %v2581
    %3794 = vmatmul.bf16.gmra.mxu0 %v522
    %v3795 = vpop.f32.mrf.mxu0
    %v3796 = vadd.f32 %v3783, %v3795
    %v3797 = vpop.f32.mrf.mxu0
    %3798 = vdwg.mxu0
    %3799 = vmatpush.bf16.msra.mxu0 %v2701
    %3800 = vmatpush.bf16.msra.mxu0 %v2693
    %3801 = vmatpush.bf16.msra.mxu0 %v2685
    %3802 = vmatpush.bf16.msra.mxu0 %v2677
    %3803 = vmatpush.bf16.msra.mxu0 %v2669
    %3804 = vmatpush.bf16.msra.mxu0 %v2661
    %3805 = vmatpush.bf16.msra.mxu0 %v2653
    %3806 = vmatpush.bf16.msra.mxu0 %v2645
    %3807 = vmatmul.bf16.gmra.mxu0 %v523
    %v3808 = vpop.f32.mrf.mxu0
    %v3809 = vadd.f32 %v3796, %v3808
    %v3810 = vpop.f32.mrf.mxu0
    %3811 = vdwg.mxu0
    %3812 = vmatpush.bf16.msra.mxu0 %v2765
    %3813 = vmatpush.bf16.msra.mxu0 %v2757
    %3814 = vmatpush.bf16.msra.mxu0 %v2749
    %3815 = vmatpush.bf16.msra.mxu0 %v2741
    %3816 = vmatpush.bf16.msra.mxu0 %v2733
    %3817 = vmatpush.bf16.msra.mxu0 %v2725
    %3818 = vmatpush.bf16.msra.mxu0 %v2717
    %3819 = vmatpush.bf16.msra.mxu0 %v2709
    %3820 = vmatmul.bf16.gmra.mxu0 %v524
    %v3821 = vpop.f32.mrf.mxu0
    %v3822 = vadd.f32 %v3809, %v3821
    %v3823 = vpop.f32.mrf.mxu0
    %3824 = vdwg.mxu0
    %3825 = vmatpush.bf16.msra.mxu0 %v2829
    %3826 = vmatpush.bf16.msra.mxu0 %v2821
    %3827 = vmatpush.bf16.msra.mxu0 %v2813
    %3828 = vmatpush.bf16.msra.mxu0 %v2805
    %3829 = vmatpush.bf16.msra.mxu0 %v2797
    %3830 = vmatpush.bf16.msra.mxu0 %v2789
    %3831 = vmatpush.bf16.msra.mxu0 %v2781
    %3832 = vmatpush.bf16.msra.mxu0 %v2773
    %3833 = vmatmul.bf16.gmra.mxu0 %v525
    %v3834 = vpop.f32.mrf.mxu0
    %v3835 = vadd.f32 %v3822, %v3834
    %v3836 = vpop.f32.mrf.mxu0
    %3837 = vdwg.mxu0
    %v4222 = vunpack.c.l.b16 %v526
    %v4223 = vunpack.c.h.b16 %v526
    %v4224 = vunpack.c.l.b16 %v527
    %v4225 = vunpack.c.h.b16 %v527
    %v4226 = vunpack.c.l.b16 %v528
    %v4227 = vunpack.c.h.b16 %v528
    %v4228 = vunpack.c.l.b16 %v529
    %v4229 = vunpack.c.h.b16 %v529
    %v4230 = vunpack.c.l.b16 %v530
    %v4231 = vunpack.c.h.b16 %v530
    %v4232 = vunpack.c.l.b16 %v531
    %v4233 = vunpack.c.h.b16 %v531
    %v4234 = vunpack.c.l.b16 %v532
    %v4235 = vunpack.c.h.b16 %v532
    %v4236 = vunpack.c.l.b16 %v533
    %v4237 = vunpack.c.h.b16 %v533
    %v4238 = vunpack.c.l.b16 %v534
    %v4239 = vunpack.c.h.b16 %v534
    %v4240 = vunpack.c.l.b16 %v535
    %v4241 = vunpack.c.h.b16 %v535
    %v4242 = vunpack.c.l.b16 %v536
    %v4243 = vunpack.c.h.b16 %v536
    %v4244 = vunpack.c.l.b16 %v537
    %v4245 = vunpack.c.h.b16 %v537
    %v4246 = vunpack.c.l.b16 %v538
    %v4247 = vunpack.c.h.b16 %v538
    %v4248 = vunpack.c.l.b16 %v539
    %v4249 = vunpack.c.h.b16 %v539
    %v4250 = vunpack.c.l.b16 %v540
    %v4251 = vunpack.c.h.b16 %v540
    %v4252 = vunpack.c.l.b16 %v541
    %v4253 = vunpack.c.h.b16 %v541
    %v4254 = vunpack.c.l.b16 %v542
    %v4255 = vunpack.c.h.b16 %v542
    %v4256 = vunpack.c.l.b16 %v543
    %v4257 = vunpack.c.h.b16 %v543
    %v4258 = vunpack.c.l.b16 %v544
    %v4259 = vunpack.c.h.b16 %v544
    %v4260 = vunpack.c.l.b16 %v545
    %v4261 = vunpack.c.h.b16 %v545
    %v4262 = vunpack.c.l.b16 %v546
    %v4263 = vunpack.c.h.b16 %v546
    %v4264 = vunpack.c.l.b16 %v547
    %v4265 = vunpack.c.h.b16 %v547
    %v4266 = vunpack.c.l.b16 %v548
    %v4267 = vunpack.c.h.b16 %v548
    %v4268 = vunpack.c.l.b16 %v549
    %v4269 = vunpack.c.h.b16 %v549
    %v4270 = vunpack.c.l.b16 %v550
    %v4271 = vunpack.c.h.b16 %v550
    %v4272 = vunpack.c.l.b16 %v551
    %v4273 = vunpack.c.h.b16 %v551
    %v4274 = vunpack.c.l.b16 %v552
    %v4275 = vunpack.c.h.b16 %v552
    %v4276 = vunpack.c.l.b16 %v553
    %v4277 = vunpack.c.h.b16 %v553
    %v4278 = vunpack.c.l.b16 %v554
    %v4279 = vunpack.c.h.b16 %v554
    %v4280 = vunpack.c.l.b16 %v555
    %v4281 = vunpack.c.h.b16 %v555
    %v4282 = vunpack.c.l.b16 %v556
    %v4283 = vunpack.c.h.b16 %v556
    %v4284 = vunpack.c.l.b16 %v557
    %v4285 = vunpack.c.h.b16 %v557
    %v4286 = vunpack.c.l.b16 %v558
    %v4287 = vunpack.c.h.b16 %v558
    %v4288 = vunpack.c.l.b16 %v559
    %v4289 = vunpack.c.h.b16 %v559
    %v4290 = vunpack.c.l.b16 %v560
    %v4291 = vunpack.c.h.b16 %v560
    %v4292 = vunpack.c.l.b16 %v561
    %v4293 = vunpack.c.h.b16 %v561
    %v4294 = vunpack.c.l.b16 %v562
    %v4295 = vunpack.c.h.b16 %v562
    %v4296 = vunpack.c.l.b16 %v563
    %v4297 = vunpack.c.h.b16 %v563
    %v4298 = vunpack.c.l.b16 %v564
    %v4299 = vunpack.c.h.b16 %v564
    %v4300 = vunpack.c.l.b16 %v565
    %v4301 = vunpack.c.h.b16 %v565
    %v4302 = vunpack.c.l.b16 %v566
    %v4303 = vunpack.c.h.b16 %v566
    %v4304 = vunpack.c.l.b16 %v567
    %v4305 = vunpack.c.h.b16 %v567
    %v4306 = vunpack.c.l.b16 %v568
    %v4307 = vunpack.c.h.b16 %v568
    %v4308 = vunpack.c.l.b16 %v569
    %v4309 = vunpack.c.h.b16 %v569
    %v4310 = vunpack.c.l.b16 %v570
    %v4311 = vunpack.c.h.b16 %v570
    %v4312 = vunpack.c.l.b16 %v571
    %v4313 = vunpack.c.h.b16 %v571
    %v4314 = vunpack.c.l.b16 %v572
    %v4315 = vunpack.c.h.b16 %v572
    %v4316 = vunpack.c.l.b16 %v573
    %v4317 = vunpack.c.h.b16 %v573
    %v4318 = vunpack.c.l.b16 %v574
    %v4319 = vunpack.c.h.b16 %v574
    %v4320 = vunpack.c.l.b16 %v575
    %v4321 = vunpack.c.h.b16 %v575
    %v4322 = vunpack.c.l.b16 %v576
    %v4323 = vunpack.c.h.b16 %v576
    %v4324 = vunpack.c.l.b16 %v577
    %v4325 = vunpack.c.h.b16 %v577
    %v4326 = vunpack.c.l.b16 %v578
    %v4327 = vunpack.c.h.b16 %v578
    %v4328 = vunpack.c.l.b16 %v579
    %v4329 = vunpack.c.h.b16 %v579
    %v4330 = vunpack.c.l.b16 %v580
    %v4331 = vunpack.c.h.b16 %v580
    %v4332 = vunpack.c.l.b16 %v581
    %v4333 = vunpack.c.h.b16 %v581
    %v4334 = vunpack.c.l.b16 %v582
    %v4335 = vunpack.c.h.b16 %v582
    %v4336 = vunpack.c.l.b16 %v583
    %v4337 = vunpack.c.h.b16 %v583
    %v4338 = vunpack.c.l.b16 %v584
    %v4339 = vunpack.c.h.b16 %v584
    %v4340 = vunpack.c.l.b16 %v585
    %v4341 = vunpack.c.h.b16 %v585
    %v4342 = vunpack.c.l.b16 %v586
    %v4343 = vunpack.c.h.b16 %v586
    %v4344 = vunpack.c.l.b16 %v587
    %v4345 = vunpack.c.h.b16 %v587
    %v4346 = vunpack.c.l.b16 %v588
    %v4347 = vunpack.c.h.b16 %v588
    %v4348 = vunpack.c.l.b16 %v589
    %v4349 = vunpack.c.h.b16 %v589
    %v4350 = vunpack.c.l.b16 %v590
    %v4351 = vunpack.c.h.b16 %v590
    %v4352 = vunpack.c.l.b16 %v591
    %v4353 = vunpack.c.h.b16 %v591
    %v4354 = vunpack.c.l.b16 %v592
    %v4355 = vunpack.c.h.b16 %v592
    %v4356 = vunpack.c.l.b16 %v593
    %v4357 = vunpack.c.h.b16 %v593
    %v4358 = vunpack.c.l.b16 %v594
    %v4359 = vunpack.c.h.b16 %v594
    %v4360 = vunpack.c.l.b16 %v595
    %v4361 = vunpack.c.h.b16 %v595
    %v4362 = vunpack.c.l.b16 %v596
    %v4363 = vunpack.c.h.b16 %v596
    %v4364 = vunpack.c.l.b16 %v597
    %v4365 = vunpack.c.h.b16 %v597
    %v4366 = vunpack.c.l.b16 %v598
    %v4367 = vunpack.c.h.b16 %v598
    %v4368 = vunpack.c.l.b16 %v599
    %v4369 = vunpack.c.h.b16 %v599
    %v4370 = vunpack.c.l.b16 %v600
    %v4371 = vunpack.c.h.b16 %v600
    %v4372 = vunpack.c.l.b16 %v601
    %v4373 = vunpack.c.h.b16 %v601
    %v4374 = vunpack.c.l.b16 %v602
    %v4375 = vunpack.c.h.b16 %v602
    %v4376 = vunpack.c.l.b16 %v603
    %v4377 = vunpack.c.h.b16 %v603
    %v4378 = vunpack.c.l.b16 %v604
    %v4379 = vunpack.c.h.b16 %v604
    %v4380 = vunpack.c.l.b16 %v605
    %v4381 = vunpack.c.h.b16 %v605
    %v4382 = vunpack.c.l.b16 %v606
    %v4383 = vunpack.c.h.b16 %v606
    %v4384 = vunpack.c.l.b16 %v607
    %v4385 = vunpack.c.h.b16 %v607
    %v4386 = vunpack.c.l.b16 %v608
    %v4387 = vunpack.c.h.b16 %v608
    %v4388 = vunpack.c.l.b16 %v609
    %v4389 = vunpack.c.h.b16 %v609
    %v4390 = vunpack.c.l.b16 %v610
    %v4391 = vunpack.c.h.b16 %v610
    %v4392 = vunpack.c.l.b16 %v611
    %v4393 = vunpack.c.h.b16 %v611
    %v4394 = vunpack.c.l.b16 %v612
    %v4395 = vunpack.c.h.b16 %v612
    %v4396 = vunpack.c.l.b16 %v613
    %v4397 = vunpack.c.h.b16 %v613
    %v4398 = vunpack.c.l.b16 %v614
    %v4399 = vunpack.c.h.b16 %v614
    %v4400 = vunpack.c.l.b16 %v615
    %v4401 = vunpack.c.h.b16 %v615
    %v4402 = vunpack.c.l.b16 %v616
    %v4403 = vunpack.c.h.b16 %v616
    %v4404 = vunpack.c.l.b16 %v617
    %v4405 = vunpack.c.h.b16 %v617
    %v4406 = vunpack.c.l.b16 %v618
    %v4407 = vunpack.c.h.b16 %v618
    %v4408 = vunpack.c.l.b16 %v619
    %v4409 = vunpack.c.h.b16 %v619
    %v4410 = vunpack.c.l.b16 %v620
    %v4411 = vunpack.c.h.b16 %v620
    %v4412 = vunpack.c.l.b16 %v621
    %v4413 = vunpack.c.h.b16 %v621
    %v4414 = vunpack.c.l.b16 %v622
    %v4415 = vunpack.c.h.b16 %v622
    %v4416 = vunpack.c.l.b16 %v623
    %v4417 = vunpack.c.h.b16 %v623
    %v4418 = vunpack.c.l.b16 %v624
    %v4419 = vunpack.c.h.b16 %v624
    %v4420 = vunpack.c.l.b16 %v625
    %v4421 = vunpack.c.h.b16 %v625
    %v4422 = vunpack.c.l.b16 %v626
    %v4423 = vunpack.c.h.b16 %v626
    %v4424 = vunpack.c.l.b16 %v627
    %v4425 = vunpack.c.h.b16 %v627
    %v4426 = vunpack.c.l.b16 %v628
    %v4427 = vunpack.c.h.b16 %v628
    %v4428 = vunpack.c.l.b16 %v629
    %v4429 = vunpack.c.h.b16 %v629
    %v4430 = vunpack.c.l.b16 %v630
    %v4431 = vunpack.c.h.b16 %v630
    %v4432 = vunpack.c.l.b16 %v631
    %v4433 = vunpack.c.h.b16 %v631
    %v4434 = vunpack.c.l.b16 %v632
    %v4435 = vunpack.c.h.b16 %v632
    %v4436 = vunpack.c.l.b16 %v633
    %v4437 = vunpack.c.h.b16 %v633
    %v4438 = vunpack.c.l.b16 %v634
    %v4439 = vunpack.c.h.b16 %v634
    %v4440 = vunpack.c.l.b16 %v635
    %v4441 = vunpack.c.h.b16 %v635
    %v4442 = vunpack.c.l.b16 %v636
    %v4443 = vunpack.c.h.b16 %v636
    %v4444 = vunpack.c.l.b16 %v637
    %v4445 = vunpack.c.h.b16 %v637
    %v4446 = vunpack.c.l.b16 %v638
    %v4447 = vunpack.c.h.b16 %v638
    %v4448 = vunpack.c.l.b16 %v639
    %v4449 = vunpack.c.h.b16 %v639
    %v4450 = vunpack.c.l.b16 %v640
    %v4451 = vunpack.c.h.b16 %v640
    %v4452 = vunpack.c.l.b16 %v641
    %v4453 = vunpack.c.h.b16 %v641
    %v4454 = vunpack.c.l.b16 %v642
    %v4455 = vunpack.c.h.b16 %v642
    %v4456 = vunpack.c.l.b16 %v643
    %v4457 = vunpack.c.h.b16 %v643
    %v4458 = vunpack.c.l.b16 %v644
    %v4459 = vunpack.c.h.b16 %v644
    %v4460 = vunpack.c.l.b16 %v645
    %v4461 = vunpack.c.h.b16 %v645
    %v4462 = vunpack.c.l.b16 %v646
    %v4463 = vunpack.c.h.b16 %v646
    %v4464 = vunpack.c.l.b16 %v647
    %v4465 = vunpack.c.h.b16 %v647
    %v4466 = vunpack.c.l.b16 %v648
    %v4467 = vunpack.c.h.b16 %v648
    %v4468 = vunpack.c.l.b16 %v649
    %v4469 = vunpack.c.h.b16 %v649
    %v4470 = vunpack.c.l.b16 %v650
    %v4471 = vunpack.c.h.b16 %v650
    %v4472 = vunpack.c.l.b16 %v651
    %v4473 = vunpack.c.h.b16 %v651
    %v4474 = vunpack.c.l.b16 %v652
    %v4475 = vunpack.c.h.b16 %v652
    %v4476 = vunpack.c.l.b16 %v653
    %v4477 = vunpack.c.h.b16 %v653
    %v4478 = vunpack.c.l.b16 %v654
    %v4479 = vunpack.c.h.b16 %v654
    %v4480 = vunpack.c.l.b16 %v655
    %v4481 = vunpack.c.h.b16 %v655
    %v4482 = vunpack.c.l.b16 %v656
    %v4483 = vunpack.c.h.b16 %v656
    %v4484 = vunpack.c.l.b16 %v657
    %v4485 = vunpack.c.h.b16 %v657
    %v4486 = vunpack.c.l.b16 %v658
    %v4487 = vunpack.c.h.b16 %v658
    %v4488 = vunpack.c.l.b16 %v659
    %v4489 = vunpack.c.h.b16 %v659
    %v4490 = vunpack.c.l.b16 %v660
    %v4491 = vunpack.c.h.b16 %v660
    %v4492 = vunpack.c.l.b16 %v661
    %v4493 = vunpack.c.h.b16 %v661
    %v4494 = vunpack.c.l.b16 %v662
    %v4495 = vunpack.c.h.b16 %v662
    %v4496 = vunpack.c.l.b16 %v663
    %v4497 = vunpack.c.h.b16 %v663
    %v4498 = vunpack.c.l.b16 %v664
    %v4499 = vunpack.c.h.b16 %v664
    %v4500 = vunpack.c.l.b16 %v665
    %v4501 = vunpack.c.h.b16 %v665
    %v4502 = vunpack.c.l.b16 %v666
    %v4503 = vunpack.c.h.b16 %v666
    %v4504 = vunpack.c.l.b16 %v667
    %v4505 = vunpack.c.h.b16 %v667
    %v4506 = vunpack.c.l.b16 %v668
    %v4507 = vunpack.c.h.b16 %v668
    %v4508 = vunpack.c.l.b16 %v669
    %v4509 = vunpack.c.h.b16 %v669
    %v4510 = vunpack.c.l.b16 %v670
    %v4511 = vunpack.c.h.b16 %v670
    %v4512 = vunpack.c.l.b16 %v671
    %v4513 = vunpack.c.h.b16 %v671
    %v4514 = vunpack.c.l.b16 %v672
    %v4515 = vunpack.c.h.b16 %v672
    %v4516 = vunpack.c.l.b16 %v673
    %v4517 = vunpack.c.h.b16 %v673
    %v4518 = vunpack.c.l.b16 %v674
    %v4519 = vunpack.c.h.b16 %v674
    %v4520 = vunpack.c.l.b16 %v675
    %v4521 = vunpack.c.h.b16 %v675
    %v4522 = vunpack.c.l.b16 %v676
    %v4523 = vunpack.c.h.b16 %v676
    %v4524 = vunpack.c.l.b16 %v677
    %v4525 = vunpack.c.h.b16 %v677
    %v4526 = vunpack.c.l.b16 %v678
    %v4527 = vunpack.c.h.b16 %v678
    %v4528 = vunpack.c.l.b16 %v679
    %v4529 = vunpack.c.h.b16 %v679
    %v4530 = vunpack.c.l.b16 %v680
    %v4531 = vunpack.c.h.b16 %v680
    %v4532 = vunpack.c.l.b16 %v681
    %v4533 = vunpack.c.h.b16 %v681
    %v4534 = vunpack.c.l.b16 %v682
    %v4535 = vunpack.c.h.b16 %v682
    %v4536 = vunpack.c.l.b16 %v683
    %v4537 = vunpack.c.h.b16 %v683
    %v4538 = vunpack.c.l.b16 %v684
    %v4539 = vunpack.c.h.b16 %v684
    %v4540 = vunpack.c.l.b16 %v685
    %v4541 = vunpack.c.h.b16 %v685
    %v4542 = vunpack.c.l.b16 %v686
    %v4543 = vunpack.c.h.b16 %v686
    %v4544 = vunpack.c.l.b16 %v687
    %v4545 = vunpack.c.h.b16 %v687
    %v4546 = vunpack.c.l.b16 %v688
    %v4547 = vunpack.c.h.b16 %v688
    %v4548 = vunpack.c.l.b16 %v689
    %v4549 = vunpack.c.h.b16 %v689
    %v4550 = vunpack.c.l.b16 %v690
    %v4551 = vunpack.c.h.b16 %v690
    %v4552 = vunpack.c.l.b16 %v691
    %v4553 = vunpack.c.h.b16 %v691
    %v4554 = vunpack.c.l.b16 %v692
    %v4555 = vunpack.c.h.b16 %v692
    %v4556 = vunpack.c.l.b16 %v693
    %v4557 = vunpack.c.h.b16 %v693
    %v4558 = vunpack.c.l.b16 %v694
    %v4559 = vunpack.c.h.b16 %v694
    %v4560 = vunpack.c.l.b16 %v695
    %v4561 = vunpack.c.h.b16 %v695
    %v4562 = vunpack.c.l.b16 %v696
    %v4563 = vunpack.c.h.b16 %v696
    %v4564 = vunpack.c.l.b16 %v697
    %v4565 = vunpack.c.h.b16 %v697
    %v4566 = vunpack.c.l.b16 %v698
    %v4567 = vunpack.c.h.b16 %v698
    %v4568 = vunpack.c.l.b16 %v699
    %v4569 = vunpack.c.h.b16 %v699
    %v4570 = vunpack.c.l.b16 %v700
    %v4571 = vunpack.c.h.b16 %v700
    %v4572 = vunpack.c.l.b16 %v701
    %v4573 = vunpack.c.h.b16 %v701
    %v4574 = vunpack.c.l.b16 %v702
    %v4575 = vunpack.c.h.b16 %v702
    %v4576 = vunpack.c.l.b16 %v703
    %v4577 = vunpack.c.h.b16 %v703
    %v4578 = vunpack.c.l.b16 %v704
    %v4579 = vunpack.c.h.b16 %v704
    %v4580 = vunpack.c.l.b16 %v705
    %v4581 = vunpack.c.h.b16 %v705
    %v4582 = vunpack.c.l.b16 %v706
    %v4583 = vunpack.c.h.b16 %v706
    %v4584 = vunpack.c.l.b16 %v707
    %v4585 = vunpack.c.h.b16 %v707
    %v4586 = vunpack.c.l.b16 %v708
    %v4587 = vunpack.c.h.b16 %v708
    %v4588 = vunpack.c.l.b16 %v709
    %v4589 = vunpack.c.h.b16 %v709
    %v4590 = vunpack.c.l.b16 %v710
    %v4591 = vunpack.c.h.b16 %v710
    %v4592 = vunpack.c.l.b16 %v711
    %v4593 = vunpack.c.h.b16 %v711
    %v4594 = vunpack.c.l.b16 %v712
    %v4595 = vunpack.c.h.b16 %v712
    %v4596 = vunpack.c.l.b16 %v713
    %v4597 = vunpack.c.h.b16 %v713
    %v4598 = vunpack.c.l.b16 %v714
    %v4599 = vunpack.c.h.b16 %v714
    %v4600 = vunpack.c.l.b16 %v715
    %v4601 = vunpack.c.h.b16 %v715
    %v4602 = vunpack.c.l.b16 %v716
    %v4603 = vunpack.c.h.b16 %v716
    %v4604 = vunpack.c.l.b16 %v717
    %v4605 = vunpack.c.h.b16 %v717
    %v4606 = vunpack.c.l.b16 %v718
    %v4607 = vunpack.c.h.b16 %v718
    %v4608 = vunpack.c.l.b16 %v719
    %v4609 = vunpack.c.h.b16 %v719
    %v4610 = vunpack.c.l.b16 %v720
    %v4611 = vunpack.c.h.b16 %v720
    %v4612 = vunpack.c.l.b16 %v721
    %v4613 = vunpack.c.h.b16 %v721
    %v4614 = vunpack.c.l.b16 %v722
    %v4615 = vunpack.c.h.b16 %v722
    %v4616 = vunpack.c.l.b16 %v723
    %v4617 = vunpack.c.h.b16 %v723
    %v4618 = vunpack.c.l.b16 %v724
    %v4619 = vunpack.c.h.b16 %v724
    %v4620 = vunpack.c.l.b16 %v725
    %v4621 = vunpack.c.h.b16 %v725
    %v4622 = vunpack.c.l.b16 %v726
    %v4623 = vunpack.c.h.b16 %v726
    %v4624 = vunpack.c.l.b16 %v727
    %v4625 = vunpack.c.h.b16 %v727
    %v4626 = vunpack.c.l.b16 %v728
    %v4627 = vunpack.c.h.b16 %v728
    %v4628 = vunpack.c.l.b16 %v729
    %v4629 = vunpack.c.h.b16 %v729
    %v4630 = vunpack.c.l.b16 %v730
    %v4631 = vunpack.c.h.b16 %v730
    %v4632 = vunpack.c.l.b16 %v731
    %v4633 = vunpack.c.h.b16 %v731
    %v4634 = vunpack.c.l.b16 %v732
    %v4635 = vunpack.c.h.b16 %v732
    %v4636 = vunpack.c.l.b16 %v733
    %v4637 = vunpack.c.h.b16 %v733
    %v4638 = vunpack.c.l.b16 %v734
    %v4639 = vunpack.c.h.b16 %v734
    %v4640 = vunpack.c.l.b16 %v735
    %v4641 = vunpack.c.h.b16 %v735
    %v4642 = vunpack.c.l.b16 %v736
    %v4643 = vunpack.c.h.b16 %v736
    %v4644 = vunpack.c.l.b16 %v737
    %v4645 = vunpack.c.h.b16 %v737
    %v4646 = vunpack.c.l.b16 %v738
    %v4647 = vunpack.c.h.b16 %v738
    %v4648 = vunpack.c.l.b16 %v739
    %v4649 = vunpack.c.h.b16 %v739
    %v4650 = vunpack.c.l.b16 %v740
    %v4651 = vunpack.c.h.b16 %v740
    %v4652 = vunpack.c.l.b16 %v741
    %v4653 = vunpack.c.h.b16 %v741
    %v4654 = vunpack.c.l.b16 %v742
    %v4655 = vunpack.c.h.b16 %v742
    %v4656 = vunpack.c.l.b16 %v743
    %v4657 = vunpack.c.h.b16 %v743
    %v4658 = vunpack.c.l.b16 %v744
    %v4659 = vunpack.c.h.b16 %v744
    %v4660 = vunpack.c.l.b16 %v745
    %v4661 = vunpack.c.h.b16 %v745
    %v4662 = vunpack.c.l.b16 %v746
    %v4663 = vunpack.c.h.b16 %v746
    %v4664 = vunpack.c.l.b16 %v747
    %v4665 = vunpack.c.h.b16 %v747
    %v4666 = vunpack.c.l.b16 %v748
    %v4667 = vunpack.c.h.b16 %v748
    %v4668 = vunpack.c.l.b16 %v749
    %v4669 = vunpack.c.h.b16 %v749
    %v4670 = vunpack.c.l.b16 %v750
    %v4671 = vunpack.c.h.b16 %v750
    %v4672 = vunpack.c.l.b16 %v751
    %v4673 = vunpack.c.h.b16 %v751
    %v4674 = vunpack.c.l.b16 %v752
    %v4675 = vunpack.c.h.b16 %v752
    %v4676 = vunpack.c.l.b16 %v753
    %v4677 = vunpack.c.h.b16 %v753
    %v4678 = vunpack.c.l.b16 %v754
    %v4679 = vunpack.c.h.b16 %v754
    %v4680 = vunpack.c.l.b16 %v755
    %v4681 = vunpack.c.h.b16 %v755
    %v4682 = vunpack.c.l.b16 %v756
    %v4683 = vunpack.c.h.b16 %v756
    %v4684 = vunpack.c.l.b16 %v757
    %v4685 = vunpack.c.h.b16 %v757
    %v4686 = vunpack.c.l.b16 %v758
    %v4687 = vunpack.c.h.b16 %v758
    %v4688 = vunpack.c.l.b16 %v759
    %v4689 = vunpack.c.h.b16 %v759
    %v4690 = vunpack.c.l.b16 %v760
    %v4691 = vunpack.c.h.b16 %v760
    %v4692 = vunpack.c.l.b16 %v761
    %v4693 = vunpack.c.h.b16 %v761
    %v4694 = vunpack.c.l.b16 %v762
    %v4695 = vunpack.c.h.b16 %v762
    %v4696 = vunpack.c.l.b16 %v763
    %v4697 = vunpack.c.h.b16 %v763
    %v4698 = vunpack.c.l.b16 %v764
    %v4699 = vunpack.c.h.b16 %v764
    %v4700 = vunpack.c.l.b16 %v765
    %v4701 = vunpack.c.h.b16 %v765
    %v4702 = vunpack.c.l.b16 %v766
    %v4703 = vunpack.c.h.b16 %v766
    %v4704 = vunpack.c.l.b16 %v767
    %v4705 = vunpack.c.h.b16 %v767
    %v4706 = vunpack.c.l.b16 %v768
    %v4707 = vunpack.c.h.b16 %v768
    %v4708 = vunpack.c.l.b16 %v769
    %v4709 = vunpack.c.h.b16 %v769
    %v4710 = vunpack.c.l.b16 %v770
    %v4711 = vunpack.c.h.b16 %v770
    %v4712 = vunpack.c.l.b16 %v771
    %v4713 = vunpack.c.h.b16 %v771
    %v4714 = vunpack.c.l.b16 %v772
    %v4715 = vunpack.c.h.b16 %v772
    %v4716 = vunpack.c.l.b16 %v773
    %v4717 = vunpack.c.h.b16 %v773
    %v4718 = vunpack.c.l.b16 %v774
    %v4719 = vunpack.c.h.b16 %v774
    %v4720 = vunpack.c.l.b16 %v775
    %v4721 = vunpack.c.h.b16 %v775
    %v4722 = vunpack.c.l.b16 %v776
    %v4723 = vunpack.c.h.b16 %v776
    %v4724 = vunpack.c.l.b16 %v777
    %v4725 = vunpack.c.h.b16 %v777
    %v4726 = vunpack.c.l.b16 %v778
    %v4727 = vunpack.c.h.b16 %v778
    %v4728 = vunpack.c.l.b16 %v779
    %v4729 = vunpack.c.h.b16 %v779
    %v4730 = vunpack.c.l.b16 %v780
    %v4731 = vunpack.c.h.b16 %v780
    %v4732 = vunpack.c.l.b16 %v781
    %v4733 = vunpack.c.h.b16 %v781
    %v4734 = vunpack.c.l.b16 %v782
    %v4735 = vunpack.c.h.b16 %v782
    %v4736 = vunpack.c.l.b16 %v783
    %v4737 = vunpack.c.h.b16 %v783
    %v4738 = vunpack.c.l.b16 %v784
    %v4739 = vunpack.c.h.b16 %v784
    %v4740 = vunpack.c.l.b16 %v785
    %v4741 = vunpack.c.h.b16 %v785
    %v4742 = vunpack.c.l.b16 %v786
    %v4743 = vunpack.c.h.b16 %v786
    %v4744 = vunpack.c.l.b16 %v787
    %v4745 = vunpack.c.h.b16 %v787
    %v4746 = vunpack.c.l.b16 %v788
    %v4747 = vunpack.c.h.b16 %v788
    %v4748 = vunpack.c.l.b16 %v789
    %v4749 = vunpack.c.h.b16 %v789
    %v4750 = vunpack.c.l.b16 %v790
    %v4751 = vunpack.c.h.b16 %v790
    %v4752 = vunpack.c.l.b16 %v791
    %v4753 = vunpack.c.h.b16 %v791
    %v4754 = vunpack.c.l.b16 %v792
    %v4755 = vunpack.c.h.b16 %v792
    %v4756 = vunpack.c.l.b16 %v793
    %v4757 = vunpack.c.h.b16 %v793
    %v4758 = vunpack.c.l.b16 %v794
    %v4759 = vunpack.c.h.b16 %v794
    %v4760 = vunpack.c.l.b16 %v795
    %v4761 = vunpack.c.h.b16 %v795
    %v4762 = vunpack.c.l.b16 %v796
    %v4763 = vunpack.c.h.b16 %v796
    %v4764 = vunpack.c.l.b16 %v797
    %v4765 = vunpack.c.h.b16 %v797
    %v4766 = vunpack.c.l.b16 %v798
    %v4767 = vunpack.c.h.b16 %v798
    %v4768 = vunpack.c.l.b16 %v799
    %v4769 = vunpack.c.h.b16 %v799
    %v4770 = vunpack.c.l.b16 %v800
    %v4771 = vunpack.c.h.b16 %v800
    %v4772 = vunpack.c.l.b16 %v801
    %v4773 = vunpack.c.h.b16 %v801
    %v4774 = vunpack.c.l.b16 %v802
    %v4775 = vunpack.c.h.b16 %v802
    %v4776 = vunpack.c.l.b16 %v803
    %v4777 = vunpack.c.h.b16 %v803
    %v4778 = vunpack.c.l.b16 %v804
    %v4779 = vunpack.c.h.b16 %v804
    %v4780 = vunpack.c.l.b16 %v805
    %v4781 = vunpack.c.h.b16 %v805
    %v4782 = vunpack.c.l.b16 %v806
    %v4783 = vunpack.c.h.b16 %v806
    %v4784 = vunpack.c.l.b16 %v807
    %v4785 = vunpack.c.h.b16 %v807
    %v4786 = vunpack.c.l.b16 %v808
    %v4787 = vunpack.c.h.b16 %v808
    %v4788 = vunpack.c.l.b16 %v809
    %v4789 = vunpack.c.h.b16 %v809
    %v4790 = vunpack.c.l.b16 %v810
    %v4791 = vunpack.c.h.b16 %v810
    %v4792 = vunpack.c.l.b16 %v811
    %v4793 = vunpack.c.h.b16 %v811
    %v4794 = vunpack.c.l.b16 %v812
    %v4795 = vunpack.c.h.b16 %v812
    %v4796 = vunpack.c.l.b16 %v813
    %v4797 = vunpack.c.h.b16 %v813
    %v4798 = vunpack.c.l.b16 %v814
    %v4799 = vunpack.c.h.b16 %v814
    %v4800 = vunpack.c.l.b16 %v815
    %v4801 = vunpack.c.h.b16 %v815
    %v4802 = vunpack.c.l.b16 %v816
    %v4803 = vunpack.c.h.b16 %v816
    %v4804 = vunpack.c.l.b16 %v817
    %v4805 = vunpack.c.h.b16 %v817
    %v4806 = vunpack.c.l.b16 %v818
    %v4807 = vunpack.c.h.b16 %v818
    %v4808 = vunpack.c.l.b16 %v819
    %v4809 = vunpack.c.h.b16 %v819
    %v4810 = vunpack.c.l.b16 %v820
    %v4811 = vunpack.c.h.b16 %v820
    %v4812 = vunpack.c.l.b16 %v821
    %v4813 = vunpack.c.h.b16 %v821
    %v4814 = vunpack.c.l.b16 %v822
    %v4815 = vunpack.c.h.b16 %v822
    %v4816 = vunpack.c.l.b16 %v823
    %v4817 = vunpack.c.h.b16 %v823
    %v4818 = vunpack.c.l.b16 %v824
    %v4819 = vunpack.c.h.b16 %v824
    %v4820 = vunpack.c.l.b16 %v825
    %v4821 = vunpack.c.h.b16 %v825
    %v4822 = vunpack.c.l.b16 %v826
    %v4823 = vunpack.c.h.b16 %v826
    %v4824 = vunpack.c.l.b16 %v827
    %v4825 = vunpack.c.h.b16 %v827
    %v4826 = vunpack.c.l.b16 %v828
    %v4827 = vunpack.c.h.b16 %v828
    %v4828 = vunpack.c.l.b16 %v829
    %v4829 = vunpack.c.h.b16 %v829
    %v4830 = vunpack.c.l.b16 %v830
    %v4831 = vunpack.c.h.b16 %v830
    %v4832 = vunpack.c.l.b16 %v831
    %v4833 = vunpack.c.h.b16 %v831
    %v4834 = vunpack.c.l.b16 %v832
    %v4835 = vunpack.c.h.b16 %v832
    %v4836 = vunpack.c.l.b16 %v833
    %v4837 = vunpack.c.h.b16 %v833
    %v4838 = vunpack.c.l.b16 %v834
    %v4839 = vunpack.c.h.b16 %v834
    %v4840 = vunpack.c.l.b16 %v835
    %v4841 = vunpack.c.h.b16 %v835
    %v4842 = vunpack.c.l.b16 %v836
    %v4843 = vunpack.c.h.b16 %v836
    %v4844 = vunpack.c.l.b16 %v837
    %v4845 = vunpack.c.h.b16 %v837
    %v4846 = vunpack.c.l.b16 %v838
    %v4847 = vunpack.c.h.b16 %v838
    %v4848 = vunpack.c.l.b16 %v839
    %v4849 = vunpack.c.h.b16 %v839
    %v4850 = vunpack.c.l.b16 %v840
    %v4851 = vunpack.c.h.b16 %v840
    %v4852 = vunpack.c.l.b16 %v841
    %v4853 = vunpack.c.h.b16 %v841
    %v4854 = vunpack.c.l.b16 %v842
    %v4855 = vunpack.c.h.b16 %v842
    %v4856 = vunpack.c.l.b16 %v843
    %v4857 = vunpack.c.h.b16 %v843
    %v4858 = vunpack.c.l.b16 %v844
    %v4859 = vunpack.c.h.b16 %v844
    %v4860 = vunpack.c.l.b16 %v845
    %v4861 = vunpack.c.h.b16 %v845
    %v4862 = vunpack.c.l.b16 %v846
    %v4863 = vunpack.c.h.b16 %v846
    %v4864 = vunpack.c.l.b16 %v847
    %v4865 = vunpack.c.h.b16 %v847
    %v4866 = vunpack.c.l.b16 %v848
    %v4867 = vunpack.c.h.b16 %v848
    %v4868 = vunpack.c.l.b16 %v849
    %v4869 = vunpack.c.h.b16 %v849
    %v4870 = vunpack.c.l.b16 %v850
    %v4871 = vunpack.c.h.b16 %v850
    %v4872 = vunpack.c.l.b16 %v851
    %v4873 = vunpack.c.h.b16 %v851
    %v4874 = vunpack.c.l.b16 %v852
    %v4875 = vunpack.c.h.b16 %v852
    %v4876 = vunpack.c.l.b16 %v853
    %v4877 = vunpack.c.h.b16 %v853
    %v4878 = vunpack.c.l.b16 %v854
    %v4879 = vunpack.c.h.b16 %v854
    %v4880 = vunpack.c.l.b16 %v855
    %v4881 = vunpack.c.h.b16 %v855
    %v4882 = vunpack.c.l.b16 %v856
    %v4883 = vunpack.c.h.b16 %v856
    %v4884 = vunpack.c.l.b16 %v857
    %v4885 = vunpack.c.h.b16 %v857
    %v4886 = vunpack.c.l.b16 %v858
    %v4887 = vunpack.c.h.b16 %v858
    %v4888 = vunpack.c.l.b16 %v859
    %v4889 = vunpack.c.h.b16 %v859
    %v4890 = vunpack.c.l.b16 %v860
    %v4891 = vunpack.c.h.b16 %v860
    %v4892 = vunpack.c.l.b16 %v861
    %v4893 = vunpack.c.h.b16 %v861
    %v4894 = vunpack.c.l.b16 %v862
    %v4895 = vunpack.c.h.b16 %v862
    %v4896 = vunpack.c.l.b16 %v863
    %v4897 = vunpack.c.h.b16 %v863
    %v4898 = vunpack.c.l.b16 %v864
    %v4899 = vunpack.c.h.b16 %v864
    %v4900 = vunpack.c.l.b16 %v865
    %v4901 = vunpack.c.h.b16 %v865
    %v4902 = vunpack.c.l.b16 %v866
    %v4903 = vunpack.c.h.b16 %v866
    %v4904 = vunpack.c.l.b16 %v867
    %v4905 = vunpack.c.h.b16 %v867
    %v4906 = vunpack.c.l.b16 %v868
    %v4907 = vunpack.c.h.b16 %v868
    %v4908 = vunpack.c.l.b16 %v869
    %v4909 = vunpack.c.h.b16 %v869
    %v4910 = vunpack.c.l.b16 %v870
    %v4911 = vunpack.c.h.b16 %v870
    %v4912 = vunpack.c.l.b16 %v871
    %v4913 = vunpack.c.h.b16 %v871
    %v4914 = vunpack.c.l.b16 %v872
    %v4915 = vunpack.c.h.b16 %v872
    %v4916 = vunpack.c.l.b16 %v873
    %v4917 = vunpack.c.h.b16 %v873
    %v4918 = vunpack.c.l.b16 %v874
    %v4919 = vunpack.c.h.b16 %v874
    %v4920 = vunpack.c.l.b16 %v875
    %v4921 = vunpack.c.h.b16 %v875
    %v4922 = vunpack.c.l.b16 %v876
    %v4923 = vunpack.c.h.b16 %v876
    %v4924 = vunpack.c.l.b16 %v877
    %v4925 = vunpack.c.h.b16 %v877
    %v4926 = vunpack.c.l.b16 %v878
    %v4927 = vunpack.c.h.b16 %v878
    %v4928 = vunpack.c.l.b16 %v879
    %v4929 = vunpack.c.h.b16 %v879
    %v4930 = vunpack.c.l.b16 %v880
    %v4931 = vunpack.c.h.b16 %v880
    %v4932 = vunpack.c.l.b16 %v881
    %v4933 = vunpack.c.h.b16 %v881
    %v4934 = vunpack.c.l.b16 %v882
    %v4935 = vunpack.c.h.b16 %v882
    %v4936 = vunpack.c.l.b16 %v883
    %v4937 = vunpack.c.h.b16 %v883
    %v4938 = vunpack.c.l.b16 %v884
    %v4939 = vunpack.c.h.b16 %v884
    %v4940 = vunpack.c.l.b16 %v885
    %v4941 = vunpack.c.h.b16 %v885
    %v4942 = vunpack.c.l.b16 %v886
    %v4943 = vunpack.c.h.b16 %v886
    %v4944 = vunpack.c.l.b16 %v887
    %v4945 = vunpack.c.h.b16 %v887
    %v4946 = vunpack.c.l.b16 %v888
    %v4947 = vunpack.c.h.b16 %v888
    %v4948 = vunpack.c.l.b16 %v889
    %v4949 = vunpack.c.h.b16 %v889
    %v4950 = vunpack.c.l.b16 %v890
    %v4951 = vunpack.c.h.b16 %v890
    %v4952 = vunpack.c.l.b16 %v891
    %v4953 = vunpack.c.h.b16 %v891
    %v4954 = vunpack.c.l.b16 %v892
    %v4955 = vunpack.c.h.b16 %v892
    %v4956 = vunpack.c.l.b16 %v893
    %v4957 = vunpack.c.h.b16 %v893
    %v4958 = vunpack.c.l.b16 %v894
    %v4959 = vunpack.c.h.b16 %v894
    %v4960 = vunpack.c.l.b16 %v895
    %v4961 = vunpack.c.h.b16 %v895
    %v4962 = vunpack.c.l.b16 %v896
    %v4963 = vunpack.c.h.b16 %v896
    %v4964 = vunpack.c.l.b16 %v897
    %v4965 = vunpack.c.h.b16 %v897
    %v4966 = vunpack.c.l.b16 %v898
    %v4967 = vunpack.c.h.b16 %v898
    %v4968 = vunpack.c.l.b16 %v899
    %v4969 = vunpack.c.h.b16 %v899
    %v4970 = vunpack.c.l.b16 %v900
    %v4971 = vunpack.c.h.b16 %v900
    %v4972 = vunpack.c.l.b16 %v901
    %v4973 = vunpack.c.h.b16 %v901
    %v4974 = vunpack.c.l.b16 %v902
    %v4975 = vunpack.c.h.b16 %v902
    %v4976 = vunpack.c.l.b16 %v903
    %v4977 = vunpack.c.h.b16 %v903
    %v4978 = vunpack.c.l.b16 %v904
    %v4979 = vunpack.c.h.b16 %v904
    %v4980 = vunpack.c.l.b16 %v905
    %v4981 = vunpack.c.h.b16 %v905
    %v4982 = vunpack.c.l.b16 %v906
    %v4983 = vunpack.c.h.b16 %v906
    %v4984 = vunpack.c.l.b16 %v907
    %v4985 = vunpack.c.h.b16 %v907
    %v4986 = vunpack.c.l.b16 %v908
    %v4987 = vunpack.c.h.b16 %v908
    %v4988 = vunpack.c.l.b16 %v909
    %v4989 = vunpack.c.h.b16 %v909
    %v4990 = vpack.c.b16 %v4230, %v4222
    %v4991 = vpack.c.b16 %v4231, %v4223
    %v4992 = vpack.c.b16 %v4232, %v4224
    %v4993 = vpack.c.b16 %v4233, %v4225
    %v4994 = vpack.c.b16 %v4234, %v4226
    %v4995 = vpack.c.b16 %v4235, %v4227
    %v4996 = vpack.c.b16 %v4236, %v4228
    %v4997 = vpack.c.b16 %v4237, %v4229
    %v4998 = vpack.c.b16 %v4246, %v4238
    %v4999 = vpack.c.b16 %v4247, %v4239
    %v5000 = vpack.c.b16 %v4248, %v4240
    %v5001 = vpack.c.b16 %v4249, %v4241
    %v5002 = vpack.c.b16 %v4250, %v4242
    %v5003 = vpack.c.b16 %v4251, %v4243
    %v5004 = vpack.c.b16 %v4252, %v4244
    %v5005 = vpack.c.b16 %v4253, %v4245
    %v5006 = vpack.c.b16 %v4262, %v4254
    %v5007 = vpack.c.b16 %v4263, %v4255
    %v5008 = vpack.c.b16 %v4264, %v4256
    %v5009 = vpack.c.b16 %v4265, %v4257
    %v5010 = vpack.c.b16 %v4266, %v4258
    %v5011 = vpack.c.b16 %v4267, %v4259
    %v5012 = vpack.c.b16 %v4268, %v4260
    %v5013 = vpack.c.b16 %v4269, %v4261
    %v5014 = vpack.c.b16 %v4278, %v4270
    %v5015 = vpack.c.b16 %v4279, %v4271
    %v5016 = vpack.c.b16 %v4280, %v4272
    %v5017 = vpack.c.b16 %v4281, %v4273
    %v5018 = vpack.c.b16 %v4282, %v4274
    %v5019 = vpack.c.b16 %v4283, %v4275
    %v5020 = vpack.c.b16 %v4284, %v4276
    %v5021 = vpack.c.b16 %v4285, %v4277
    %v5022 = vpack.c.b16 %v4294, %v4286
    %v5023 = vpack.c.b16 %v4295, %v4287
    %v5024 = vpack.c.b16 %v4296, %v4288
    %v5025 = vpack.c.b16 %v4297, %v4289
    %v5026 = vpack.c.b16 %v4298, %v4290
    %v5027 = vpack.c.b16 %v4299, %v4291
    %v5028 = vpack.c.b16 %v4300, %v4292
    %v5029 = vpack.c.b16 %v4301, %v4293
    %v5030 = vpack.c.b16 %v4310, %v4302
    %v5031 = vpack.c.b16 %v4311, %v4303
    %v5032 = vpack.c.b16 %v4312, %v4304
    %v5033 = vpack.c.b16 %v4313, %v4305
    %v5034 = vpack.c.b16 %v4314, %v4306
    %v5035 = vpack.c.b16 %v4315, %v4307
    %v5036 = vpack.c.b16 %v4316, %v4308
    %v5037 = vpack.c.b16 %v4317, %v4309
    %v5038 = vpack.c.b16 %v4326, %v4318
    %v5039 = vpack.c.b16 %v4327, %v4319
    %v5040 = vpack.c.b16 %v4328, %v4320
    %v5041 = vpack.c.b16 %v4329, %v4321
    %v5042 = vpack.c.b16 %v4330, %v4322
    %v5043 = vpack.c.b16 %v4331, %v4323
    %v5044 = vpack.c.b16 %v4332, %v4324
    %v5045 = vpack.c.b16 %v4333, %v4325
    %v5046 = vpack.c.b16 %v4342, %v4334
    %v5047 = vpack.c.b16 %v4343, %v4335
    %v5048 = vpack.c.b16 %v4344, %v4336
    %v5049 = vpack.c.b16 %v4345, %v4337
    %v5050 = vpack.c.b16 %v4346, %v4338
    %v5051 = vpack.c.b16 %v4347, %v4339
    %v5052 = vpack.c.b16 %v4348, %v4340
    %v5053 = vpack.c.b16 %v4349, %v4341
    %v5054 = vpack.c.b16 %v4358, %v4350
    %v5055 = vpack.c.b16 %v4359, %v4351
    %v5056 = vpack.c.b16 %v4360, %v4352
    %v5057 = vpack.c.b16 %v4361, %v4353
    %v5058 = vpack.c.b16 %v4362, %v4354
    %v5059 = vpack.c.b16 %v4363, %v4355
    %v5060 = vpack.c.b16 %v4364, %v4356
    %v5061 = vpack.c.b16 %v4365, %v4357
    %v5062 = vpack.c.b16 %v4374, %v4366
    %v5063 = vpack.c.b16 %v4375, %v4367
    %v5064 = vpack.c.b16 %v4376, %v4368
    %v5065 = vpack.c.b16 %v4377, %v4369
    %v5066 = vpack.c.b16 %v4378, %v4370
    %v5067 = vpack.c.b16 %v4379, %v4371
    %v5068 = vpack.c.b16 %v4380, %v4372
    %v5069 = vpack.c.b16 %v4381, %v4373
    %v5070 = vpack.c.b16 %v4390, %v4382
    %v5071 = vpack.c.b16 %v4391, %v4383
    %v5072 = vpack.c.b16 %v4392, %v4384
    %v5073 = vpack.c.b16 %v4393, %v4385
    %v5074 = vpack.c.b16 %v4394, %v4386
    %v5075 = vpack.c.b16 %v4395, %v4387
    %v5076 = vpack.c.b16 %v4396, %v4388
    %v5077 = vpack.c.b16 %v4397, %v4389
    %v5078 = vpack.c.b16 %v4406, %v4398
    %v5079 = vpack.c.b16 %v4407, %v4399
    %v5080 = vpack.c.b16 %v4408, %v4400
    %v5081 = vpack.c.b16 %v4409, %v4401
    %v5082 = vpack.c.b16 %v4410, %v4402
    %v5083 = vpack.c.b16 %v4411, %v4403
    %v5084 = vpack.c.b16 %v4412, %v4404
    %v5085 = vpack.c.b16 %v4413, %v4405
    %v5086 = vpack.c.b16 %v4422, %v4414
    %v5087 = vpack.c.b16 %v4423, %v4415
    %v5088 = vpack.c.b16 %v4424, %v4416
    %v5089 = vpack.c.b16 %v4425, %v4417
    %v5090 = vpack.c.b16 %v4426, %v4418
    %v5091 = vpack.c.b16 %v4427, %v4419
    %v5092 = vpack.c.b16 %v4428, %v4420
    %v5093 = vpack.c.b16 %v4429, %v4421
    %v5094 = vpack.c.b16 %v4438, %v4430
    %v5095 = vpack.c.b16 %v4439, %v4431
    %v5096 = vpack.c.b16 %v4440, %v4432
    %v5097 = vpack.c.b16 %v4441, %v4433
    %v5098 = vpack.c.b16 %v4442, %v4434
    %v5099 = vpack.c.b16 %v4443, %v4435
    %v5100 = vpack.c.b16 %v4444, %v4436
    %v5101 = vpack.c.b16 %v4445, %v4437
    %v5102 = vpack.c.b16 %v4454, %v4446
    %v5103 = vpack.c.b16 %v4455, %v4447
    %v5104 = vpack.c.b16 %v4456, %v4448
    %v5105 = vpack.c.b16 %v4457, %v4449
    %v5106 = vpack.c.b16 %v4458, %v4450
    %v5107 = vpack.c.b16 %v4459, %v4451
    %v5108 = vpack.c.b16 %v4460, %v4452
    %v5109 = vpack.c.b16 %v4461, %v4453
    %v5110 = vpack.c.b16 %v4470, %v4462
    %v5111 = vpack.c.b16 %v4471, %v4463
    %v5112 = vpack.c.b16 %v4472, %v4464
    %v5113 = vpack.c.b16 %v4473, %v4465
    %v5114 = vpack.c.b16 %v4474, %v4466
    %v5115 = vpack.c.b16 %v4475, %v4467
    %v5116 = vpack.c.b16 %v4476, %v4468
    %v5117 = vpack.c.b16 %v4477, %v4469
    %v5118 = vpack.c.b16 %v4486, %v4478
    %v5119 = vpack.c.b16 %v4487, %v4479
    %v5120 = vpack.c.b16 %v4488, %v4480
    %v5121 = vpack.c.b16 %v4489, %v4481
    %v5122 = vpack.c.b16 %v4490, %v4482
    %v5123 = vpack.c.b16 %v4491, %v4483
    %v5124 = vpack.c.b16 %v4492, %v4484
    %v5125 = vpack.c.b16 %v4493, %v4485
    %v5126 = vpack.c.b16 %v4502, %v4494
    %v5127 = vpack.c.b16 %v4503, %v4495
    %v5128 = vpack.c.b16 %v4504, %v4496
    %v5129 = vpack.c.b16 %v4505, %v4497
    %v5130 = vpack.c.b16 %v4506, %v4498
    %v5131 = vpack.c.b16 %v4507, %v4499
    %v5132 = vpack.c.b16 %v4508, %v4500
    %v5133 = vpack.c.b16 %v4509, %v4501
    %v5134 = vpack.c.b16 %v4518, %v4510
    %v5135 = vpack.c.b16 %v4519, %v4511
    %v5136 = vpack.c.b16 %v4520, %v4512
    %v5137 = vpack.c.b16 %v4521, %v4513
    %v5138 = vpack.c.b16 %v4522, %v4514
    %v5139 = vpack.c.b16 %v4523, %v4515
    %v5140 = vpack.c.b16 %v4524, %v4516
    %v5141 = vpack.c.b16 %v4525, %v4517
    %v5142 = vpack.c.b16 %v4534, %v4526
    %v5143 = vpack.c.b16 %v4535, %v4527
    %v5144 = vpack.c.b16 %v4536, %v4528
    %v5145 = vpack.c.b16 %v4537, %v4529
    %v5146 = vpack.c.b16 %v4538, %v4530
    %v5147 = vpack.c.b16 %v4539, %v4531
    %v5148 = vpack.c.b16 %v4540, %v4532
    %v5149 = vpack.c.b16 %v4541, %v4533
    %v5150 = vpack.c.b16 %v4550, %v4542
    %v5151 = vpack.c.b16 %v4551, %v4543
    %v5152 = vpack.c.b16 %v4552, %v4544
    %v5153 = vpack.c.b16 %v4553, %v4545
    %v5154 = vpack.c.b16 %v4554, %v4546
    %v5155 = vpack.c.b16 %v4555, %v4547
    %v5156 = vpack.c.b16 %v4556, %v4548
    %v5157 = vpack.c.b16 %v4557, %v4549
    %v5158 = vpack.c.b16 %v4566, %v4558
    %v5159 = vpack.c.b16 %v4567, %v4559
    %v5160 = vpack.c.b16 %v4568, %v4560
    %v5161 = vpack.c.b16 %v4569, %v4561
    %v5162 = vpack.c.b16 %v4570, %v4562
    %v5163 = vpack.c.b16 %v4571, %v4563
    %v5164 = vpack.c.b16 %v4572, %v4564
    %v5165 = vpack.c.b16 %v4573, %v4565
    %v5166 = vpack.c.b16 %v4582, %v4574
    %v5167 = vpack.c.b16 %v4583, %v4575
    %v5168 = vpack.c.b16 %v4584, %v4576
    %v5169 = vpack.c.b16 %v4585, %v4577
    %v5170 = vpack.c.b16 %v4586, %v4578
    %v5171 = vpack.c.b16 %v4587, %v4579
    %v5172 = vpack.c.b16 %v4588, %v4580
    %v5173 = vpack.c.b16 %v4589, %v4581
    %v5174 = vpack.c.b16 %v4598, %v4590
    %v5175 = vpack.c.b16 %v4599, %v4591
    %v5176 = vpack.c.b16 %v4600, %v4592
    %v5177 = vpack.c.b16 %v4601, %v4593
    %v5178 = vpack.c.b16 %v4602, %v4594
    %v5179 = vpack.c.b16 %v4603, %v4595
    %v5180 = vpack.c.b16 %v4604, %v4596
    %v5181 = vpack.c.b16 %v4605, %v4597
    %v5182 = vpack.c.b16 %v4614, %v4606
    %v5183 = vpack.c.b16 %v4615, %v4607
    %v5184 = vpack.c.b16 %v4616, %v4608
    %v5185 = vpack.c.b16 %v4617, %v4609
    %v5186 = vpack.c.b16 %v4618, %v4610
    %v5187 = vpack.c.b16 %v4619, %v4611
    %v5188 = vpack.c.b16 %v4620, %v4612
    %v5189 = vpack.c.b16 %v4621, %v4613
    %v5190 = vpack.c.b16 %v4630, %v4622
    %v5191 = vpack.c.b16 %v4631, %v4623
    %v5192 = vpack.c.b16 %v4632, %v4624
    %v5193 = vpack.c.b16 %v4633, %v4625
    %v5194 = vpack.c.b16 %v4634, %v4626
    %v5195 = vpack.c.b16 %v4635, %v4627
    %v5196 = vpack.c.b16 %v4636, %v4628
    %v5197 = vpack.c.b16 %v4637, %v4629
    %v5198 = vpack.c.b16 %v4646, %v4638
    %v5199 = vpack.c.b16 %v4647, %v4639
    %v5200 = vpack.c.b16 %v4648, %v4640
    %v5201 = vpack.c.b16 %v4649, %v4641
    %v5202 = vpack.c.b16 %v4650, %v4642
    %v5203 = vpack.c.b16 %v4651, %v4643
    %v5204 = vpack.c.b16 %v4652, %v4644
    %v5205 = vpack.c.b16 %v4653, %v4645
    %v5206 = vpack.c.b16 %v4662, %v4654
    %v5207 = vpack.c.b16 %v4663, %v4655
    %v5208 = vpack.c.b16 %v4664, %v4656
    %v5209 = vpack.c.b16 %v4665, %v4657
    %v5210 = vpack.c.b16 %v4666, %v4658
    %v5211 = vpack.c.b16 %v4667, %v4659
    %v5212 = vpack.c.b16 %v4668, %v4660
    %v5213 = vpack.c.b16 %v4669, %v4661
    %v5214 = vpack.c.b16 %v4678, %v4670
    %v5215 = vpack.c.b16 %v4679, %v4671
    %v5216 = vpack.c.b16 %v4680, %v4672
    %v5217 = vpack.c.b16 %v4681, %v4673
    %v5218 = vpack.c.b16 %v4682, %v4674
    %v5219 = vpack.c.b16 %v4683, %v4675
    %v5220 = vpack.c.b16 %v4684, %v4676
    %v5221 = vpack.c.b16 %v4685, %v4677
    %v5222 = vpack.c.b16 %v4694, %v4686
    %v5223 = vpack.c.b16 %v4695, %v4687
    %v5224 = vpack.c.b16 %v4696, %v4688
    %v5225 = vpack.c.b16 %v4697, %v4689
    %v5226 = vpack.c.b16 %v4698, %v4690
    %v5227 = vpack.c.b16 %v4699, %v4691
    %v5228 = vpack.c.b16 %v4700, %v4692
    %v5229 = vpack.c.b16 %v4701, %v4693
    %v5230 = vpack.c.b16 %v4710, %v4702
    %v5231 = vpack.c.b16 %v4711, %v4703
    %v5232 = vpack.c.b16 %v4712, %v4704
    %v5233 = vpack.c.b16 %v4713, %v4705
    %v5234 = vpack.c.b16 %v4714, %v4706
    %v5235 = vpack.c.b16 %v4715, %v4707
    %v5236 = vpack.c.b16 %v4716, %v4708
    %v5237 = vpack.c.b16 %v4717, %v4709
    %v5238 = vpack.c.b16 %v4726, %v4718
    %v5239 = vpack.c.b16 %v4727, %v4719
    %v5240 = vpack.c.b16 %v4728, %v4720
    %v5241 = vpack.c.b16 %v4729, %v4721
    %v5242 = vpack.c.b16 %v4730, %v4722
    %v5243 = vpack.c.b16 %v4731, %v4723
    %v5244 = vpack.c.b16 %v4732, %v4724
    %v5245 = vpack.c.b16 %v4733, %v4725
    %v5246 = vpack.c.b16 %v4742, %v4734
    %v5247 = vpack.c.b16 %v4743, %v4735
    %v5248 = vpack.c.b16 %v4744, %v4736
    %v5249 = vpack.c.b16 %v4745, %v4737
    %v5250 = vpack.c.b16 %v4746, %v4738
    %v5251 = vpack.c.b16 %v4747, %v4739
    %v5252 = vpack.c.b16 %v4748, %v4740
    %v5253 = vpack.c.b16 %v4749, %v4741
    %v5254 = vpack.c.b16 %v4758, %v4750
    %v5255 = vpack.c.b16 %v4759, %v4751
    %v5256 = vpack.c.b16 %v4760, %v4752
    %v5257 = vpack.c.b16 %v4761, %v4753
    %v5258 = vpack.c.b16 %v4762, %v4754
    %v5259 = vpack.c.b16 %v4763, %v4755
    %v5260 = vpack.c.b16 %v4764, %v4756
    %v5261 = vpack.c.b16 %v4765, %v4757
    %v5262 = vpack.c.b16 %v4774, %v4766
    %v5263 = vpack.c.b16 %v4775, %v4767
    %v5264 = vpack.c.b16 %v4776, %v4768
    %v5265 = vpack.c.b16 %v4777, %v4769
    %v5266 = vpack.c.b16 %v4778, %v4770
    %v5267 = vpack.c.b16 %v4779, %v4771
    %v5268 = vpack.c.b16 %v4780, %v4772
    %v5269 = vpack.c.b16 %v4781, %v4773
    %v5270 = vpack.c.b16 %v4790, %v4782
    %v5271 = vpack.c.b16 %v4791, %v4783
    %v5272 = vpack.c.b16 %v4792, %v4784
    %v5273 = vpack.c.b16 %v4793, %v4785
    %v5274 = vpack.c.b16 %v4794, %v4786
    %v5275 = vpack.c.b16 %v4795, %v4787
    %v5276 = vpack.c.b16 %v4796, %v4788
    %v5277 = vpack.c.b16 %v4797, %v4789
    %v5278 = vpack.c.b16 %v4806, %v4798
    %v5279 = vpack.c.b16 %v4807, %v4799
    %v5280 = vpack.c.b16 %v4808, %v4800
    %v5281 = vpack.c.b16 %v4809, %v4801
    %v5282 = vpack.c.b16 %v4810, %v4802
    %v5283 = vpack.c.b16 %v4811, %v4803
    %v5284 = vpack.c.b16 %v4812, %v4804
    %v5285 = vpack.c.b16 %v4813, %v4805
    %v5286 = vpack.c.b16 %v4822, %v4814
    %v5287 = vpack.c.b16 %v4823, %v4815
    %v5288 = vpack.c.b16 %v4824, %v4816
    %v5289 = vpack.c.b16 %v4825, %v4817
    %v5290 = vpack.c.b16 %v4826, %v4818
    %v5291 = vpack.c.b16 %v4827, %v4819
    %v5292 = vpack.c.b16 %v4828, %v4820
    %v5293 = vpack.c.b16 %v4829, %v4821
    %v5294 = vpack.c.b16 %v4838, %v4830
    %v5295 = vpack.c.b16 %v4839, %v4831
    %v5296 = vpack.c.b16 %v4840, %v4832
    %v5297 = vpack.c.b16 %v4841, %v4833
    %v5298 = vpack.c.b16 %v4842, %v4834
    %v5299 = vpack.c.b16 %v4843, %v4835
    %v5300 = vpack.c.b16 %v4844, %v4836
    %v5301 = vpack.c.b16 %v4845, %v4837
    %v5302 = vpack.c.b16 %v4854, %v4846
    %v5303 = vpack.c.b16 %v4855, %v4847
    %v5304 = vpack.c.b16 %v4856, %v4848
    %v5305 = vpack.c.b16 %v4857, %v4849
    %v5306 = vpack.c.b16 %v4858, %v4850
    %v5307 = vpack.c.b16 %v4859, %v4851
    %v5308 = vpack.c.b16 %v4860, %v4852
    %v5309 = vpack.c.b16 %v4861, %v4853
    %v5310 = vpack.c.b16 %v4870, %v4862
    %v5311 = vpack.c.b16 %v4871, %v4863
    %v5312 = vpack.c.b16 %v4872, %v4864
    %v5313 = vpack.c.b16 %v4873, %v4865
    %v5314 = vpack.c.b16 %v4874, %v4866
    %v5315 = vpack.c.b16 %v4875, %v4867
    %v5316 = vpack.c.b16 %v4876, %v4868
    %v5317 = vpack.c.b16 %v4877, %v4869
    %v5318 = vpack.c.b16 %v4886, %v4878
    %v5319 = vpack.c.b16 %v4887, %v4879
    %v5320 = vpack.c.b16 %v4888, %v4880
    %v5321 = vpack.c.b16 %v4889, %v4881
    %v5322 = vpack.c.b16 %v4890, %v4882
    %v5323 = vpack.c.b16 %v4891, %v4883
    %v5324 = vpack.c.b16 %v4892, %v4884
    %v5325 = vpack.c.b16 %v4893, %v4885
    %v5326 = vpack.c.b16 %v4902, %v4894
    %v5327 = vpack.c.b16 %v4903, %v4895
    %v5328 = vpack.c.b16 %v4904, %v4896
    %v5329 = vpack.c.b16 %v4905, %v4897
    %v5330 = vpack.c.b16 %v4906, %v4898
    %v5331 = vpack.c.b16 %v4907, %v4899
    %v5332 = vpack.c.b16 %v4908, %v4900
    %v5333 = vpack.c.b16 %v4909, %v4901
    %v5334 = vpack.c.b16 %v4918, %v4910
    %v5335 = vpack.c.b16 %v4919, %v4911
    %v5336 = vpack.c.b16 %v4920, %v4912
    %v5337 = vpack.c.b16 %v4921, %v4913
    %v5338 = vpack.c.b16 %v4922, %v4914
    %v5339 = vpack.c.b16 %v4923, %v4915
    %v5340 = vpack.c.b16 %v4924, %v4916
    %v5341 = vpack.c.b16 %v4925, %v4917
    %v5342 = vpack.c.b16 %v4934, %v4926
    %v5343 = vpack.c.b16 %v4935, %v4927
    %v5344 = vpack.c.b16 %v4936, %v4928
    %v5345 = vpack.c.b16 %v4937, %v4929
    %v5346 = vpack.c.b16 %v4938, %v4930
    %v5347 = vpack.c.b16 %v4939, %v4931
    %v5348 = vpack.c.b16 %v4940, %v4932
    %v5349 = vpack.c.b16 %v4941, %v4933
    %v5350 = vpack.c.b16 %v4950, %v4942
    %v5351 = vpack.c.b16 %v4951, %v4943
    %v5352 = vpack.c.b16 %v4952, %v4944
    %v5353 = vpack.c.b16 %v4953, %v4945
    %v5354 = vpack.c.b16 %v4954, %v4946
    %v5355 = vpack.c.b16 %v4955, %v4947
    %v5356 = vpack.c.b16 %v4956, %v4948
    %v5357 = vpack.c.b16 %v4957, %v4949
    %v5358 = vpack.c.b16 %v4966, %v4958
    %v5359 = vpack.c.b16 %v4967, %v4959
    %v5360 = vpack.c.b16 %v4968, %v4960
    %v5361 = vpack.c.b16 %v4969, %v4961
    %v5362 = vpack.c.b16 %v4970, %v4962
    %v5363 = vpack.c.b16 %v4971, %v4963
    %v5364 = vpack.c.b16 %v4972, %v4964
    %v5365 = vpack.c.b16 %v4973, %v4965
    %v5366 = vpack.c.b16 %v4982, %v4974
    %v5367 = vpack.c.b16 %v4983, %v4975
    %v5368 = vpack.c.b16 %v4984, %v4976
    %v5369 = vpack.c.b16 %v4985, %v4977
    %v5370 = vpack.c.b16 %v4986, %v4978
    %v5371 = vpack.c.b16 %v4987, %v4979
    %v5372 = vpack.c.b16 %v4988, %v4980
    %v5373 = vpack.c.b16 %v4989, %v4981
    %5758 = vmatpush.bf16.msra.mxu0 %v5046
    %5759 = vmatpush.bf16.msra.mxu0 %v5038
    %5760 = vmatpush.bf16.msra.mxu0 %v5030
    %5761 = vmatpush.bf16.msra.mxu0 %v5022
    %5762 = vmatpush.bf16.msra.mxu0 %v5014
    %5763 = vmatpush.bf16.msra.mxu0 %v5006
    %5764 = vmatpush.bf16.msra.mxu0 %v4998
    %5765 = vmatpush.bf16.msra.mxu0 %v4990
    %5766 = vmatmul.bf16.gmra.mxu0 %v471
    %v5767 = vpop.f32.mrf.mxu0
    %v5768 = vadd.f32 %v3289, %v5767
    %v5769 = vpop.f32.mrf.mxu0
    %5770 = vdwg.mxu0
    %5771 = vmatpush.bf16.msra.mxu0 %v5110
    %5772 = vmatpush.bf16.msra.mxu0 %v5102
    %5773 = vmatpush.bf16.msra.mxu0 %v5094
    %5774 = vmatpush.bf16.msra.mxu0 %v5086
    %5775 = vmatpush.bf16.msra.mxu0 %v5078
    %5776 = vmatpush.bf16.msra.mxu0 %v5070
    %5777 = vmatpush.bf16.msra.mxu0 %v5062
    %5778 = vmatpush.bf16.msra.mxu0 %v5054
    %5779 = vmatmul.bf16.gmra.mxu0 %v472
    %v5780 = vpop.f32.mrf.mxu0
    %v5781 = vadd.f32 %v5768, %v5780
    %v5782 = vpop.f32.mrf.mxu0
    %5783 = vdwg.mxu0
    %5784 = vmatpush.bf16.msra.mxu0 %v5174
    %5785 = vmatpush.bf16.msra.mxu0 %v5166
    %5786 = vmatpush.bf16.msra.mxu0 %v5158
    %5787 = vmatpush.bf16.msra.mxu0 %v5150
    %5788 = vmatpush.bf16.msra.mxu0 %v5142
    %5789 = vmatpush.bf16.msra.mxu0 %v5134
    %5790 = vmatpush.bf16.msra.mxu0 %v5126
    %5791 = vmatpush.bf16.msra.mxu0 %v5118
    %5792 = vmatmul.bf16.gmra.mxu0 %v473
    %v5793 = vpop.f32.mrf.mxu0
    %v5794 = vadd.f32 %v5781, %v5793
    %v5795 = vpop.f32.mrf.mxu0
    %5796 = vdwg.mxu0
    %5797 = vmatpush.bf16.msra.mxu0 %v5238
    %5798 = vmatpush.bf16.msra.mxu0 %v5230
    %5799 = vmatpush.bf16.msra.mxu0 %v5222
    %5800 = vmatpush.bf16.msra.mxu0 %v5214
    %5801 = vmatpush.bf16.msra.mxu0 %v5206
    %5802 = vmatpush.bf16.msra.mxu0 %v5198
    %5803 = vmatpush.bf16.msra.mxu0 %v5190
    %5804 = vmatpush.bf16.msra.mxu0 %v5182
    %5805 = vmatmul.bf16.gmra.mxu0 %v474
    %v5806 = vpop.f32.mrf.mxu0
    %v5807 = vadd.f32 %v5794, %v5806
    %v5808 = vpop.f32.mrf.mxu0
    %5809 = vdwg.mxu0
    %5810 = vmatpush.bf16.msra.mxu0 %v5302
    %5811 = vmatpush.bf16.msra.mxu0 %v5294
    %5812 = vmatpush.bf16.msra.mxu0 %v5286
    %5813 = vmatpush.bf16.msra.mxu0 %v5278
    %5814 = vmatpush.bf16.msra.mxu0 %v5270
    %5815 = vmatpush.bf16.msra.mxu0 %v5262
    %5816 = vmatpush.bf16.msra.mxu0 %v5254
    %5817 = vmatpush.bf16.msra.mxu0 %v5246
    %5818 = vmatmul.bf16.gmra.mxu0 %v475
    %v5819 = vpop.f32.mrf.mxu0
    %v5820 = vadd.f32 %v5807, %v5819
    %v5821 = vpop.f32.mrf.mxu0
    %5822 = vdwg.mxu0
    %5823 = vmatpush.bf16.msra.mxu0 %v5366
    %5824 = vmatpush.bf16.msra.mxu0 %v5358
    %5825 = vmatpush.bf16.msra.mxu0 %v5350
    %5826 = vmatpush.bf16.msra.mxu0 %v5342
    %5827 = vmatpush.bf16.msra.mxu0 %v5334
    %5828 = vmatpush.bf16.msra.mxu0 %v5326
    %5829 = vmatpush.bf16.msra.mxu0 %v5318
    %5830 = vmatpush.bf16.msra.mxu0 %v5310
    %5831 = vmatmul.bf16.gmra.mxu0 %v476
    %v5832 = vpop.f32.mrf.mxu0
    %v5833 = vadd.f32 %v5820, %v5832
    %v5834 = vpop.f32.mrf.mxu0
    %5835 = vdwg.mxu0
    %5836 = vmatpush.bf16.msra.mxu0 %v5047
    %5837 = vmatpush.bf16.msra.mxu0 %v5039
    %5838 = vmatpush.bf16.msra.mxu0 %v5031
    %5839 = vmatpush.bf16.msra.mxu0 %v5023
    %5840 = vmatpush.bf16.msra.mxu0 %v5015
    %5841 = vmatpush.bf16.msra.mxu0 %v5007
    %5842 = vmatpush.bf16.msra.mxu0 %v4999
    %5843 = vmatpush.bf16.msra.mxu0 %v4991
    %5844 = vmatmul.bf16.gmra.mxu0 %v471
    %v5845 = vpop.f32.mrf.mxu0
    %v5846 = vadd.f32 %v3367, %v5845
    %v5847 = vpop.f32.mrf.mxu0
    %5848 = vdwg.mxu0
    %5849 = vmatpush.bf16.msra.mxu0 %v5111
    %5850 = vmatpush.bf16.msra.mxu0 %v5103
    %5851 = vmatpush.bf16.msra.mxu0 %v5095
    %5852 = vmatpush.bf16.msra.mxu0 %v5087
    %5853 = vmatpush.bf16.msra.mxu0 %v5079
    %5854 = vmatpush.bf16.msra.mxu0 %v5071
    %5855 = vmatpush.bf16.msra.mxu0 %v5063
    %5856 = vmatpush.bf16.msra.mxu0 %v5055
    %5857 = vmatmul.bf16.gmra.mxu0 %v472
    %v5858 = vpop.f32.mrf.mxu0
    %v5859 = vadd.f32 %v5846, %v5858
    %v5860 = vpop.f32.mrf.mxu0
    %5861 = vdwg.mxu0
    %5862 = vmatpush.bf16.msra.mxu0 %v5175
    %5863 = vmatpush.bf16.msra.mxu0 %v5167
    %5864 = vmatpush.bf16.msra.mxu0 %v5159
    %5865 = vmatpush.bf16.msra.mxu0 %v5151
    %5866 = vmatpush.bf16.msra.mxu0 %v5143
    %5867 = vmatpush.bf16.msra.mxu0 %v5135
    %5868 = vmatpush.bf16.msra.mxu0 %v5127
    %5869 = vmatpush.bf16.msra.mxu0 %v5119
    %5870 = vmatmul.bf16.gmra.mxu0 %v473
    %v5871 = vpop.f32.mrf.mxu0
    %v5872 = vadd.f32 %v5859, %v5871
    %v5873 = vpop.f32.mrf.mxu0
    %5874 = vdwg.mxu0
    %5875 = vmatpush.bf16.msra.mxu0 %v5239
    %5876 = vmatpush.bf16.msra.mxu0 %v5231
    %5877 = vmatpush.bf16.msra.mxu0 %v5223
    %5878 = vmatpush.bf16.msra.mxu0 %v5215
    %5879 = vmatpush.bf16.msra.mxu0 %v5207
    %5880 = vmatpush.bf16.msra.mxu0 %v5199
    %5881 = vmatpush.bf16.msra.mxu0 %v5191
    %5882 = vmatpush.bf16.msra.mxu0 %v5183
    %5883 = vmatmul.bf16.gmra.mxu0 %v474
    %v5884 = vpop.f32.mrf.mxu0
    %v5885 = vadd.f32 %v5872, %v5884
    %v5886 = vpop.f32.mrf.mxu0
    %5887 = vdwg.mxu0
    %5888 = vmatpush.bf16.msra.mxu0 %v5303
    %5889 = vmatpush.bf16.msra.mxu0 %v5295
    %5890 = vmatpush.bf16.msra.mxu0 %v5287
    %5891 = vmatpush.bf16.msra.mxu0 %v5279
    %5892 = vmatpush.bf16.msra.mxu0 %v5271
    %5893 = vmatpush.bf16.msra.mxu0 %v5263
    %5894 = vmatpush.bf16.msra.mxu0 %v5255
    %5895 = vmatpush.bf16.msra.mxu0 %v5247
    %5896 = vmatmul.bf16.gmra.mxu0 %v475
    %v5897 = vpop.f32.mrf.mxu0
    %v5898 = vadd.f32 %v5885, %v5897
    %v5899 = vpop.f32.mrf.mxu0
    %5900 = vdwg.mxu0
    %5901 = vmatpush.bf16.msra.mxu0 %v5367
    %5902 = vmatpush.bf16.msra.mxu0 %v5359
    %5903 = vmatpush.bf16.msra.mxu0 %v5351
    %5904 = vmatpush.bf16.msra.mxu0 %v5343
    %5905 = vmatpush.bf16.msra.mxu0 %v5335
    %5906 = vmatpush.bf16.msra.mxu0 %v5327
    %5907 = vmatpush.bf16.msra.mxu0 %v5319
    %5908 = vmatpush.bf16.msra.mxu0 %v5311
    %5909 = vmatmul.bf16.gmra.mxu0 %v476
    %v5910 = vpop.f32.mrf.mxu0
    %v5911 = vadd.f32 %v5898, %v5910
    %v5912 = vpop.f32.mrf.mxu0
    %5913 = vdwg.mxu0
    %5914 = vmatpush.bf16.msra.mxu0 %v5048
    %5915 = vmatpush.bf16.msra.mxu0 %v5040
    %5916 = vmatpush.bf16.msra.mxu0 %v5032
    %5917 = vmatpush.bf16.msra.mxu0 %v5024
    %5918 = vmatpush.bf16.msra.mxu0 %v5016
    %5919 = vmatpush.bf16.msra.mxu0 %v5008
    %5920 = vmatpush.bf16.msra.mxu0 %v5000
    %5921 = vmatpush.bf16.msra.mxu0 %v4992
    %5922 = vmatmul.bf16.gmra.mxu0 %v471
    %v5923 = vpop.f32.mrf.mxu0
    %v5924 = vadd.f32 %v3445, %v5923
    %v5925 = vpop.f32.mrf.mxu0
    %5926 = vdwg.mxu0
    %5927 = vmatpush.bf16.msra.mxu0 %v5112
    %5928 = vmatpush.bf16.msra.mxu0 %v5104
    %5929 = vmatpush.bf16.msra.mxu0 %v5096
    %5930 = vmatpush.bf16.msra.mxu0 %v5088
    %5931 = vmatpush.bf16.msra.mxu0 %v5080
    %5932 = vmatpush.bf16.msra.mxu0 %v5072
    %5933 = vmatpush.bf16.msra.mxu0 %v5064
    %5934 = vmatpush.bf16.msra.mxu0 %v5056
    %5935 = vmatmul.bf16.gmra.mxu0 %v472
    %v5936 = vpop.f32.mrf.mxu0
    %v5937 = vadd.f32 %v5924, %v5936
    %v5938 = vpop.f32.mrf.mxu0
    %5939 = vdwg.mxu0
    %5940 = vmatpush.bf16.msra.mxu0 %v5176
    %5941 = vmatpush.bf16.msra.mxu0 %v5168
    %5942 = vmatpush.bf16.msra.mxu0 %v5160
    %5943 = vmatpush.bf16.msra.mxu0 %v5152
    %5944 = vmatpush.bf16.msra.mxu0 %v5144
    %5945 = vmatpush.bf16.msra.mxu0 %v5136
    %5946 = vmatpush.bf16.msra.mxu0 %v5128
    %5947 = vmatpush.bf16.msra.mxu0 %v5120
    %5948 = vmatmul.bf16.gmra.mxu0 %v473
    %v5949 = vpop.f32.mrf.mxu0
    %v5950 = vadd.f32 %v5937, %v5949
    %v5951 = vpop.f32.mrf.mxu0
    %5952 = vdwg.mxu0
    %5953 = vmatpush.bf16.msra.mxu0 %v5240
    %5954 = vmatpush.bf16.msra.mxu0 %v5232
    %5955 = vmatpush.bf16.msra.mxu0 %v5224
    %5956 = vmatpush.bf16.msra.mxu0 %v5216
    %5957 = vmatpush.bf16.msra.mxu0 %v5208
    %5958 = vmatpush.bf16.msra.mxu0 %v5200
    %5959 = vmatpush.bf16.msra.mxu0 %v5192
    %5960 = vmatpush.bf16.msra.mxu0 %v5184
    %5961 = vmatmul.bf16.gmra.mxu0 %v474
    %v5962 = vpop.f32.mrf.mxu0
    %v5963 = vadd.f32 %v5950, %v5962
    %v5964 = vpop.f32.mrf.mxu0
    %5965 = vdwg.mxu0
    %5966 = vmatpush.bf16.msra.mxu0 %v5304
    %5967 = vmatpush.bf16.msra.mxu0 %v5296
    %5968 = vmatpush.bf16.msra.mxu0 %v5288
    %5969 = vmatpush.bf16.msra.mxu0 %v5280
    %5970 = vmatpush.bf16.msra.mxu0 %v5272
    %5971 = vmatpush.bf16.msra.mxu0 %v5264
    %5972 = vmatpush.bf16.msra.mxu0 %v5256
    %5973 = vmatpush.bf16.msra.mxu0 %v5248
    %5974 = vmatmul.bf16.gmra.mxu0 %v475
    %v5975 = vpop.f32.mrf.mxu0
    %v5976 = vadd.f32 %v5963, %v5975
    %v5977 = vpop.f32.mrf.mxu0
    %5978 = vdwg.mxu0
    %5979 = vmatpush.bf16.msra.mxu0 %v5368
    %5980 = vmatpush.bf16.msra.mxu0 %v5360
    %5981 = vmatpush.bf16.msra.mxu0 %v5352
    %5982 = vmatpush.bf16.msra.mxu0 %v5344
    %5983 = vmatpush.bf16.msra.mxu0 %v5336
    %5984 = vmatpush.bf16.msra.mxu0 %v5328
    %5985 = vmatpush.bf16.msra.mxu0 %v5320
    %5986 = vmatpush.bf16.msra.mxu0 %v5312
    %5987 = vmatmul.bf16.gmra.mxu0 %v476
    %v5988 = vpop.f32.mrf.mxu0
    %v5989 = vadd.f32 %v5976, %v5988
    %v5990 = vpop.f32.mrf.mxu0
    %5991 = vdwg.mxu0
    %5992 = vmatpush.bf16.msra.mxu0 %v5049
    %5993 = vmatpush.bf16.msra.mxu0 %v5041
    %5994 = vmatpush.bf16.msra.mxu0 %v5033
    %5995 = vmatpush.bf16.msra.mxu0 %v5025
    %5996 = vmatpush.bf16.msra.mxu0 %v5017
    %5997 = vmatpush.bf16.msra.mxu0 %v5009
    %5998 = vmatpush.bf16.msra.mxu0 %v5001
    %5999 = vmatpush.bf16.msra.mxu0 %v4993
    %6000 = vmatmul.bf16.gmra.mxu0 %v471
    %v6001 = vpop.f32.mrf.mxu0
    %v6002 = vadd.f32 %v3523, %v6001
    %v6003 = vpop.f32.mrf.mxu0
    %6004 = vdwg.mxu0
    %6005 = vmatpush.bf16.msra.mxu0 %v5113
    %6006 = vmatpush.bf16.msra.mxu0 %v5105
    %6007 = vmatpush.bf16.msra.mxu0 %v5097
    %6008 = vmatpush.bf16.msra.mxu0 %v5089
    %6009 = vmatpush.bf16.msra.mxu0 %v5081
    %6010 = vmatpush.bf16.msra.mxu0 %v5073
    %6011 = vmatpush.bf16.msra.mxu0 %v5065
    %6012 = vmatpush.bf16.msra.mxu0 %v5057
    %6013 = vmatmul.bf16.gmra.mxu0 %v472
    %v6014 = vpop.f32.mrf.mxu0
    %v6015 = vadd.f32 %v6002, %v6014
    %v6016 = vpop.f32.mrf.mxu0
    %6017 = vdwg.mxu0
    %6018 = vmatpush.bf16.msra.mxu0 %v5177
    %6019 = vmatpush.bf16.msra.mxu0 %v5169
    %6020 = vmatpush.bf16.msra.mxu0 %v5161
    %6021 = vmatpush.bf16.msra.mxu0 %v5153
    %6022 = vmatpush.bf16.msra.mxu0 %v5145
    %6023 = vmatpush.bf16.msra.mxu0 %v5137
    %6024 = vmatpush.bf16.msra.mxu0 %v5129
    %6025 = vmatpush.bf16.msra.mxu0 %v5121
    %6026 = vmatmul.bf16.gmra.mxu0 %v473
    %v6027 = vpop.f32.mrf.mxu0
    %v6028 = vadd.f32 %v6015, %v6027
    %v6029 = vpop.f32.mrf.mxu0
    %6030 = vdwg.mxu0
    %6031 = vmatpush.bf16.msra.mxu0 %v5241
    %6032 = vmatpush.bf16.msra.mxu0 %v5233
    %6033 = vmatpush.bf16.msra.mxu0 %v5225
    %6034 = vmatpush.bf16.msra.mxu0 %v5217
    %6035 = vmatpush.bf16.msra.mxu0 %v5209
    %6036 = vmatpush.bf16.msra.mxu0 %v5201
    %6037 = vmatpush.bf16.msra.mxu0 %v5193
    %6038 = vmatpush.bf16.msra.mxu0 %v5185
    %6039 = vmatmul.bf16.gmra.mxu0 %v474
    %v6040 = vpop.f32.mrf.mxu0
    %v6041 = vadd.f32 %v6028, %v6040
    %v6042 = vpop.f32.mrf.mxu0
    %6043 = vdwg.mxu0
    %6044 = vmatpush.bf16.msra.mxu0 %v5305
    %6045 = vmatpush.bf16.msra.mxu0 %v5297
    %6046 = vmatpush.bf16.msra.mxu0 %v5289
    %6047 = vmatpush.bf16.msra.mxu0 %v5281
    %6048 = vmatpush.bf16.msra.mxu0 %v5273
    %6049 = vmatpush.bf16.msra.mxu0 %v5265
    %6050 = vmatpush.bf16.msra.mxu0 %v5257
    %6051 = vmatpush.bf16.msra.mxu0 %v5249
    %6052 = vmatmul.bf16.gmra.mxu0 %v475
    %v6053 = vpop.f32.mrf.mxu0
    %v6054 = vadd.f32 %v6041, %v6053
    %v6055 = vpop.f32.mrf.mxu0
    %6056 = vdwg.mxu0
    %6057 = vmatpush.bf16.msra.mxu0 %v5369
    %6058 = vmatpush.bf16.msra.mxu0 %v5361
    %6059 = vmatpush.bf16.msra.mxu0 %v5353
    %6060 = vmatpush.bf16.msra.mxu0 %v5345
    %6061 = vmatpush.bf16.msra.mxu0 %v5337
    %6062 = vmatpush.bf16.msra.mxu0 %v5329
    %6063 = vmatpush.bf16.msra.mxu0 %v5321
    %6064 = vmatpush.bf16.msra.mxu0 %v5313
    %6065 = vmatmul.bf16.gmra.mxu0 %v476
    %v6066 = vpop.f32.mrf.mxu0
    %v6067 = vadd.f32 %v6054, %v6066
    %v6068 = vpop.f32.mrf.mxu0
    %6069 = vdwg.mxu0
    %6070 = vmatpush.bf16.msra.mxu0 %v5050
    %6071 = vmatpush.bf16.msra.mxu0 %v5042
    %6072 = vmatpush.bf16.msra.mxu0 %v5034
    %6073 = vmatpush.bf16.msra.mxu0 %v5026
    %6074 = vmatpush.bf16.msra.mxu0 %v5018
    %6075 = vmatpush.bf16.msra.mxu0 %v5010
    %6076 = vmatpush.bf16.msra.mxu0 %v5002
    %6077 = vmatpush.bf16.msra.mxu0 %v4994
    %6078 = vmatmul.bf16.gmra.mxu0 %v471
    %v6079 = vpop.f32.mrf.mxu0
    %v6080 = vadd.f32 %v3601, %v6079
    %v6081 = vpop.f32.mrf.mxu0
    %6082 = vdwg.mxu0
    %6083 = vmatpush.bf16.msra.mxu0 %v5114
    %6084 = vmatpush.bf16.msra.mxu0 %v5106
    %6085 = vmatpush.bf16.msra.mxu0 %v5098
    %6086 = vmatpush.bf16.msra.mxu0 %v5090
    %6087 = vmatpush.bf16.msra.mxu0 %v5082
    %6088 = vmatpush.bf16.msra.mxu0 %v5074
    %6089 = vmatpush.bf16.msra.mxu0 %v5066
    %6090 = vmatpush.bf16.msra.mxu0 %v5058
    %6091 = vmatmul.bf16.gmra.mxu0 %v472
    %v6092 = vpop.f32.mrf.mxu0
    %v6093 = vadd.f32 %v6080, %v6092
    %v6094 = vpop.f32.mrf.mxu0
    %6095 = vdwg.mxu0
    %6096 = vmatpush.bf16.msra.mxu0 %v5178
    %6097 = vmatpush.bf16.msra.mxu0 %v5170
    %6098 = vmatpush.bf16.msra.mxu0 %v5162
    %6099 = vmatpush.bf16.msra.mxu0 %v5154
    %6100 = vmatpush.bf16.msra.mxu0 %v5146
    %6101 = vmatpush.bf16.msra.mxu0 %v5138
    %6102 = vmatpush.bf16.msra.mxu0 %v5130
    %6103 = vmatpush.bf16.msra.mxu0 %v5122
    %6104 = vmatmul.bf16.gmra.mxu0 %v473
    %v6105 = vpop.f32.mrf.mxu0
    %v6106 = vadd.f32 %v6093, %v6105
    %v6107 = vpop.f32.mrf.mxu0
    %6108 = vdwg.mxu0
    %6109 = vmatpush.bf16.msra.mxu0 %v5242
    %6110 = vmatpush.bf16.msra.mxu0 %v5234
    %6111 = vmatpush.bf16.msra.mxu0 %v5226
    %6112 = vmatpush.bf16.msra.mxu0 %v5218
    %6113 = vmatpush.bf16.msra.mxu0 %v5210
    %6114 = vmatpush.bf16.msra.mxu0 %v5202
    %6115 = vmatpush.bf16.msra.mxu0 %v5194
    %6116 = vmatpush.bf16.msra.mxu0 %v5186
    %6117 = vmatmul.bf16.gmra.mxu0 %v474
    %v6118 = vpop.f32.mrf.mxu0
    %v6119 = vadd.f32 %v6106, %v6118
    %v6120 = vpop.f32.mrf.mxu0
    %6121 = vdwg.mxu0
    %6122 = vmatpush.bf16.msra.mxu0 %v5306
    %6123 = vmatpush.bf16.msra.mxu0 %v5298
    %6124 = vmatpush.bf16.msra.mxu0 %v5290
    %6125 = vmatpush.bf16.msra.mxu0 %v5282
    %6126 = vmatpush.bf16.msra.mxu0 %v5274
    %6127 = vmatpush.bf16.msra.mxu0 %v5266
    %6128 = vmatpush.bf16.msra.mxu0 %v5258
    %6129 = vmatpush.bf16.msra.mxu0 %v5250
    %6130 = vmatmul.bf16.gmra.mxu0 %v475
    %v6131 = vpop.f32.mrf.mxu0
    %v6132 = vadd.f32 %v6119, %v6131
    %v6133 = vpop.f32.mrf.mxu0
    %6134 = vdwg.mxu0
    %6135 = vmatpush.bf16.msra.mxu0 %v5370
    %6136 = vmatpush.bf16.msra.mxu0 %v5362
    %6137 = vmatpush.bf16.msra.mxu0 %v5354
    %6138 = vmatpush.bf16.msra.mxu0 %v5346
    %6139 = vmatpush.bf16.msra.mxu0 %v5338
    %6140 = vmatpush.bf16.msra.mxu0 %v5330
    %6141 = vmatpush.bf16.msra.mxu0 %v5322
    %6142 = vmatpush.bf16.msra.mxu0 %v5314
    %6143 = vmatmul.bf16.gmra.mxu0 %v476
    %v6144 = vpop.f32.mrf.mxu0
    %v6145 = vadd.f32 %v6132, %v6144
    %v6146 = vpop.f32.mrf.mxu0
    %6147 = vdwg.mxu0
    %6148 = vmatpush.bf16.msra.mxu0 %v5051
    %6149 = vmatpush.bf16.msra.mxu0 %v5043
    %6150 = vmatpush.bf16.msra.mxu0 %v5035
    %6151 = vmatpush.bf16.msra.mxu0 %v5027
    %6152 = vmatpush.bf16.msra.mxu0 %v5019
    %6153 = vmatpush.bf16.msra.mxu0 %v5011
    %6154 = vmatpush.bf16.msra.mxu0 %v5003
    %6155 = vmatpush.bf16.msra.mxu0 %v4995
    %6156 = vmatmul.bf16.gmra.mxu0 %v471
    %v6157 = vpop.f32.mrf.mxu0
    %v6158 = vadd.f32 %v3679, %v6157
    %v6159 = vpop.f32.mrf.mxu0
    %6160 = vdwg.mxu0
    %6161 = vmatpush.bf16.msra.mxu0 %v5115
    %6162 = vmatpush.bf16.msra.mxu0 %v5107
    %6163 = vmatpush.bf16.msra.mxu0 %v5099
    %6164 = vmatpush.bf16.msra.mxu0 %v5091
    %6165 = vmatpush.bf16.msra.mxu0 %v5083
    %6166 = vmatpush.bf16.msra.mxu0 %v5075
    %6167 = vmatpush.bf16.msra.mxu0 %v5067
    %6168 = vmatpush.bf16.msra.mxu0 %v5059
    %6169 = vmatmul.bf16.gmra.mxu0 %v472
    %v6170 = vpop.f32.mrf.mxu0
    %v6171 = vadd.f32 %v6158, %v6170
    %v6172 = vpop.f32.mrf.mxu0
    %6173 = vdwg.mxu0
    %6174 = vmatpush.bf16.msra.mxu0 %v5179
    %6175 = vmatpush.bf16.msra.mxu0 %v5171
    %6176 = vmatpush.bf16.msra.mxu0 %v5163
    %6177 = vmatpush.bf16.msra.mxu0 %v5155
    %6178 = vmatpush.bf16.msra.mxu0 %v5147
    %6179 = vmatpush.bf16.msra.mxu0 %v5139
    %6180 = vmatpush.bf16.msra.mxu0 %v5131
    %6181 = vmatpush.bf16.msra.mxu0 %v5123
    %6182 = vmatmul.bf16.gmra.mxu0 %v473
    %v6183 = vpop.f32.mrf.mxu0
    %v6184 = vadd.f32 %v6171, %v6183
    %v6185 = vpop.f32.mrf.mxu0
    %6186 = vdwg.mxu0
    %6187 = vmatpush.bf16.msra.mxu0 %v5243
    %6188 = vmatpush.bf16.msra.mxu0 %v5235
    %6189 = vmatpush.bf16.msra.mxu0 %v5227
    %6190 = vmatpush.bf16.msra.mxu0 %v5219
    %6191 = vmatpush.bf16.msra.mxu0 %v5211
    %6192 = vmatpush.bf16.msra.mxu0 %v5203
    %6193 = vmatpush.bf16.msra.mxu0 %v5195
    %6194 = vmatpush.bf16.msra.mxu0 %v5187
    %6195 = vmatmul.bf16.gmra.mxu0 %v474
    %v6196 = vpop.f32.mrf.mxu0
    %v6197 = vadd.f32 %v6184, %v6196
    %v6198 = vpop.f32.mrf.mxu0
    %6199 = vdwg.mxu0
    %6200 = vmatpush.bf16.msra.mxu0 %v5307
    %6201 = vmatpush.bf16.msra.mxu0 %v5299
    %6202 = vmatpush.bf16.msra.mxu0 %v5291
    %6203 = vmatpush.bf16.msra.mxu0 %v5283
    %6204 = vmatpush.bf16.msra.mxu0 %v5275
    %6205 = vmatpush.bf16.msra.mxu0 %v5267
    %6206 = vmatpush.bf16.msra.mxu0 %v5259
    %6207 = vmatpush.bf16.msra.mxu0 %v5251
    %6208 = vmatmul.bf16.gmra.mxu0 %v475
    %v6209 = vpop.f32.mrf.mxu0
    %v6210 = vadd.f32 %v6197, %v6209
    %v6211 = vpop.f32.mrf.mxu0
    %6212 = vdwg.mxu0
    %6213 = vmatpush.bf16.msra.mxu0 %v5371
    %6214 = vmatpush.bf16.msra.mxu0 %v5363
    %6215 = vmatpush.bf16.msra.mxu0 %v5355
    %6216 = vmatpush.bf16.msra.mxu0 %v5347
    %6217 = vmatpush.bf16.msra.mxu0 %v5339
    %6218 = vmatpush.bf16.msra.mxu0 %v5331
    %6219 = vmatpush.bf16.msra.mxu0 %v5323
    %6220 = vmatpush.bf16.msra.mxu0 %v5315
    %6221 = vmatmul.bf16.gmra.mxu0 %v476
    %v6222 = vpop.f32.mrf.mxu0
    %v6223 = vadd.f32 %v6210, %v6222
    %v6224 = vpop.f32.mrf.mxu0
    %6225 = vdwg.mxu0
    %6226 = vmatpush.bf16.msra.mxu0 %v5052
    %6227 = vmatpush.bf16.msra.mxu0 %v5044
    %6228 = vmatpush.bf16.msra.mxu0 %v5036
    %6229 = vmatpush.bf16.msra.mxu0 %v5028
    %6230 = vmatpush.bf16.msra.mxu0 %v5020
    %6231 = vmatpush.bf16.msra.mxu0 %v5012
    %6232 = vmatpush.bf16.msra.mxu0 %v5004
    %6233 = vmatpush.bf16.msra.mxu0 %v4996
    %6234 = vmatmul.bf16.gmra.mxu0 %v471
    %v6235 = vpop.f32.mrf.mxu0
    %v6236 = vadd.f32 %v3757, %v6235
    %v6237 = vpop.f32.mrf.mxu0
    %6238 = vdwg.mxu0
    %6239 = vmatpush.bf16.msra.mxu0 %v5116
    %6240 = vmatpush.bf16.msra.mxu0 %v5108
    %6241 = vmatpush.bf16.msra.mxu0 %v5100
    %6242 = vmatpush.bf16.msra.mxu0 %v5092
    %6243 = vmatpush.bf16.msra.mxu0 %v5084
    %6244 = vmatpush.bf16.msra.mxu0 %v5076
    %6245 = vmatpush.bf16.msra.mxu0 %v5068
    %6246 = vmatpush.bf16.msra.mxu0 %v5060
    %6247 = vmatmul.bf16.gmra.mxu0 %v472
    %v6248 = vpop.f32.mrf.mxu0
    %v6249 = vadd.f32 %v6236, %v6248
    %v6250 = vpop.f32.mrf.mxu0
    %6251 = vdwg.mxu0
    %6252 = vmatpush.bf16.msra.mxu0 %v5180
    %6253 = vmatpush.bf16.msra.mxu0 %v5172
    %6254 = vmatpush.bf16.msra.mxu0 %v5164
    %6255 = vmatpush.bf16.msra.mxu0 %v5156
    %6256 = vmatpush.bf16.msra.mxu0 %v5148
    %6257 = vmatpush.bf16.msra.mxu0 %v5140
    %6258 = vmatpush.bf16.msra.mxu0 %v5132
    %6259 = vmatpush.bf16.msra.mxu0 %v5124
    %6260 = vmatmul.bf16.gmra.mxu0 %v473
    %v6261 = vpop.f32.mrf.mxu0
    %v6262 = vadd.f32 %v6249, %v6261
    %v6263 = vpop.f32.mrf.mxu0
    %6264 = vdwg.mxu0
    %6265 = vmatpush.bf16.msra.mxu0 %v5244
    %6266 = vmatpush.bf16.msra.mxu0 %v5236
    %6267 = vmatpush.bf16.msra.mxu0 %v5228
    %6268 = vmatpush.bf16.msra.mxu0 %v5220
    %6269 = vmatpush.bf16.msra.mxu0 %v5212
    %6270 = vmatpush.bf16.msra.mxu0 %v5204
    %6271 = vmatpush.bf16.msra.mxu0 %v5196
    %6272 = vmatpush.bf16.msra.mxu0 %v5188
    %6273 = vmatmul.bf16.gmra.mxu0 %v474
    %v6274 = vpop.f32.mrf.mxu0
    %v6275 = vadd.f32 %v6262, %v6274
    %v6276 = vpop.f32.mrf.mxu0
    %6277 = vdwg.mxu0
    %6278 = vmatpush.bf16.msra.mxu0 %v5308
    %6279 = vmatpush.bf16.msra.mxu0 %v5300
    %6280 = vmatpush.bf16.msra.mxu0 %v5292
    %6281 = vmatpush.bf16.msra.mxu0 %v5284
    %6282 = vmatpush.bf16.msra.mxu0 %v5276
    %6283 = vmatpush.bf16.msra.mxu0 %v5268
    %6284 = vmatpush.bf16.msra.mxu0 %v5260
    %6285 = vmatpush.bf16.msra.mxu0 %v5252
    %6286 = vmatmul.bf16.gmra.mxu0 %v475
    %v6287 = vpop.f32.mrf.mxu0
    %v6288 = vadd.f32 %v6275, %v6287
    %v6289 = vpop.f32.mrf.mxu0
    %6290 = vdwg.mxu0
    %6291 = vmatpush.bf16.msra.mxu0 %v5372
    %6292 = vmatpush.bf16.msra.mxu0 %v5364
    %6293 = vmatpush.bf16.msra.mxu0 %v5356
    %6294 = vmatpush.bf16.msra.mxu0 %v5348
    %6295 = vmatpush.bf16.msra.mxu0 %v5340
    %6296 = vmatpush.bf16.msra.mxu0 %v5332
    %6297 = vmatpush.bf16.msra.mxu0 %v5324
    %6298 = vmatpush.bf16.msra.mxu0 %v5316
    %6299 = vmatmul.bf16.gmra.mxu0 %v476
    %v6300 = vpop.f32.mrf.mxu0
    %v6301 = vadd.f32 %v6288, %v6300
    %v6302 = vpop.f32.mrf.mxu0
    %6303 = vdwg.mxu0
    %6304 = vmatpush.bf16.msra.mxu0 %v5053
    %6305 = vmatpush.bf16.msra.mxu0 %v5045
    %6306 = vmatpush.bf16.msra.mxu0 %v5037
    %6307 = vmatpush.bf16.msra.mxu0 %v5029
    %6308 = vmatpush.bf16.msra.mxu0 %v5021
    %6309 = vmatpush.bf16.msra.mxu0 %v5013
    %6310 = vmatpush.bf16.msra.mxu0 %v5005
    %6311 = vmatpush.bf16.msra.mxu0 %v4997
    %6312 = vmatmul.bf16.gmra.mxu0 %v471
    %v6313 = vpop.f32.mrf.mxu0
    %v6314 = vadd.f32 %v3835, %v6313
    %v6315 = vpop.f32.mrf.mxu0
    %6316 = vdwg.mxu0
    %6317 = vmatpush.bf16.msra.mxu0 %v5117
    %6318 = vmatpush.bf16.msra.mxu0 %v5109
    %6319 = vmatpush.bf16.msra.mxu0 %v5101
    %6320 = vmatpush.bf16.msra.mxu0 %v5093
    %6321 = vmatpush.bf16.msra.mxu0 %v5085
    %6322 = vmatpush.bf16.msra.mxu0 %v5077
    %6323 = vmatpush.bf16.msra.mxu0 %v5069
    %6324 = vmatpush.bf16.msra.mxu0 %v5061
    %6325 = vmatmul.bf16.gmra.mxu0 %v472
    %v6326 = vpop.f32.mrf.mxu0
    %v6327 = vadd.f32 %v6314, %v6326
    %v6328 = vpop.f32.mrf.mxu0
    %6329 = vdwg.mxu0
    %6330 = vmatpush.bf16.msra.mxu0 %v5181
    %6331 = vmatpush.bf16.msra.mxu0 %v5173
    %6332 = vmatpush.bf16.msra.mxu0 %v5165
    %6333 = vmatpush.bf16.msra.mxu0 %v5157
    %6334 = vmatpush.bf16.msra.mxu0 %v5149
    %6335 = vmatpush.bf16.msra.mxu0 %v5141
    %6336 = vmatpush.bf16.msra.mxu0 %v5133
    %6337 = vmatpush.bf16.msra.mxu0 %v5125
    %6338 = vmatmul.bf16.gmra.mxu0 %v473
    %v6339 = vpop.f32.mrf.mxu0
    %v6340 = vadd.f32 %v6327, %v6339
    %v6341 = vpop.f32.mrf.mxu0
    %6342 = vdwg.mxu0
    %6343 = vmatpush.bf16.msra.mxu0 %v5245
    %6344 = vmatpush.bf16.msra.mxu0 %v5237
    %6345 = vmatpush.bf16.msra.mxu0 %v5229
    %6346 = vmatpush.bf16.msra.mxu0 %v5221
    %6347 = vmatpush.bf16.msra.mxu0 %v5213
    %6348 = vmatpush.bf16.msra.mxu0 %v5205
    %6349 = vmatpush.bf16.msra.mxu0 %v5197
    %6350 = vmatpush.bf16.msra.mxu0 %v5189
    %6351 = vmatmul.bf16.gmra.mxu0 %v474
    %v6352 = vpop.f32.mrf.mxu0
    %v6353 = vadd.f32 %v6340, %v6352
    %v6354 = vpop.f32.mrf.mxu0
    %6355 = vdwg.mxu0
    %6356 = vmatpush.bf16.msra.mxu0 %v5309
    %6357 = vmatpush.bf16.msra.mxu0 %v5301
    %6358 = vmatpush.bf16.msra.mxu0 %v5293
    %6359 = vmatpush.bf16.msra.mxu0 %v5285
    %6360 = vmatpush.bf16.msra.mxu0 %v5277
    %6361 = vmatpush.bf16.msra.mxu0 %v5269
    %6362 = vmatpush.bf16.msra.mxu0 %v5261
    %6363 = vmatpush.bf16.msra.mxu0 %v5253
    %6364 = vmatmul.bf16.gmra.mxu0 %v475
    %v6365 = vpop.f32.mrf.mxu0
    %v6366 = vadd.f32 %v6353, %v6365
    %v6367 = vpop.f32.mrf.mxu0
    %6368 = vdwg.mxu0
    %6369 = vmatpush.bf16.msra.mxu0 %v5373
    %6370 = vmatpush.bf16.msra.mxu0 %v5365
    %6371 = vmatpush.bf16.msra.mxu0 %v5357
    %6372 = vmatpush.bf16.msra.mxu0 %v5349
    %6373 = vmatpush.bf16.msra.mxu0 %v5341
    %6374 = vmatpush.bf16.msra.mxu0 %v5333
    %6375 = vmatpush.bf16.msra.mxu0 %v5325
    %6376 = vmatpush.bf16.msra.mxu0 %v5317
    %6377 = vmatmul.bf16.gmra.mxu0 %v476
    %v6378 = vpop.f32.mrf.mxu0
    %v6379 = vadd.f32 %v6366, %v6378
    %v6380 = vpop.f32.mrf.mxu0
    %6381 = vdwg.mxu0
    %v6382 = vmul.f32 %v288, %v403
    %v6383 = vld [vmem:[#allocation10] sm:$0xff]
    %6385 = vset.pattern.permute.xlu0 0
    %6386 = vperm.xlu0 %6385, %v6382
    %v6387 = vpop.permute.xlu0 %6386
    %v6390 = vperm.slane %v6383, 0
    %v6391 = vperm.slane %v6383, 1
    %v6392 = vperm.slane %v6383, 2
    %v6393 = vperm.slane %v6383, 3
    %v6394 = vperm.slane %v6383, 4
    %v6395 = vperm.slane %v6383, 5
    %v6396 = vperm.slane %v6383, 6
    %v6397 = vperm.slane %v6383, 7
    %v6406 = vmul.f32 %v6387, %v6390
    %v6407 = vmul.f32 %v6387, %v6391
    %v6408 = vmul.f32 %v6387, %v6392
    %v6409 = vmul.f32 %v6387, %v6393
    %v6410 = vmul.f32 %v6387, %v6394
    %v6411 = vmul.f32 %v6387, %v6395
    %v6412 = vmul.f32 %v6387, %v6396
    %v6413 = vmul.f32 %v6387, %v6397
    %v6414 = vadd.f32 %v5833, %v6406
    %v6415 = vadd.f32 %v5911, %v6407
    %v6416 = vadd.f32 %v5989, %v6408
    %v6417 = vadd.f32 %v6067, %v6409
    %v6418 = vadd.f32 %v6145, %v6410
    %v6419 = vadd.f32 %v6223, %v6411
    %v6420 = vadd.f32 %v6301, %v6412
    %v6421 = vadd.f32 %v6379, %v6413
    %v6422 = vld [vmem:[#allocation11] sm:$0xff]
    %v6424 = vperm.slane %v6422, 0
    %v6425 = vperm.slane %v6422, 1
    %v6426 = vperm.slane %v6422, 2
    %v6427 = vperm.slane %v6422, 3
    %v6428 = vperm.slane %v6422, 4
    %v6429 = vperm.slane %v6422, 5
    %v6430 = vperm.slane %v6422, 6
    %v6431 = vperm.slane %v6422, 7
    %v6440 = vadd.f32 %v6414, %v6424
    %v6441 = vadd.f32 %v6415, %v6425
    %v6442 = vadd.f32 %v6416, %v6426
    %v6443 = vadd.f32 %v6417, %v6427
    %v6444 = vadd.f32 %v6418, %v6428
    %v6445 = vadd.f32 %v6419, %v6429
    %v6446 = vadd.f32 %v6420, %v6430
    %v6447 = vadd.f32 %v6421, %v6431
    %v6448 = vmax.f32 %v6440, 0.0
    %v6449 = vmax.f32 %v6441, 0.0
    %v6450 = vmax.f32 %v6442, 0.0
    %v6451 = vmax.f32 %v6443, 0.0
    %v6452 = vmax.f32 %v6444, 0.0
    %v6453 = vmax.f32 %v6445, 0.0
    %v6454 = vmax.f32 %v6446, 0.0
    %v6455 = vmax.f32 %v6447, 0.0
    %v6456 = vld [vmem:[#allocation13] sm:$0xff]
    %v6458 = vperm.slane %v6456, 0
    %v6459 = vperm.slane %v6456, 1
    %v6460 = vperm.slane %v6456, 2
    %v6461 = vperm.slane %v6456, 3
    %v6462 = vperm.slane %v6456, 4
    %v6463 = vperm.slane %v6456, 5
    %v6464 = vperm.slane %v6456, 6
    %v6465 = vperm.slane %v6456, 7
    %v6474 = vmul.f32 %v6448, %v6458
    %v6475 = vmul.f32 %v6449, %v6459
    %v6476 = vmul.f32 %v6450, %v6460
    %v6477 = vmul.f32 %v6451, %v6461
    %v6478 = vmul.f32 %v6452, %v6462
    %v6479 = vmul.f32 %v6453, %v6463
    %v6480 = vmul.f32 %v6454, %v6464
    %v6481 = vmul.f32 %v6455, %v6465
    %v6482 = vadd.f32 %v6474, %v6475
    %v6483 = vadd.f32 %v6482, %v6476
    %v6484 = vadd.f32 %v6483, %v6477
    %v6485 = vadd.f32 %v6484, %v6478
    %v6486 = vadd.f32 %v6485, %v6479
    %v6487 = vadd.f32 %v6486, %v6480
    %v6488 = vadd.f32 %v6487, %v6481
    %6489 = vadd.xlane.f32.xlu0 %v6488
    %v6490 = vpop.xlane.xlu0 %6489
    %s6491 = sld [smem:[#allocation2]]
    %v6492 = vstv %s6491
    %v6493 = vadd.f32 %v6490, %v6492
    %vm6494 = vcmask 7168
    %6495 = vst.msk [vmem:[#allocation14] sm:$0xff] %vm6494, %v6493
    // Predicated region
    $region66: #{tpu_custom_call.1} parent=1 // pred_check
      _
    $region67: #{tpu_custom_call.1} parent=1 // pred_check_branch
      %6497 = sbr.rel (0) target = $region69
    $region68: #{tpu_custom_call.1} parent=1 // pred_region
      // Predicated region
      $region70: #{tpu_custom_call.1} parent=68 // pred_check
        _
      $region71: #{tpu_custom_call.1} parent=68 // pred_check_branch
        %6499 = sbr.rel (0) target = $region73
      $region72: #{tpu_custom_call.1} parent=68 // pred_region
        // Predicated region
        $region74: #{tpu_custom_call.1} parent=72 // pred_check
          _
        $region75: #{tpu_custom_call.1} parent=72 // pred_check_branch
          %6501 = sbr.rel target = $region77
        $region76: #{tpu_custom_call.1} parent=72 // pred_region
          // Predicated region
          $region89: #{tpu_custom_call.1} parent=76 // pred_check
            _
          $region90: #{tpu_custom_call.1} parent=76 // pred_check_branch
            %6517 = sbr.rel (0) target = $region92
          $region91: #{tpu_custom_call.1} parent=76 // pred_region
            %s6519 = ssub.s32 4, 1
            loop: start=0, step=1, limit=1
            $region93: #{tpu_custom_call.1} parent=91 // loop_pre_header
              _
            $region94: #{tpu_custom_call.1} parent=91 // loop_header
              %s6521 = sphi 0, %s6525
              %p6522 = scmp.ge.s32.totalorder %s6521, 1
              %s6526 = sphi [#allocation14], [#allocation14]
              %s6527 = sphi %s9, %s9
            $region95: #{tpu_custom_call.1} parent=91 // loop_header_branch
              %6524 = sbr.rel (%p6522) target = $region99
            $region96: #{tpu_custom_call.1} parent=91 // loop_body
              %v6528 = vld [vmem:[%s6526] sm:%s6519]
              %6529 = vst [vmem:[%s6527] sm:%s6519] %v6528
            $region97: #{tpu_custom_call.1} parent=91 // loop_footer
              %s6525 = sadd.s32 1, %s6521
            $region98: #{tpu_custom_call.1} parent=91 // loop_footer_branch
              %6520 = sbr.rel target = $region94
            $region99: #{tpu_custom_call.1} parent=91 // loop_exit
              _
          $region92: #{tpu_custom_call.1} parent=76 // pred_fallthru
            _
        $region77: #{tpu_custom_call.1} parent=72 // pred_fallthru
          _
        // Predicated region
        $region78: #{tpu_custom_call.1} parent=72 // pred_check
          _
        $region79: #{tpu_custom_call.1} parent=72 // pred_check_branch
          %6503 = sbr.rel (0) target = $region81
        $region80: #{tpu_custom_call.1} parent=72 // pred_region
          %s6505 = ssub.s32 4, 1
          loop: start=0, step=1, limit=1
          $region82: #{tpu_custom_call.1} parent=80 // loop_pre_header
            _
          $region83: #{tpu_custom_call.1} parent=80 // loop_header
            %s6507 = sphi 0, %s6511
            %p6508 = scmp.ge.s32.totalorder %s6507, 1
            %s6512 = sphi [#allocation14], [#allocation14]
            %s6513 = sphi %s9, %s9
          $region84: #{tpu_custom_call.1} parent=80 // loop_header_branch
            %6510 = sbr.rel (%p6508) target = $region88
          $region85: #{tpu_custom_call.1} parent=80 // loop_body
            %v6514 = vld [vmem:[%s6512] sm:%s6505]
            %6515 = vst [vmem:[%s6513] sm:%s6505] %v6514
          $region86: #{tpu_custom_call.1} parent=80 // loop_footer
            %s6511 = sadd.s32 1, %s6507
          $region87: #{tpu_custom_call.1} parent=80 // loop_footer_branch
            %6506 = sbr.rel target = $region83
          $region88: #{tpu_custom_call.1} parent=80 // loop_exit
            _
        $region81: #{tpu_custom_call.1} parent=72 // pred_fallthru
          _
      $region73: #{tpu_custom_call.1} parent=68 // pred_fallthru
        _
      %6530 = vnop
    $region69: #{tpu_custom_call.1} parent=1 // pred_fallthru
      _
    // Predicated region
    $region100: #{tpu_custom_call.1} parent=1 // pred_check
      _
    $region101: #{tpu_custom_call.1} parent=1 // pred_check_branch
      %6532 = sbr.rel (0) target = $region103
    $region102: #{tpu_custom_call.1} parent=1 // pred_region
      _
    $region103: #{tpu_custom_call.1} parent=1 // pred_fallthru
      _
    %6533 = vsyncpa [#allocation4], 1
    %6534 = vsyncpa [#allocation6], 1
    %6535 = vsyncpa [#allocation9], 1
    %6536 = vsyncpa [#allocation12], 1

</llo_original>
